<compile_context>
chip_gen: v5e
topology: v5e:2x2
jax: 0.10.0
libtpu: 0.0.40
codegen_flags: <defaults>
</compile_context>

<pallas_src>
import functools

import jax
import jax.numpy as jnp
from jax import lax
from jax.experimental import pallas as pl
from jax.experimental.pallas import tpu as pltpu
import numpy as np


def _block_kernel(scale_ref, bias_ref, w1_ref, w2_ref, x_ref, o_ref,
                  pad_ref, col_ref, *, b_tile, height, width, channels):
    B, H, W, C = b_tile, height, width, channels
    M = B * H * W

    x = x_ref[...]                                          # (M, C) f32 residual input

    # --- BatchNorm (inference affine) + ReLU, f32 on the VPU ---
    y = jnp.maximum(x * scale_ref[...] + bias_ref[...], 0.0)

    # Zero only the 1-pixel halo of the shared padded scratch.  Done every grid
    # step (cheap edge strips) rather than once under pl.when(program_id == 0),
    # because with the "parallel" batch axis on v7x a core may never execute
    # step 0.  The interior is fully overwritten below each step.
    zrow = jnp.zeros((B, 1, W + 2, C), jnp.float32)
    zcol = jnp.zeros((B, H + 2, 1, C), jnp.float32)
    pad_ref[:, 0:1, :, :] = zrow
    pad_ref[:, H + 1:H + 2, :, :] = zrow
    pad_ref[:, :, 0:1, :] = zcol
    pad_ref[:, :, W + 1:W + 2, :] = zcol

    def conv3x3(inp_2d, w_ref):
        # Write activation into the padded-buffer interior (halo stays zero).
        pad_ref[:, 1:H + 1, 1:W + 1, :] = inp_2d.reshape(B, H, W, C)
        # im2col: 9 shifted windows concatenated along channels -> (M, 9C) bf16.
        for t in range(9):
            ky, kx = t // 3, t % 3
            patch = pad_ref[:, ky:ky + H, kx:kx + W, :].reshape(M, C)
            col_ref[:, t * C:(t + 1) * C] = patch.astype(jnp.bfloat16)
        # One fused MXU matmul per conv: (M, 9C) x (9C, C), f32 accumulation.
        return jnp.dot(col_ref[...], w_ref[...],
                       preferred_element_type=jnp.float32)

    h = jnp.maximum(conv3x3(y, w1_ref), 0.0)                # conv1 + ReLU
    out = jnp.maximum(conv3x3(h, w2_ref), 0.0) + x          # conv2 + ReLU + residual
    o_ref[...] = out.astype(o_ref.dtype)


def block_forward(x_nchw, gamma, beta, running_mean, running_var,
                  w1_hwio, w2_hwio, eps=1e-5, b_tile=None):
    """x_nchw: (N, C, H, W) float32. Returns (N, C, H, W)."""
    x = jnp.transpose(x_nchw, (0, 2, 3, 1))                 # NCHW -> NHWC
    N, H, W, C = x.shape

    # Pick images-per-grid-step so the matmul M dimension is ~256 rows.
    if b_tile is None:
        target = max(1, 256 // (H * W))
        b_tile = 1
        for b in range(1, min(N, target) + 1):
            if N % b == 0:
                b_tile = b
    assert N % b_tile == 0, "batch must be divisible by the chosen tile"
    m_blk = b_tile * H * W

    # Fold BN running stats into a per-channel affine (eval-mode BN).
    scale = (gamma / jnp.sqrt(running_var + eps)).astype(jnp.float32)
    bias = (beta - running_mean * scale).astype(jnp.float32)
    scale2d = scale.reshape(1, C)
    bias2d = bias.reshape(1, C)

    # HWIO (3,3,Cin,Cout) -> (9*Cin, Cout); row block t = ky*3+kx matches the
    # kernel's im2col channel-block order.  bf16 operands for the MXU.
    w1_mat = w1_hwio.reshape(9 * C, C).astype(jnp.bfloat16)
    w2_mat = w2_hwio.reshape(9 * C, C).astype(jnp.bfloat16)

    x2d = x.reshape(N * H * W, C)

    kernel = functools.partial(_block_kernel, b_tile=b_tile, height=H,
                               width=W, channels=C)

    out2d = pl.pallas_call(
        kernel,
        out_shape=jax.ShapeDtypeStruct((N * H * W, C), x.dtype),
        grid_spec=pltpu.PrefetchScalarGridSpec(
            num_scalar_prefetch=0,
            grid=(N // b_tile,),
            in_specs=[
                pl.BlockSpec((1, C), lambda n: (0, 0)),           # bn scale
                pl.BlockSpec((1, C), lambda n: (0, 0)),           # bn bias
                pl.BlockSpec((9 * C, C), lambda n: (0, 0)),       # conv1 weight (im2col)
                pl.BlockSpec((9 * C, C), lambda n: (0, 0)),       # conv2 weight (im2col)
                pl.BlockSpec((m_blk, C), lambda n: (n, 0)),       # input tile
            ],
            out_specs=pl.BlockSpec((m_blk, C), lambda n: (n, 0)),
            scratch_shapes=[
                pltpu.VMEM((b_tile, H + 2, W + 2, C), jnp.float32),  # padded activations
                pltpu.VMEM((m_blk, 9 * C), jnp.bfloat16),            # im2col buffer
            ],
        ),
        compiler_params=pltpu.CompilerParams(
            dimension_semantics=("parallel",)),   # shard batch steps across v7x cores
    )(scale2d, bias2d, w1_mat, w2_mat, x2d)

    out = out2d.reshape(N, H, W, C)
    return jnp.transpose(out, (0, 3, 1, 2))                  # NHWC -> NCHW


def block_reference(x_nchw, gamma, beta, running_mean, running_var,
                    w1_hwio, w2_hwio, eps=1e-5):
    """Pure-JAX reference (same eval-mode BN semantics)."""
    x = jnp.transpose(x_nchw, (0, 2, 3, 1))
    scale = gamma / jnp.sqrt(running_var + eps)
    bias = beta - running_mean * scale
    y = jnp.maximum(x * scale + bias, 0.0)
    c1 = lax.conv_general_dilated(
        y, w1_hwio, (1, 1), 'SAME',
        dimension_numbers=('NHWC', 'HWIO', 'NHWC'),
        precision=lax.Precision.HIGHEST)
    h = jnp.maximum(c1, 0.0)
    c2 = lax.conv_general_dilated(
        h, w2_hwio, (1, 1), 'SAME',
        dimension_numbers=('NHWC', 'HWIO', 'NHWC'),
        precision=lax.Precision.HIGHEST)
    out = jnp.maximum(c2, 0.0) + x
    return jnp.transpose(out, (0, 3, 1, 2))


if __name__ == "__main__":
    key = jax.random.PRNGKey(0)
    N, C, H, W = 8, 64, 8, 8                       # module default c=64, small spatial
    k = jax.random.split(key, 7)

    x_nchw = jax.random.normal(k[0], (N, C, H, W), jnp.float32)
    gamma = 1.0 + 0.1 * jax.random.normal(k[1], (C,), jnp.float32)
    beta = 0.1 * jax.random.normal(k[2], (C,), jnp.float32)
    running_mean = 0.1 * jax.random.normal(k[3], (C,), jnp.float32)
    running_var = 1.0 + 0.1 * jnp.abs(jax.random.normal(k[4], (C,), jnp.float32))
    w1 = 0.05 * jax.random.normal(k[5], (3, 3, C, C), jnp.float32)   # HWIO
    w2 = 0.05 * jax.random.normal(k[6], (3, 3, C, C), jnp.float32)   # HWIO

    out = block_forward(x_nchw, gamma, beta, running_mean, running_var, w1, w2)
    out = jax.block_until_ready(out)

    ref = block_reference(x_nchw, gamma, beta, running_mean, running_var, w1, w2)
    ref = jax.block_until_ready(ref)

    # bf16 MXU operands with f32 accumulation vs f32 HIGHEST reference.
    np.testing.assert_allclose(np.asarray(out), np.asarray(ref),
                               rtol=2e-2, atol=2e-2)
    print("KERNEL_OK")
</pallas_src>

<mosaic_0001>
module attributes {stable_mosaic.version = 11 : i64} {
  func.func @_block_kernel(%arg0: i32, %arg1: memref<1x64xf32, #tpu.memory_space<vmem>>, %arg2: memref<1x64xf32, #tpu.memory_space<vmem>>, %arg3: memref<576x64xbf16, #tpu.memory_space<vmem>>, %arg4: memref<576x64xbf16, #tpu.memory_space<vmem>>, %arg5: memref<256x64xf32, #tpu.memory_space<vmem>>, %arg6: memref<256x64xf32, #tpu.memory_space<vmem>>, %arg7: memref<4x10x10x64xf32, #tpu.memory_space<vmem>>, %arg8: memref<256x576xbf16, #tpu.memory_space<vmem>>) attributes {dimension_semantics = [#tpu.dimension_semantics<parallel>], iteration_bounds = array<i64: 2>, scalar_prefetch = 0 : i64, scratch_operands = 2 : i64, tpu.core_type = #tpu.core_type<tc>, window_params = [{pipeline_mode = #tpu.pipeline_mode<synchronous>, transform_indices = @transform_0, window_bounds = array<i64: 1, 64>}, {pipeline_mode = #tpu.pipeline_mode<synchronous>, transform_indices = @transform_1, window_bounds = array<i64: 1, 64>}, {pipeline_mode = #tpu.pipeline_mode<synchronous>, transform_indices = @transform_2, window_bounds = array<i64: 576, 64>}, {pipeline_mode = #tpu.pipeline_mode<synchronous>, transform_indices = @transform_3, window_bounds = array<i64: 576, 64>}, {transform_indices = @transform_4, window_bounds = array<i64: 256, 64>}, {transform_indices = @transform_5, window_bounds = array<i64: 256, 64>}]} {
    %c0 = arith.constant 0 : index
    %c0_0 = arith.constant 0 : index
    %0 = vector.load %arg5[%c0, %c0_0] : memref<256x64xf32, #tpu.memory_space<vmem>>, vector<256x64xf32>
    %c0_1 = arith.constant 0 : index
    %c0_2 = arith.constant 0 : index
    %1 = vector.load %arg1[%c0_1, %c0_2] : memref<1x64xf32, #tpu.memory_space<vmem>>, vector<1x64xf32>
    %2 = vector.broadcast %1 : vector<1x64xf32> to vector<256x64xf32>
    %3 = arith.mulf %0, %2 : vector<256x64xf32>
    %c0_3 = arith.constant 0 : index
    %c0_4 = arith.constant 0 : index
    %4 = vector.load %arg2[%c0_3, %c0_4] : memref<1x64xf32, #tpu.memory_space<vmem>>, vector<1x64xf32>
    %5 = vector.broadcast %4 : vector<1x64xf32> to vector<256x64xf32>
    %6 = arith.addf %3, %5 : vector<256x64xf32>
    %cst = arith.constant 0.000000e+00 : f32
    %7 = vector.broadcast %cst : f32 to vector<256x64xf32>
    %8 = arith.maximumf %6, %7 : vector<256x64xf32>
    %cst_5 = arith.constant 0.000000e+00 : f32
    %9 = vector.broadcast %cst_5 : f32 to vector<4x1x10x64xf32>
    %cst_6 = arith.constant 0.000000e+00 : f32
    %10 = vector.broadcast %cst_6 : f32 to vector<4x10x1x64xf32>
    %c0_7 = arith.constant 0 : index
    %c0_8 = arith.constant 0 : index
    %c0_9 = arith.constant 0 : index
    %c0_10 = arith.constant 0 : index
    %11 = vector.load %arg7[%c0_7, %c0_8, %c0_9, %c0_10] : memref<4x10x10x64xf32, #tpu.memory_space<vmem>>, vector<4x1x10x64xf32>
    tpu.vector_store %arg7[%c0_7, %c0_8, %c0_9, %c0_10], %9 {strides = array<i32>} : memref<4x10x10x64xf32, #tpu.memory_space<vmem>>, vector<4x1x10x64xf32>,
    %c0_11 = arith.constant 0 : index
    %c9 = arith.constant 9 : index
    %c0_12 = arith.constant 0 : index
    %c0_13 = arith.constant 0 : index
    %12 = vector.load %arg7[%c0_11, %c9, %c0_12, %c0_13] : memref<4x10x10x64xf32, #tpu.memory_space<vmem>>, vector<4x1x10x64xf32>
    tpu.vector_store %arg7[%c0_11, %c9, %c0_12, %c0_13], %9 {strides = array<i32>} : memref<4x10x10x64xf32, #tpu.memory_space<vmem>>, vector<4x1x10x64xf32>,
    %c0_14 = arith.constant 0 : index
    %c0_15 = arith.constant 0 : index
    %c0_16 = arith.constant 0 : index
    %c0_17 = arith.constant 0 : index
    %13 = vector.load %arg7[%c0_14, %c0_15, %c0_16, %c0_17] : memref<4x10x10x64xf32, #tpu.memory_space<vmem>>, vector<4x10x1x64xf32>
    tpu.vector_store %arg7[%c0_14, %c0_15, %c0_16, %c0_17], %10 {strides = array<i32>} : memref<4x10x10x64xf32, #tpu.memory_space<vmem>>, vector<4x10x1x64xf32>,
    %c0_18 = arith.constant 0 : index
    %c0_19 = arith.constant 0 : index
    %c9_20 = arith.constant 9 : index
    %c0_21 = arith.constant 0 : index
    %14 = vector.load %arg7[%c0_18, %c0_19, %c9_20, %c0_21] : memref<4x10x10x64xf32, #tpu.memory_space<vmem>>, vector<4x10x1x64xf32>
    tpu.vector_store %arg7[%c0_18, %c0_19, %c9_20, %c0_21], %10 {strides = array<i32>} : memref<4x10x10x64xf32, #tpu.memory_space<vmem>>, vector<4x10x1x64xf32>,
    %15 = vector.shape_cast %8 : vector<256x64xf32> to vector<4x8x8x64xf32>
    %c0_22 = arith.constant 0 : index
    %c1 = arith.constant 1 : index
    %c1_23 = arith.constant 1 : index
    %c0_24 = arith.constant 0 : index
    %16 = vector.load %arg7[%c0_22, %c1, %c1_23, %c0_24] : memref<4x10x10x64xf32, #tpu.memory_space<vmem>>, vector<4x8x8x64xf32>
    tpu.vector_store %arg7[%c0_22, %c1, %c1_23, %c0_24], %15 {strides = array<i32>} : memref<4x10x10x64xf32, #tpu.memory_space<vmem>>, vector<4x8x8x64xf32>,
    %c0_25 = arith.constant 0 : index
    %c0_26 = arith.constant 0 : index
    %c0_27 = arith.constant 0 : index
    %c0_28 = arith.constant 0 : index
    %17 = vector.load %arg7[%c0_25, %c0_26, %c0_27, %c0_28] : memref<4x10x10x64xf32, #tpu.memory_space<vmem>>, vector<4x8x8x64xf32>
    %18 = vector.shape_cast %17 : vector<4x8x8x64xf32> to vector<256x64xf32>
    %19 = arith.truncf %18 : vector<256x64xf32> to vector<256x64xbf16>
    %c0_29 = arith.constant 0 : index
    %c0_30 = arith.constant 0 : index
    %20 = vector.load %arg8[%c0_29, %c0_30] : memref<256x576xbf16, #tpu.memory_space<vmem>>, vector<256x64xbf16>
    tpu.vector_store %arg8[%c0_29, %c0_30], %19 {strides = array<i32>} : memref<256x576xbf16, #tpu.memory_space<vmem>>, vector<256x64xbf16>,
    %c0_31 = arith.constant 0 : index
    %c0_32 = arith.constant 0 : index
    %c1_33 = arith.constant 1 : index
    %c0_34 = arith.constant 0 : index
    %21 = vector.load %arg7[%c0_31, %c0_32, %c1_33, %c0_34] : memref<4x10x10x64xf32, #tpu.memory_space<vmem>>, vector<4x8x8x64xf32>
    %22 = vector.shape_cast %21 : vector<4x8x8x64xf32> to vector<256x64xf32>
    %23 = arith.truncf %22 : vector<256x64xf32> to vector<256x64xbf16>
    %c0_35 = arith.constant 0 : index
    %c64 = arith.constant 64 : index
    %24 = vector.load %arg8[%c0_35, %c64] : memref<256x576xbf16, #tpu.memory_space<vmem>>, vector<256x64xbf16>
    tpu.vector_store %arg8[%c0_35, %c64], %23 {strides = array<i32>} : memref<256x576xbf16, #tpu.memory_space<vmem>>, vector<256x64xbf16>,
    %c0_36 = arith.constant 0 : index
    %c0_37 = arith.constant 0 : index
    %c2 = arith.constant 2 : index
    %c0_38 = arith.constant 0 : index
    %25 = vector.load %arg7[%c0_36, %c0_37, %c2, %c0_38] : memref<4x10x10x64xf32, #tpu.memory_space<vmem>>, vector<4x8x8x64xf32>
    %26 = vector.shape_cast %25 : vector<4x8x8x64xf32> to vector<256x64xf32>
    %27 = arith.truncf %26 : vector<256x64xf32> to vector<256x64xbf16>
    %c0_39 = arith.constant 0 : index
    %c128 = arith.constant 128 : index
    %28 = vector.load %arg8[%c0_39, %c128] : memref<256x576xbf16, #tpu.memory_space<vmem>>, vector<256x64xbf16>
    tpu.vector_store %arg8[%c0_39, %c128], %27 {strides = array<i32>} : memref<256x576xbf16, #tpu.memory_space<vmem>>, vector<256x64xbf16>,
    %c0_40 = arith.constant 0 : index
    %c1_41 = arith.constant 1 : index
    %c0_42 = arith.constant 0 : index
    %c0_43 = arith.constant 0 : index
    %29 = vector.load %arg7[%c0_40, %c1_41, %c0_42, %c0_43] : memref<4x10x10x64xf32, #tpu.memory_space<vmem>>, vector<4x8x8x64xf32>
    %30 = vector.shape_cast %29 : vector<4x8x8x64xf32> to vector<256x64xf32>
    %31 = arith.truncf %30 : vector<256x64xf32> to vector<256x64xbf16>
    %c0_44 = arith.constant 0 : index
    %c192 = arith.constant 192 : index
    %32 = vector.load %arg8[%c0_44, %c192] : memref<256x576xbf16, #tpu.memory_space<vmem>>, vector<256x64xbf16>
    tpu.vector_store %arg8[%c0_44, %c192], %31 {strides = array<i32>} : memref<256x576xbf16, #tpu.memory_space<vmem>>, vector<256x64xbf16>,
    %c0_45 = arith.constant 0 : index
    %c1_46 = arith.constant 1 : index
    %c1_47 = arith.constant 1 : index
    %c0_48 = arith.constant 0 : index
    %33 = vector.load %arg7[%c0_45, %c1_46, %c1_47, %c0_48] : memref<4x10x10x64xf32, #tpu.memory_space<vmem>>, vector<4x8x8x64xf32>
    %34 = vector.shape_cast %33 : vector<4x8x8x64xf32> to vector<256x64xf32>
    %35 = arith.truncf %34 : vector<256x64xf32> to vector<256x64xbf16>
    %c0_49 = arith.constant 0 : index
    %c256 = arith.constant 256 : index
    %36 = vector.load %arg8[%c0_49, %c256] : memref<256x576xbf16, #tpu.memory_space<vmem>>, vector<256x64xbf16>
    tpu.vector_store %arg8[%c0_49, %c256], %35 {strides = array<i32>} : memref<256x576xbf16, #tpu.memory_space<vmem>>, vector<256x64xbf16>,
    %c0_50 = arith.constant 0 : index
    %c1_51 = arith.constant 1 : index
    %c2_52 = arith.constant 2 : index
    %c0_53 = arith.constant 0 : index
    %37 = vector.load %arg7[%c0_50, %c1_51, %c2_52, %c0_53] : memref<4x10x10x64xf32, #tpu.memory_space<vmem>>, vector<4x8x8x64xf32>
    %38 = vector.shape_cast %37 : vector<4x8x8x64xf32> to vector<256x64xf32>
    %39 = arith.truncf %38 : vector<256x64xf32> to vector<256x64xbf16>
    %c0_54 = arith.constant 0 : index
    %c320 = arith.constant 320 : index
    %40 = vector.load %arg8[%c0_54, %c320] : memref<256x576xbf16, #tpu.memory_space<vmem>>, vector<256x64xbf16>
    tpu.vector_store %arg8[%c0_54, %c320], %39 {strides = array<i32>} : memref<256x576xbf16, #tpu.memory_space<vmem>>, vector<256x64xbf16>,
    %c0_55 = arith.constant 0 : index
    %c2_56 = arith.constant 2 : index
    %c0_57 = arith.constant 0 : index
    %c0_58 = arith.constant 0 : index
    %41 = vector.load %arg7[%c0_55, %c2_56, %c0_57, %c0_58] : memref<4x10x10x64xf32, #tpu.memory_space<vmem>>, vector<4x8x8x64xf32>
    %42 = vector.shape_cast %41 : vector<4x8x8x64xf32> to vector<256x64xf32>
    %43 = arith.truncf %42 : vector<256x64xf32> to vector<256x64xbf16>
    %c0_59 = arith.constant 0 : index
    %c384 = arith.constant 384 : index
    %44 = vector.load %arg8[%c0_59, %c384] : memref<256x576xbf16, #tpu.memory_space<vmem>>, vector<256x64xbf16>
    tpu.vector_store %arg8[%c0_59, %c384], %43 {strides = array<i32>} : memref<256x576xbf16, #tpu.memory_space<vmem>>, vector<256x64xbf16>,
    %c0_60 = arith.constant 0 : index
    %c2_61 = arith.constant 2 : index
    %c1_62 = arith.constant 1 : index
    %c0_63 = arith.constant 0 : index
    %45 = vector.load %arg7[%c0_60, %c2_61, %c1_62, %c0_63] : memref<4x10x10x64xf32, #tpu.memory_space<vmem>>, vector<4x8x8x64xf32>
    %46 = vector.shape_cast %45 : vector<4x8x8x64xf32> to vector<256x64xf32>
    %47 = arith.truncf %46 : vector<256x64xf32> to vector<256x64xbf16>
    %c0_64 = arith.constant 0 : index
    %c448 = arith.constant 448 : index
    %48 = vector.load %arg8[%c0_64, %c448] : memref<256x576xbf16, #tpu.memory_space<vmem>>, vector<256x64xbf16>
    tpu.vector_store %arg8[%c0_64, %c448], %47 {strides = array<i32>} : memref<256x576xbf16, #tpu.memory_space<vmem>>, vector<256x64xbf16>,
    %c0_65 = arith.constant 0 : index
    %c2_66 = arith.constant 2 : index
    %c2_67 = arith.constant 2 : index
    %c0_68 = arith.constant 0 : index
    %49 = vector.load %arg7[%c0_65, %c2_66, %c2_67, %c0_68] : memref<4x10x10x64xf32, #tpu.memory_space<vmem>>, vector<4x8x8x64xf32>
    %50 = vector.shape_cast %49 : vector<4x8x8x64xf32> to vector<256x64xf32>
    %51 = arith.truncf %50 : vector<256x64xf32> to vector<256x64xbf16>
    %c0_69 = arith.constant 0 : index
    %c512 = arith.constant 512 : index
    %52 = vector.load %arg8[%c0_69, %c512] : memref<256x576xbf16, #tpu.memory_space<vmem>>, vector<256x64xbf16>
    tpu.vector_store %arg8[%c0_69, %c512], %51 {strides = array<i32>} : memref<256x576xbf16, #tpu.memory_space<vmem>>, vector<256x64xbf16>,
    %c0_70 = arith.constant 0 : index
    %c0_71 = arith.constant 0 : index
    %53 = vector.load %arg8[%c0_70, %c0_71] : memref<256x576xbf16, #tpu.memory_space<vmem>>, vector<256x576xbf16>
    %c0_72 = arith.constant 0 : index
    %c0_73 = arith.constant 0 : index
    %54 = vector.load %arg3[%c0_72, %c0_73] : memref<576x64xbf16, #tpu.memory_space<vmem>>, vector<576x64xbf16>
    %cst_74 = arith.constant dense<0.000000e+00> : vector<256x64xf32>
    %55 = tpu.matmul %53, %54, %cst_74 {dimension_numbers = #tpu.dot_dimension_numbers<[1], [0], [0], [1], [0, 0, 1, 1], [], []>} : vector<256x576xbf16>, vector<576x64xbf16>, vector<256x64xf32> -> vector<256x64xf32>
    %cst_75 = arith.constant 0.000000e+00 : f32
    %56 = vector.broadcast %cst_75 : f32 to vector<256x64xf32>
    %57 = arith.maximumf %55, %56 : vector<256x64xf32>
    %58 = vector.shape_cast %57 : vector<256x64xf32> to vector<4x8x8x64xf32>
    %c0_76 = arith.constant 0 : index
    %c1_77 = arith.constant 1 : index
    %c1_78 = arith.constant 1 : index
    %c0_79 = arith.constant 0 : index
    %59 = vector.load %arg7[%c0_76, %c1_77, %c1_78, %c0_79] : memref<4x10x10x64xf32, #tpu.memory_space<vmem>>, vector<4x8x8x64xf32>
    tpu.vector_store %arg7[%c0_76, %c1_77, %c1_78, %c0_79], %58 {strides = array<i32>} : memref<4x10x10x64xf32, #tpu.memory_space<vmem>>, vector<4x8x8x64xf32>,
    %c0_80 = arith.constant 0 : index
    %c0_81 = arith.constant 0 : index
    %c0_82 = arith.constant 0 : index
    %c0_83 = arith.constant 0 : index
    %60 = vector.load %arg7[%c0_80, %c0_81, %c0_82, %c0_83] : memref<4x10x10x64xf32, #tpu.memory_space<vmem>>, vector<4x8x8x64xf32>
    %61 = vector.shape_cast %60 : vector<4x8x8x64xf32> to vector<256x64xf32>
    %62 = arith.truncf %61 : vector<256x64xf32> to vector<256x64xbf16>
    %c0_84 = arith.constant 0 : index
    %c0_85 = arith.constant 0 : index
    %63 = vector.load %arg8[%c0_84, %c0_85] : memref<256x576xbf16, #tpu.memory_space<vmem>>, vector<256x64xbf16>
    tpu.vector_store %arg8[%c0_84, %c0_85], %62 {strides = array<i32>} : memref<256x576xbf16, #tpu.memory_space<vmem>>, vector<256x64xbf16>,
    %c0_86 = arith.constant 0 : index
    %c0_87 = arith.constant 0 : index
    %c1_88 = arith.constant 1 : index
    %c0_89 = arith.constant 0 : index
    %64 = vector.load %arg7[%c0_86, %c0_87, %c1_88, %c0_89] : memref<4x10x10x64xf32, #tpu.memory_space<vmem>>, vector<4x8x8x64xf32>
    %65 = vector.shape_cast %64 : vector<4x8x8x64xf32> to vector<256x64xf32>
    %66 = arith.truncf %65 : vector<256x64xf32> to vector<256x64xbf16>
    %c0_90 = arith.constant 0 : index
    %c64_91 = arith.constant 64 : index
    %67 = vector.load %arg8[%c0_90, %c64_91] : memref<256x576xbf16, #tpu.memory_space<vmem>>, vector<256x64xbf16>
    tpu.vector_store %arg8[%c0_90, %c64_91], %66 {strides = array<i32>} : memref<256x576xbf16, #tpu.memory_space<vmem>>, vector<256x64xbf16>,
    %c0_92 = arith.constant 0 : index
    %c0_93 = arith.constant 0 : index
    %c2_94 = arith.constant 2 : index
    %c0_95 = arith.constant 0 : index
    %68 = vector.load %arg7[%c0_92, %c0_93, %c2_94, %c0_95] : memref<4x10x10x64xf32, #tpu.memory_space<vmem>>, vector<4x8x8x64xf32>
    %69 = vector.shape_cast %68 : vector<4x8x8x64xf32> to vector<256x64xf32>
    %70 = arith.truncf %69 : vector<256x64xf32> to vector<256x64xbf16>
    %c0_96 = arith.constant 0 : index
    %c128_97 = arith.constant 128 : index
    %71 = vector.load %arg8[%c0_96, %c128_97] : memref<256x576xbf16, #tpu.memory_space<vmem>>, vector<256x64xbf16>
    tpu.vector_store %arg8[%c0_96, %c128_97], %70 {strides = array<i32>} : memref<256x576xbf16, #tpu.memory_space<vmem>>, vector<256x64xbf16>,
    %c0_98 = arith.constant 0 : index
    %c1_99 = arith.constant 1 : index
    %c0_100 = arith.constant 0 : index
    %c0_101 = arith.constant 0 : index
    %72 = vector.load %arg7[%c0_98, %c1_99, %c0_100, %c0_101] : memref<4x10x10x64xf32, #tpu.memory_space<vmem>>, vector<4x8x8x64xf32>
    %73 = vector.shape_cast %72 : vector<4x8x8x64xf32> to vector<256x64xf32>
    %74 = arith.truncf %73 : vector<256x64xf32> to vector<256x64xbf16>
    %c0_102 = arith.constant 0 : index
    %c192_103 = arith.constant 192 : index
    %75 = vector.load %arg8[%c0_102, %c192_103] : memref<256x576xbf16, #tpu.memory_space<vmem>>, vector<256x64xbf16>
    tpu.vector_store %arg8[%c0_102, %c192_103], %74 {strides = array<i32>} : memref<256x576xbf16, #tpu.memory_space<vmem>>, vector<256x64xbf16>,
    %c0_104 = arith.constant 0 : index
    %c1_105 = arith.constant 1 : index
    %c1_106 = arith.constant 1 : index
    %c0_107 = arith.constant 0 : index
    %76 = vector.load %arg7[%c0_104, %c1_105, %c1_106, %c0_107] : memref<4x10x10x64xf32, #tpu.memory_space<vmem>>, vector<4x8x8x64xf32>
    %77 = vector.shape_cast %76 : vector<4x8x8x64xf32> to vector<256x64xf32>
    %78 = arith.truncf %77 : vector<256x64xf32> to vector<256x64xbf16>
    %c0_108 = arith.constant 0 : index
    %c256_109 = arith.constant 256 : index
    %79 = vector.load %arg8[%c0_108, %c256_109] : memref<256x576xbf16, #tpu.memory_space<vmem>>, vector<256x64xbf16>
    tpu.vector_store %arg8[%c0_108, %c256_109], %78 {strides = array<i32>} : memref<256x576xbf16, #tpu.memory_space<vmem>>, vector<256x64xbf16>,
    %c0_110 = arith.constant 0 : index
    %c1_111 = arith.constant 1 : index
    %c2_112 = arith.constant 2 : index
    %c0_113 = arith.constant 0 : index
    %80 = vector.load %arg7[%c0_110, %c1_111, %c2_112, %c0_113] : memref<4x10x10x64xf32, #tpu.memory_space<vmem>>, vector<4x8x8x64xf32>
    %81 = vector.shape_cast %80 : vector<4x8x8x64xf32> to vector<256x64xf32>
    %82 = arith.truncf %81 : vector<256x64xf32> to vector<256x64xbf16>
    %c0_114 = arith.constant 0 : index
    %c320_115 = arith.constant 320 : index
    %83 = vector.load %arg8[%c0_114, %c320_115] : memref<256x576xbf16, #tpu.memory_space<vmem>>, vector<256x64xbf16>
    tpu.vector_store %arg8[%c0_114, %c320_115], %82 {strides = array<i32>} : memref<256x576xbf16, #tpu.memory_space<vmem>>, vector<256x64xbf16>,
    %c0_116 = arith.constant 0 : index
    %c2_117 = arith.constant 2 : index
    %c0_118 = arith.constant 0 : index
    %c0_119 = arith.constant 0 : index
    %84 = vector.load %arg7[%c0_116, %c2_117, %c0_118, %c0_119] : memref<4x10x10x64xf32, #tpu.memory_space<vmem>>, vector<4x8x8x64xf32>
    %85 = vector.shape_cast %84 : vector<4x8x8x64xf32> to vector<256x64xf32>
    %86 = arith.truncf %85 : vector<256x64xf32> to vector<256x64xbf16>
    %c0_120 = arith.constant 0 : index
    %c384_121 = arith.constant 384 : index
    %87 = vector.load %arg8[%c0_120, %c384_121] : memref<256x576xbf16, #tpu.memory_space<vmem>>, vector<256x64xbf16>
    tpu.vector_store %arg8[%c0_120, %c384_121], %86 {strides = array<i32>} : memref<256x576xbf16, #tpu.memory_space<vmem>>, vector<256x64xbf16>,
    %c0_122 = arith.constant 0 : index
    %c2_123 = arith.constant 2 : index
    %c1_124 = arith.constant 1 : index
    %c0_125 = arith.constant 0 : index
    %88 = vector.load %arg7[%c0_122, %c2_123, %c1_124, %c0_125] : memref<4x10x10x64xf32, #tpu.memory_space<vmem>>, vector<4x8x8x64xf32>
    %89 = vector.shape_cast %88 : vector<4x8x8x64xf32> to vector<256x64xf32>
    %90 = arith.truncf %89 : vector<256x64xf32> to vector<256x64xbf16>
    %c0_126 = arith.constant 0 : index
    %c448_127 = arith.constant 448 : index
    %91 = vector.load %arg8[%c0_126, %c448_127] : memref<256x576xbf16, #tpu.memory_space<vmem>>, vector<256x64xbf16>
    tpu.vector_store %arg8[%c0_126, %c448_127], %90 {strides = array<i32>} : memref<256x576xbf16, #tpu.memory_space<vmem>>, vector<256x64xbf16>,
    %c0_128 = arith.constant 0 : index
    %c2_129 = arith.constant 2 : index
    %c2_130 = arith.constant 2 : index
    %c0_131 = arith.constant 0 : index
    %92 = vector.load %arg7[%c0_128, %c2_129, %c2_130, %c0_131] : memref<4x10x10x64xf32, #tpu.memory_space<vmem>>, vector<4x8x8x64xf32>
    %93 = vector.shape_cast %92 : vector<4x8x8x64xf32> to vector<256x64xf32>
    %94 = arith.truncf %93 : vector<256x64xf32> to vector<256x64xbf16>
    %c0_132 = arith.constant 0 : index
    %c512_133 = arith.constant 512 : index
    %95 = vector.load %arg8[%c0_132, %c512_133] : memref<256x576xbf16, #tpu.memory_space<vmem>>, vector<256x64xbf16>
    tpu.vector_store %arg8[%c0_132, %c512_133], %94 {strides = array<i32>} : memref<256x576xbf16, #tpu.memory_space<vmem>>, vector<256x64xbf16>,
    %c0_134 = arith.constant 0 : index
    %c0_135 = arith.constant 0 : index
    %96 = vector.load %arg8[%c0_134, %c0_135] : memref<256x576xbf16, #tpu.memory_space<vmem>>, vector<256x576xbf16>
    %c0_136 = arith.constant 0 : index
    %c0_137 = arith.constant 0 : index
    %97 = vector.load %arg4[%c0_136, %c0_137] : memref<576x64xbf16, #tpu.memory_space<vmem>>, vector<576x64xbf16>
    %cst_138 = arith.constant dense<0.000000e+00> : vector<256x64xf32>
    %98 = tpu.matmul %96, %97, %cst_138 {dimension_numbers = #tpu.dot_dimension_numbers<[1], [0], [0], [1], [0, 0, 1, 1], [], []>} : vector<256x576xbf16>, vector<576x64xbf16>, vector<256x64xf32> -> vector<256x64xf32>
    %cst_139 = arith.constant 0.000000e+00 : f32
    %99 = vector.broadcast %cst_139 : f32 to vector<256x64xf32>
    %100 = arith.maximumf %98, %99 : vector<256x64xf32>
    %101 = arith.addf %100, %0 : vector<256x64xf32>
    %c0_140 = arith.constant 0 : index
    %c0_141 = arith.constant 0 : index
    %102 = vector.load %arg6[%c0_140, %c0_141] : memref<256x64xf32, #tpu.memory_space<vmem>>, vector<256x64xf32>
    tpu.vector_store %arg6[%c0_140, %c0_141], %101 {strides = array<i32>} : memref<256x64xf32, #tpu.memory_space<vmem>>, vector<256x64xf32>,
    return
  }
  func.func @transform_0(%arg0: i32) -> (i32, i32) {
    %c0_i32 = arith.constant 0 : i32
    %c0_i32_0 = arith.constant 0 : i32
    %c0_i32_1 = arith.constant 0 : i32
    return %c0_i32, %c0_i32_0 : i32, i32
  }
  func.func @transform_1(%arg0: i32) -> (i32, i32) {
    %c0_i32 = arith.constant 0 : i32
    %c0_i32_0 = arith.constant 0 : i32
    %c0_i32_1 = arith.constant 0 : i32
    return %c0_i32, %c0_i32_0 : i32, i32
  }
  func.func @transform_2(%arg0: i32) -> (i32, i32) {
    %c0_i32 = arith.constant 0 : i32
    %c0_i32_0 = arith.constant 0 : i32
    %c0_i32_1 = arith.constant 0 : i32
    return %c0_i32, %c0_i32_0 : i32, i32
  }
  func.func @transform_3(%arg0: i32) -> (i32, i32) {
    %c0_i32 = arith.constant 0 : i32
    %c0_i32_0 = arith.constant 0 : i32
    %c0_i32_1 = arith.constant 0 : i32
    return %c0_i32, %c0_i32_0 : i32, i32
  }
  func.func @transform_4(%arg0: i32) -> (i32, i32) {
    %c0_i32 = arith.constant 0 : i32
    %c0_i32_0 = arith.constant 0 : i32
    return %arg0, %c0_i32 : i32, i32
  }
  func.func @transform_5(%arg0: i32) -> (i32, i32) {
    %c0_i32 = arith.constant 0 : i32
    %c0_i32_0 = arith.constant 0 : i32
    return %arg0, %c0_i32 : i32, i32
  }
}

</mosaic_0001>

<llo_original>
// kernel: tpu_custom_call.1
$region0: #{tpu_custom_call.1}
  #allocation0 [shape = 'u32[]', space=smem, size = 0x4, offset = 0x4, fixed_abs, tag = 'smem constant byte address 0x4 - core index']
  #allocation1 [shape = 'u32[72,128]{1,0:T(1,128)}', space=vmem, size = 0x9000, scoped, tag = 'internal scratch']
  #allocation2 [shape = 'f32[4,10,10,64]{3,2,1,0:T(8,128)}', space=vmem, size = 0x50000, scoped, tag = 'scratch operand']
  #allocation3 [shape = 'bf16[256,576]{1,0:T(8,128)(2,1)}', space=vmem, size = 0x50000, scoped, tag = 'scratch operand']
  %s0 = inlined_call_operand.vmem [shape: f32[1,64], index: 0, kind: input, shape index: {}]
  %s1 = inlined_call_operand.vmem [shape: f32[1,64], index: 1, kind: input, shape index: {}]
  %s2 = inlined_call_operand.vmem [shape: bf16[576,64], index: 2, kind: input, shape index: {}]
  %s3 = inlined_call_operand.vmem [shape: bf16[576,64], index: 3, kind: input, shape index: {}]
  %s4 = inlined_call_operand.vmem [shape: f32[512,64], index: 4, kind: input, shape index: {}]
  %s5 = inlined_call_operand.vmem [shape: f32[512,64], index: 5, kind: output, shape index: {}]
  %s6 = sld [smem:[#allocation0]]
  $region53: #{tpu_custom_call.1} parent=0
    _
  %s8 = ssub.s32 1, %s6
  %s9 = scalar_select 0, %s8, %s6
  loop: start=0, step=1, limit=4
  $region2: #{tpu_custom_call.1} parent=0 // loop_pre_header
    _
  $region3: #{tpu_custom_call.1} parent=0 // loop_header
    %s11 = sphi 0, %s15
    %p12 = scmp.ge.s32.totalorder %s11, 4
    %s19 = sphi 0, %s19
    %s21 = sphi 0, %s19
    %s22 = sphi 0, %s21
    %s36 = sphi 0, %s22
    %s40 = sphi 0, %s40
    %s42 = sphi 0, %s40
    %s43 = sphi 0, %s42
    %s57 = sphi 0, %s43
    %s61 = sphi 0, %s61
    %s63 = sphi 0, %s61
    %s64 = sphi 0, %s63
    %s78 = sphi 0, %s64
    %s82 = sphi 0, %s82
    %s84 = sphi 0, %s82
    %s85 = sphi 0, %s84
    %s99 = sphi 0, %s85
    %s105 = sphi 0, %s107
    %s108 = sphi 0, %s105
    %s109 = sphi 0, %s108
    %s125 = sphi 0, %s109
    %s131 = sphi 0, %s133
    %s134 = sphi 0, %s131
    %s135 = sphi 0, %s134
    %s151 = sphi 0, %s135
  $region4: #{tpu_custom_call.1} parent=0 // loop_header_branch
    %14 = sbr.rel (%p12) target = $region8
  $region5: #{tpu_custom_call.1} parent=0 // loop_body
    %s16 = ssub.s32 %s11, 1
    %s17 = ssub.s32 %s11, 2
    %s18 = sadd.s32 %s11, 1
    %s20 = sadd.s32 %s19, 1
    %p23 = scmp.eq.s32.totalorder %s11, 1
    %p24 = scmp.ne.s32.totalorder %s19, %s21
    %p25 = scmp.eq.s32.totalorder %s11, 0
    %p26 = por %p24, %p25
    %p27 = scmp.ne.s32.totalorder %s19, %s21
    %p28 = scmp.eq.s32.totalorder %s16, 1
    %p29 = por %p27, %p28
    %p30 = scmp.ne.s32.totalorder %s21, %s22
    %p31 = scmp.eq.s32.totalorder %s16, 0
    %p32 = por %p30, %p31
    %p33 = scmp.ne.s32.totalorder %s21, %s22
    %p34 = scmp.eq.s32.totalorder %s17, 1
    %p35 = por %p33, %p34
    %p37 = scmp.ne.s32.totalorder %s22, %s36
    %p38 = scmp.eq.s32.totalorder %s17, 0
    %p39 = por %p37, %p38
    %s41 = sadd.s32 %s40, 1
    %p44 = scmp.eq.s32.totalorder %s11, 1
    %p45 = scmp.ne.s32.totalorder %s40, %s42
    %p46 = scmp.eq.s32.totalorder %s11, 0
    %p47 = por %p45, %p46
    %p48 = scmp.ne.s32.totalorder %s40, %s42
    %p49 = scmp.eq.s32.totalorder %s16, 1
    %p50 = por %p48, %p49
    %p51 = scmp.ne.s32.totalorder %s42, %s43
    %p52 = scmp.eq.s32.totalorder %s16, 0
    %p53 = por %p51, %p52
    %p54 = scmp.ne.s32.totalorder %s42, %s43
    %p55 = scmp.eq.s32.totalorder %s17, 1
    %p56 = por %p54, %p55
    %p58 = scmp.ne.s32.totalorder %s43, %s57
    %p59 = scmp.eq.s32.totalorder %s17, 0
    %p60 = por %p58, %p59
    %s62 = sadd.s32 %s61, 1
    %p65 = scmp.eq.s32.totalorder %s11, 1
    %p66 = scmp.ne.s32.totalorder %s61, %s63
    %p67 = scmp.eq.s32.totalorder %s11, 0
    %p68 = por %p66, %p67
    %p69 = scmp.ne.s32.totalorder %s61, %s63
    %p70 = scmp.eq.s32.totalorder %s16, 1
    %p71 = por %p69, %p70
    %p72 = scmp.ne.s32.totalorder %s63, %s64
    %p73 = scmp.eq.s32.totalorder %s16, 0
    %p74 = por %p72, %p73
    %p75 = scmp.ne.s32.totalorder %s63, %s64
    %p76 = scmp.eq.s32.totalorder %s17, 1
    %p77 = por %p75, %p76
    %p79 = scmp.ne.s32.totalorder %s64, %s78
    %p80 = scmp.eq.s32.totalorder %s17, 0
    %p81 = por %p79, %p80
    %s83 = sadd.s32 %s82, 1
    %p86 = scmp.eq.s32.totalorder %s11, 1
    %p87 = scmp.ne.s32.totalorder %s82, %s84
    %p88 = scmp.eq.s32.totalorder %s11, 0
    %p89 = por %p87, %p88
    %p90 = scmp.ne.s32.totalorder %s82, %s84
    %p91 = scmp.eq.s32.totalorder %s16, 1
    %p92 = por %p90, %p91
    %p93 = scmp.ne.s32.totalorder %s84, %s85
    %p94 = scmp.eq.s32.totalorder %s16, 0
    %p95 = por %p93, %p94
    %p96 = scmp.ne.s32.totalorder %s84, %s85
    %p97 = scmp.eq.s32.totalorder %s17, 1
    %p98 = por %p96, %p97
    %p100 = scmp.ne.s32.totalorder %s85, %s99
    %p101 = scmp.eq.s32.totalorder %s17, 0
    %p102 = por %p100, %p101
    %s103 = ssub.s32 %s11, %s18
    %p104 = scmp.eq.s32.totalorder %s103, 0
    %s106 = sadd.s32 %s105, 1
    %s107 = scalar_select %p104, %s105, %s106
    %p110 = pneg %p104
    %p111 = scmp.eq.s32.totalorder %s11, 1
    %p112 = por %p110, %p111
    %p113 = scmp.ne.s32.totalorder %s105, %s108
    %p114 = scmp.eq.s32.totalorder %s11, 0
    %p115 = por %p113, %p114
    %p116 = scmp.ne.s32.totalorder %s105, %s108
    %p117 = scmp.eq.s32.totalorder %s16, 1
    %p118 = por %p116, %p117
    %p119 = scmp.ne.s32.totalorder %s108, %s109
    %p120 = scmp.eq.s32.totalorder %s16, 0
    %p121 = por %p119, %p120
    %p122 = scmp.ne.s32.totalorder %s108, %s109
    %p123 = scmp.eq.s32.totalorder %s17, 1
    %p124 = por %p122, %p123
    %p126 = scmp.ne.s32.totalorder %s109, %s125
    %p127 = scmp.eq.s32.totalorder %s17, 0
    %p128 = por %p126, %p127
    %s129 = ssub.s32 %s11, %s18
    %p130 = scmp.eq.s32.totalorder %s129, 0
    %s132 = sadd.s32 %s131, 1
    %s133 = scalar_select %p130, %s131, %s132
    %p136 = pneg %p130
    %p137 = scmp.eq.s32.totalorder %s11, 1
    %p138 = por %p136, %p137
    %p139 = scmp.ne.s32.totalorder %s131, %s134
    %p140 = scmp.eq.s32.totalorder %s11, 0
    %p141 = por %p139, %p140
    %p142 = scmp.ne.s32.totalorder %s131, %s134
    %p143 = scmp.eq.s32.totalorder %s16, 1
    %p144 = por %p142, %p143
    %p145 = scmp.ne.s32.totalorder %s134, %s135
    %p146 = scmp.eq.s32.totalorder %s16, 0
    %p147 = por %p145, %p146
    %p148 = scmp.ne.s32.totalorder %s134, %s135
    %p149 = scmp.eq.s32.totalorder %s17, 1
    %p150 = por %p148, %p149
    %p152 = scmp.ne.s32.totalorder %s135, %s151
    %p153 = scmp.eq.s32.totalorder %s17, 0
    %p154 = por %p152, %p153
    %p155 = scmp.le.s32.totalorder 1, %s11
    %p156 = scmp.lt.s32.totalorder %s11, 3
    %p157 = pnand %p155, %p156
    %p158 = pneg %p157
    // Predicated region
    $region9: #{tpu_custom_call.1} parent=5 // pred_check
      _
    $region10: #{tpu_custom_call.1} parent=5 // pred_check_branch
      %160 = sbr.rel (%p157) target = $region12
    $region11: #{tpu_custom_call.1} parent=5 // pred_region
      %s161 = ssub.s32 %s11, 1
      // Predicated region
      $region13: #{tpu_custom_call.1} parent=11 // pred_check
        %p162 = pneg %p32
      $region14: #{tpu_custom_call.1} parent=11 // pred_check_branch
        %164 = sbr.rel (%p162) target = $region16
      $region15: #{tpu_custom_call.1} parent=11 // pred_region
        _
      $region16: #{tpu_custom_call.1} parent=11 // pred_fallthru
        _
      // Predicated region
      $region17: #{tpu_custom_call.1} parent=11 // pred_check
        %p165 = pneg %p53
      $region18: #{tpu_custom_call.1} parent=11 // pred_check_branch
        %167 = sbr.rel (%p165) target = $region20
      $region19: #{tpu_custom_call.1} parent=11 // pred_region
        _
      $region20: #{tpu_custom_call.1} parent=11 // pred_fallthru
        _
      // Predicated region
      $region21: #{tpu_custom_call.1} parent=11 // pred_check
        %p168 = pneg %p74
      $region22: #{tpu_custom_call.1} parent=11 // pred_check_branch
        %170 = sbr.rel (%p168) target = $region24
      $region23: #{tpu_custom_call.1} parent=11 // pred_region
        _
      $region24: #{tpu_custom_call.1} parent=11 // pred_fallthru
        _
      // Predicated region
      $region25: #{tpu_custom_call.1} parent=11 // pred_check
        %p171 = pneg %p95
      $region26: #{tpu_custom_call.1} parent=11 // pred_check_branch
        %173 = sbr.rel (%p171) target = $region28
      $region27: #{tpu_custom_call.1} parent=11 // pred_region
        _
      $region28: #{tpu_custom_call.1} parent=11 // pred_fallthru
        _
    $region12: #{tpu_custom_call.1} parent=5 // pred_fallthru
      _
    %p174 = scmp.lt.s32.totalorder %s11, 2
    // Predicated region
    $region29: #{tpu_custom_call.1} parent=5 // pred_check
      %p175 = pneg %p174
    $region30: #{tpu_custom_call.1} parent=5 // pred_check_branch
      %177 = sbr.rel (%p175) target = $region32
    $region31: #{tpu_custom_call.1} parent=5 // pred_region
      // Predicated region
      $region33: #{tpu_custom_call.1} parent=31 // pred_check
        %p178 = pneg %p115
      $region34: #{tpu_custom_call.1} parent=31 // pred_check_branch
        %180 = sbr.rel (%p178) target = $region36
      $region35: #{tpu_custom_call.1} parent=31 // pred_region
        %s181 = smul.u32 32, %s11
        %p182 = scmp.lt.s32.totalorder %s181, 63
        %s183 = scalar_select %p182, %s181, 63
        %s184 = smul.addr %s183, 8
        %s185 = scalar_lea.vmem %s4, %s184
        %s186 = smul.u32 32, %s11
      $region36: #{tpu_custom_call.1} parent=31 // pred_fallthru
        _
    $region32: #{tpu_custom_call.1} parent=5 // pred_fallthru
      _
    %p187 = scmp.le.s32.totalorder 1, %s11
    %p188 = scmp.lt.s32.totalorder %s11, 3
    %p189 = pnand %p187, %p188
    %p190 = pneg %p189
    // Predicated region
    $region37: #{tpu_custom_call.1} parent=5 // pred_check
      _
    $region38: #{tpu_custom_call.1} parent=5 // pred_check_branch
      %192 = sbr.rel (%p189) target = $region40
    $region39: #{tpu_custom_call.1} parent=5 // pred_region
      %s193 = ssub.s32 %s11, 1
      %p194 = pneg %p32
      %p195 = pneg %p29
      %p196 = pneg %p53
      %p197 = pneg %p50
      %p198 = pneg %p74
      %p199 = pneg %p71
      %p200 = pneg %p95
      %p201 = pneg %p92
      %s202 = smul.u32 32, %s16
      %p203 = scmp.lt.s32.totalorder %s202, 63
      %s204 = scalar_select %p203, %s202, 63
      %s205 = smul.addr %s204, 8
      %s206 = scalar_lea.vmem %s4, %s205
      %p207 = pneg %p121
      %p208 = pneg %p118
      %p209 = pneg %p147
      %p210 = pneg %p144
      %s211 = smul.u32 32, %s16
      %p212 = scmp.lt.s32.totalorder %s211, 63
      %s213 = scalar_select %p212, %s211, 63
      %s214 = smul.addr %s213, 8
      %s215 = scalar_lea.vmem %s5, %s214
      %s216 = smul.u32 32, %s16
      %p217 = scmp.lt.s32.totalorder %s216, 63
      %s218 = scalar_select %p217, %s216, 63
      %s219 = smul.addr %s218, 8
      %s220 = scalar_lea.vmem %s4, %s219
      %s221 = smul.u32 32, %s16
      %s222 = smul.u32 32, %s16
      %p223 = scmp.lt.s32.totalorder %s222, 63
      %s224 = scalar_select %p223, %s222, 63
      %s225 = smul.addr %s224, 8
      %s226 = scalar_lea.vmem %s5, %s225
      %s227 = smul.u32 32, %s16
      %v229 = vld [vmem:[%s220] sm:$0xff]
      %v230 = vld [vmem:[%s220 + $0x8] sm:$0xff]
      %v231 = vld [vmem:[%s220 + $0x10] sm:$0xff]
      %v232 = vld [vmem:[%s220 + $0x18] sm:$0xff]
      %v233 = vld [vmem:[%s220 + $0x20] sm:$0xff]
      %v234 = vld [vmem:[%s220 + $0x28] sm:$0xff]
      %v235 = vld [vmem:[%s220 + $0x30] sm:$0xff]
      %v236 = vld [vmem:[%s220 + $0x38] sm:$0xff]
      %v237 = vld [vmem:[%s220 + $0x40] sm:$0xff]
      %v238 = vld [vmem:[%s220 + $0x48] sm:$0xff]
      %v239 = vld [vmem:[%s220 + $0x50] sm:$0xff]
      %v240 = vld [vmem:[%s220 + $0x58] sm:$0xff]
      %v241 = vld [vmem:[%s220 + $0x60] sm:$0xff]
      %v242 = vld [vmem:[%s220 + $0x68] sm:$0xff]
      %v243 = vld [vmem:[%s220 + $0x70] sm:$0xff]
      %v244 = vld [vmem:[%s220 + $0x78] sm:$0xff]
      %v245 = vld [vmem:[%s220 + $0x80] sm:$0xff]
      %v246 = vld [vmem:[%s220 + $0x88] sm:$0xff]
      %v247 = vld [vmem:[%s220 + $0x90] sm:$0xff]
      %v248 = vld [vmem:[%s220 + $0x98] sm:$0xff]
      %v249 = vld [vmem:[%s220 + $0xa0] sm:$0xff]
      %v250 = vld [vmem:[%s220 + $0xa8] sm:$0xff]
      %v251 = vld [vmem:[%s220 + $0xb0] sm:$0xff]
      %v252 = vld [vmem:[%s220 + $0xb8] sm:$0xff]
      %v253 = vld [vmem:[%s220 + $0xc0] sm:$0xff]
      %v254 = vld [vmem:[%s220 + $0xc8] sm:$0xff]
      %v255 = vld [vmem:[%s220 + $0xd0] sm:$0xff]
      %v256 = vld [vmem:[%s220 + $0xd8] sm:$0xff]
      %v257 = vld [vmem:[%s220 + $0xe0] sm:$0xff]
      %v258 = vld [vmem:[%s220 + $0xe8] sm:$0xff]
      %v259 = vld [vmem:[%s220 + $0xf0] sm:$0xff]
      %v260 = vld [vmem:[%s220 + $0xf8] sm:$0xff]
      %v261 = vld [vmem:[%s0] sm:$0x1]
      %v263 = vperm.slane %v261, 0
      %v265 = vmul.f32 %v229, %v263
      %v266 = vmul.f32 %v230, %v263
      %v267 = vmul.f32 %v231, %v263
      %v268 = vmul.f32 %v232, %v263
      %v269 = vmul.f32 %v233, %v263
      %v270 = vmul.f32 %v234, %v263
      %v271 = vmul.f32 %v235, %v263
      %v272 = vmul.f32 %v236, %v263
      %v273 = vmul.f32 %v237, %v263
      %v274 = vmul.f32 %v238, %v263
      %v275 = vmul.f32 %v239, %v263
      %v276 = vmul.f32 %v240, %v263
      %v277 = vmul.f32 %v241, %v263
      %v278 = vmul.f32 %v242, %v263
      %v279 = vmul.f32 %v243, %v263
      %v280 = vmul.f32 %v244, %v263
      %v281 = vmul.f32 %v245, %v263
      %v282 = vmul.f32 %v246, %v263
      %v283 = vmul.f32 %v247, %v263
      %v284 = vmul.f32 %v248, %v263
      %v285 = vmul.f32 %v249, %v263
      %v286 = vmul.f32 %v250, %v263
      %v287 = vmul.f32 %v251, %v263
      %v288 = vmul.f32 %v252, %v263
      %v289 = vmul.f32 %v253, %v263
      %v290 = vmul.f32 %v254, %v263
      %v291 = vmul.f32 %v255, %v263
      %v292 = vmul.f32 %v256, %v263
      %v293 = vmul.f32 %v257, %v263
      %v294 = vmul.f32 %v258, %v263
      %v295 = vmul.f32 %v259, %v263
      %v296 = vmul.f32 %v260, %v263
      %v297 = vld [vmem:[%s1] sm:$0x1]
      %v299 = vperm.slane %v297, 0
      %v301 = vadd.f32 %v265, %v299
      %v302 = vadd.f32 %v266, %v299
      %v303 = vadd.f32 %v267, %v299
      %v304 = vadd.f32 %v268, %v299
      %v305 = vadd.f32 %v269, %v299
      %v306 = vadd.f32 %v270, %v299
      %v307 = vadd.f32 %v271, %v299
      %v308 = vadd.f32 %v272, %v299
      %v309 = vadd.f32 %v273, %v299
      %v310 = vadd.f32 %v274, %v299
      %v311 = vadd.f32 %v275, %v299
      %v312 = vadd.f32 %v276, %v299
      %v313 = vadd.f32 %v277, %v299
      %v314 = vadd.f32 %v278, %v299
      %v315 = vadd.f32 %v279, %v299
      %v316 = vadd.f32 %v280, %v299
      %v317 = vadd.f32 %v281, %v299
      %v318 = vadd.f32 %v282, %v299
      %v319 = vadd.f32 %v283, %v299
      %v320 = vadd.f32 %v284, %v299
      %v321 = vadd.f32 %v285, %v299
      %v322 = vadd.f32 %v286, %v299
      %v323 = vadd.f32 %v287, %v299
      %v324 = vadd.f32 %v288, %v299
      %v325 = vadd.f32 %v289, %v299
      %v326 = vadd.f32 %v290, %v299
      %v327 = vadd.f32 %v291, %v299
      %v328 = vadd.f32 %v292, %v299
      %v329 = vadd.f32 %v293, %v299
      %v330 = vadd.f32 %v294, %v299
      %v331 = vadd.f32 %v295, %v299
      %v332 = vadd.f32 %v296, %v299
      %v333 = vmax.f32 %v301, 0.0
      %v334 = vmax.f32 %v302, 0.0
      %v335 = vmax.f32 %v303, 0.0
      %v336 = vmax.f32 %v304, 0.0
      %v337 = vmax.f32 %v305, 0.0
      %v338 = vmax.f32 %v306, 0.0
      %v339 = vmax.f32 %v307, 0.0
      %v340 = vmax.f32 %v308, 0.0
      %v341 = vmax.f32 %v309, 0.0
      %v342 = vmax.f32 %v310, 0.0
      %v343 = vmax.f32 %v311, 0.0
      %v344 = vmax.f32 %v312, 0.0
      %v345 = vmax.f32 %v313, 0.0
      %v346 = vmax.f32 %v314, 0.0
      %v347 = vmax.f32 %v315, 0.0
      %v348 = vmax.f32 %v316, 0.0
      %v349 = vmax.f32 %v317, 0.0
      %v350 = vmax.f32 %v318, 0.0
      %v351 = vmax.f32 %v319, 0.0
      %v352 = vmax.f32 %v320, 0.0
      %v353 = vmax.f32 %v321, 0.0
      %v354 = vmax.f32 %v322, 0.0
      %v355 = vmax.f32 %v323, 0.0
      %v356 = vmax.f32 %v324, 0.0
      %v357 = vmax.f32 %v325, 0.0
      %v358 = vmax.f32 %v326, 0.0
      %v359 = vmax.f32 %v327, 0.0
      %v360 = vmax.f32 %v328, 0.0
      %v361 = vmax.f32 %v329, 0.0
      %v362 = vmax.f32 %v330, 0.0
      %v363 = vmax.f32 %v331, 0.0
      %v364 = vmax.f32 %v332, 0.0
      %vm365 = vcmask 523264
      %366 = vst.msk [vmem:[#allocation2] sm:$0xff] %vm365, 0.0
      %vm367 = vcmask 517120
      %368 = vst.msk [vmem:[#allocation2 + $0x8] sm:$0x3] %vm367, 0.0
      %369 = vst.msk [vmem:[#allocation2 + $0xa0] sm:$0xff] %vm365, 0.0
      %370 = vst.msk [vmem:[#allocation2 + $0xa8] sm:$0x3] %vm367, 0.0
      %371 = vst.msk [vmem:[#allocation2 + $0x140] sm:$0xff] %vm365, 0.0
      %372 = vst.msk [vmem:[#allocation2 + $0x148] sm:$0x3] %vm367, 0.0
      %373 = vst.msk [vmem:[#allocation2 + $0x1e0] sm:$0xff] %vm365, 0.0
      %374 = vst.msk [vmem:[#allocation2 + $0x1e8] sm:$0x3] %vm367, 0.0
      %s375 = scalar_lea.vmem [#allocation2], 144
      %376 = vst.msk [vmem:[%s375] sm:$0xff] %vm365, 0.0
      %377 = vst.msk [vmem:[%s375 + $0x8] sm:$0x3] %vm367, 0.0
      %378 = vst.msk [vmem:[%s375 + $0xa0] sm:$0xff] %vm365, 0.0
      %379 = vst.msk [vmem:[%s375 + $0xa8] sm:$0x3] %vm367, 0.0
      %380 = vst.msk [vmem:[%s375 + $0x140] sm:$0xff] %vm365, 0.0
      %381 = vst.msk [vmem:[%s375 + $0x148] sm:$0x3] %vm367, 0.0
      %382 = vst.msk [vmem:[%s375 + $0x1e0] sm:$0xff] %vm365, 0.0
      %383 = vst.msk [vmem:[%s375 + $0x1e8] sm:$0x3] %vm367, 0.0
      %vm384 = vcmask 516096
      %385 = vst.msk [vmem:[#allocation2] sm:$0x1] %vm384, 0.0
      %386 = vst.msk [vmem:[#allocation2 + $0x10] sm:$0x1] %vm384, 0.0
      %387 = vst.msk [vmem:[#allocation2 + $0x20] sm:$0x1] %vm384, 0.0
      %388 = vst.msk [vmem:[#allocation2 + $0x30] sm:$0x1] %vm384, 0.0
      %389 = vst.msk [vmem:[#allocation2 + $0x40] sm:$0x1] %vm384, 0.0
      %390 = vst.msk [vmem:[#allocation2 + $0x50] sm:$0x1] %vm384, 0.0
      %391 = vst.msk [vmem:[#allocation2 + $0x60] sm:$0x1] %vm384, 0.0
      %392 = vst.msk [vmem:[#allocation2 + $0x70] sm:$0x1] %vm384, 0.0
      %393 = vst.msk [vmem:[#allocation2 + $0x80] sm:$0x1] %vm384, 0.0
      %394 = vst.msk [vmem:[#allocation2 + $0x90] sm:$0x1] %vm384, 0.0
      %395 = vst.msk [vmem:[#allocation2 + $0xa0] sm:$0x1] %vm384, 0.0
      %396 = vst.msk [vmem:[#allocation2 + $0xb0] sm:$0x1] %vm384, 0.0
      %397 = vst.msk [vmem:[#allocation2 + $0xc0] sm:$0x1] %vm384, 0.0
      %398 = vst.msk [vmem:[#allocation2 + $0xd0] sm:$0x1] %vm384, 0.0
      %399 = vst.msk [vmem:[#allocation2 + $0xe0] sm:$0x1] %vm384, 0.0
      %400 = vst.msk [vmem:[#allocation2 + $0xf0] sm:$0x1] %vm384, 0.0
      %401 = vst.msk [vmem:[#allocation2 + $0x100] sm:$0x1] %vm384, 0.0
      %402 = vst.msk [vmem:[#allocation2 + $0x110] sm:$0x1] %vm384, 0.0
      %403 = vst.msk [vmem:[#allocation2 + $0x120] sm:$0x1] %vm384, 0.0
      %404 = vst.msk [vmem:[#allocation2 + $0x130] sm:$0x1] %vm384, 0.0
      %405 = vst.msk [vmem:[#allocation2 + $0x140] sm:$0x1] %vm384, 0.0
      %406 = vst.msk [vmem:[#allocation2 + $0x150] sm:$0x1] %vm384, 0.0
      %407 = vst.msk [vmem:[#allocation2 + $0x160] sm:$0x1] %vm384, 0.0
      %408 = vst.msk [vmem:[#allocation2 + $0x170] sm:$0x1] %vm384, 0.0
      %409 = vst.msk [vmem:[#allocation2 + $0x180] sm:$0x1] %vm384, 0.0
      %410 = vst.msk [vmem:[#allocation2 + $0x190] sm:$0x1] %vm384, 0.0
      %411 = vst.msk [vmem:[#allocation2 + $0x1a0] sm:$0x1] %vm384, 0.0
      %412 = vst.msk [vmem:[#allocation2 + $0x1b0] sm:$0x1] %vm384, 0.0
      %413 = vst.msk [vmem:[#allocation2 + $0x1c0] sm:$0x1] %vm384, 0.0
      %414 = vst.msk [vmem:[#allocation2 + $0x1d0] sm:$0x1] %vm384, 0.0
      %415 = vst.msk [vmem:[#allocation2 + $0x1e0] sm:$0x1] %vm384, 0.0
      %416 = vst.msk [vmem:[#allocation2 + $0x1f0] sm:$0x1] %vm384, 0.0
      %417 = vst.msk [vmem:[#allocation2 + $0x200] sm:$0x1] %vm384, 0.0
      %418 = vst.msk [vmem:[#allocation2 + $0x210] sm:$0x1] %vm384, 0.0
      %419 = vst.msk [vmem:[#allocation2 + $0x220] sm:$0x1] %vm384, 0.0
      %420 = vst.msk [vmem:[#allocation2 + $0x230] sm:$0x1] %vm384, 0.0
      %421 = vst.msk [vmem:[#allocation2 + $0x240] sm:$0x1] %vm384, 0.0
      %422 = vst.msk [vmem:[#allocation2 + $0x250] sm:$0x1] %vm384, 0.0
      %423 = vst.msk [vmem:[#allocation2 + $0x260] sm:$0x1] %vm384, 0.0
      %424 = vst.msk [vmem:[#allocation2 + $0x270] sm:$0x1] %vm384, 0.0
      %425 = vst.msk [vmem:[#allocation2 + $0x9] sm:$0x1] %vm384, 0.0
      %426 = vst.msk [vmem:[#allocation2 + $0x19] sm:$0x1] %vm384, 0.0
      %427 = vst.msk [vmem:[#allocation2 + $0x29] sm:$0x1] %vm384, 0.0
      %428 = vst.msk [vmem:[#allocation2 + $0x39] sm:$0x1] %vm384, 0.0
      %429 = vst.msk [vmem:[#allocation2 + $0x49] sm:$0x1] %vm384, 0.0
      %430 = vst.msk [vmem:[#allocation2 + $0x59] sm:$0x1] %vm384, 0.0
      %431 = vst.msk [vmem:[#allocation2 + $0x69] sm:$0x1] %vm384, 0.0
      %432 = vst.msk [vmem:[#allocation2 + $0x79] sm:$0x1] %vm384, 0.0
      %433 = vst.msk [vmem:[#allocation2 + $0x89] sm:$0x1] %vm384, 0.0
      %434 = vst.msk [vmem:[#allocation2 + $0x99] sm:$0x1] %vm384, 0.0
      %435 = vst.msk [vmem:[#allocation2 + $0xa9] sm:$0x1] %vm384, 0.0
      %436 = vst.msk [vmem:[#allocation2 + $0xb9] sm:$0x1] %vm384, 0.0
      %437 = vst.msk [vmem:[#allocation2 + $0xc9] sm:$0x1] %vm384, 0.0
      %438 = vst.msk [vmem:[#allocation2 + $0xd9] sm:$0x1] %vm384, 0.0
      %439 = vst.msk [vmem:[#allocation2 + $0xe9] sm:$0x1] %vm384, 0.0
      %440 = vst.msk [vmem:[#allocation2 + $0xf9] sm:$0x1] %vm384, 0.0
      %441 = vst.msk [vmem:[#allocation2 + $0x109] sm:$0x1] %vm384, 0.0
      %442 = vst.msk [vmem:[#allocation2 + $0x119] sm:$0x1] %vm384, 0.0
      %443 = vst.msk [vmem:[#allocation2 + $0x129] sm:$0x1] %vm384, 0.0
      %444 = vst.msk [vmem:[#allocation2 + $0x139] sm:$0x1] %vm384, 0.0
      %445 = vst.msk [vmem:[#allocation2 + $0x149] sm:$0x1] %vm384, 0.0
      %446 = vst.msk [vmem:[#allocation2 + $0x159] sm:$0x1] %vm384, 0.0
      %447 = vst.msk [vmem:[#allocation2 + $0x169] sm:$0x1] %vm384, 0.0
      %448 = vst.msk [vmem:[#allocation2 + $0x179] sm:$0x1] %vm384, 0.0
      %449 = vst.msk [vmem:[#allocation2 + $0x189] sm:$0x1] %vm384, 0.0
      %450 = vst.msk [vmem:[#allocation2 + $0x199] sm:$0x1] %vm384, 0.0
      %451 = vst.msk [vmem:[#allocation2 + $0x1a9] sm:$0x1] %vm384, 0.0
      %452 = vst.msk [vmem:[#allocation2 + $0x1b9] sm:$0x1] %vm384, 0.0
      %453 = vst.msk [vmem:[#allocation2 + $0x1c9] sm:$0x1] %vm384, 0.0
      %454 = vst.msk [vmem:[#allocation2 + $0x1d9] sm:$0x1] %vm384, 0.0
      %455 = vst.msk [vmem:[#allocation2 + $0x1e9] sm:$0x1] %vm384, 0.0
      %456 = vst.msk [vmem:[#allocation2 + $0x1f9] sm:$0x1] %vm384, 0.0
      %457 = vst.msk [vmem:[#allocation2 + $0x209] sm:$0x1] %vm384, 0.0
      %458 = vst.msk [vmem:[#allocation2 + $0x219] sm:$0x1] %vm384, 0.0
      %459 = vst.msk [vmem:[#allocation2 + $0x229] sm:$0x1] %vm384, 0.0
      %460 = vst.msk [vmem:[#allocation2 + $0x239] sm:$0x1] %vm384, 0.0
      %461 = vst.msk [vmem:[#allocation2 + $0x249] sm:$0x1] %vm384, 0.0
      %462 = vst.msk [vmem:[#allocation2 + $0x259] sm:$0x1] %vm384, 0.0
      %463 = vst.msk [vmem:[#allocation2 + $0x269] sm:$0x1] %vm384, 0.0
      %464 = vst.msk [vmem:[#allocation2 + $0x279] sm:$0x1] %vm384, 0.0
      %s465 = scalar_lea.vmem [#allocation2], 16
      %466 = vst.msk [vmem:[%s465 + $0x1] sm:$0xff] %vm365, %v333
      %467 = vst.msk [vmem:[%s465 + $0x11] sm:$0xff] %vm365, %v334
      %468 = vst.msk [vmem:[%s465 + $0x21] sm:$0xff] %vm365, %v335
      %469 = vst.msk [vmem:[%s465 + $0x31] sm:$0xff] %vm365, %v336
      %470 = vst.msk [vmem:[%s465 + $0x41] sm:$0xff] %vm365, %v337
      %471 = vst.msk [vmem:[%s465 + $0x51] sm:$0xff] %vm365, %v338
      %472 = vst.msk [vmem:[%s465 + $0x61] sm:$0xff] %vm365, %v339
      %473 = vst.msk [vmem:[%s465 + $0x71] sm:$0xff] %vm365, %v340
      %474 = vst.msk [vmem:[%s465 + $0xa1] sm:$0xff] %vm365, %v341
      %475 = vst.msk [vmem:[%s465 + $0xb1] sm:$0xff] %vm365, %v342
      %476 = vst.msk [vmem:[%s465 + $0xc1] sm:$0xff] %vm365, %v343
      %477 = vst.msk [vmem:[%s465 + $0xd1] sm:$0xff] %vm365, %v344
      %478 = vst.msk [vmem:[%s465 + $0xe1] sm:$0xff] %vm365, %v345
      %479 = vst.msk [vmem:[%s465 + $0xf1] sm:$0xff] %vm365, %v346
      %480 = vst.msk [vmem:[%s465 + $0x101] sm:$0xff] %vm365, %v347
      %481 = vst.msk [vmem:[%s465 + $0x111] sm:$0xff] %vm365, %v348
      %482 = vst.msk [vmem:[%s465 + $0x141] sm:$0xff] %vm365, %v349
      %483 = vst.msk [vmem:[%s465 + $0x151] sm:$0xff] %vm365, %v350
      %484 = vst.msk [vmem:[%s465 + $0x161] sm:$0xff] %vm365, %v351
      %485 = vst.msk [vmem:[%s465 + $0x171] sm:$0xff] %vm365, %v352
      %486 = vst.msk [vmem:[%s465 + $0x181] sm:$0xff] %vm365, %v353
      %487 = vst.msk [vmem:[%s465 + $0x191] sm:$0xff] %vm365, %v354
      %488 = vst.msk [vmem:[%s465 + $0x1a1] sm:$0xff] %vm365, %v355
      %489 = vst.msk [vmem:[%s465 + $0x1b1] sm:$0xff] %vm365, %v356
      %490 = vst.msk [vmem:[%s465 + $0x1e1] sm:$0xff] %vm365, %v357
      %491 = vst.msk [vmem:[%s465 + $0x1f1] sm:$0xff] %vm365, %v358
      %492 = vst.msk [vmem:[%s465 + $0x201] sm:$0xff] %vm365, %v359
      %493 = vst.msk [vmem:[%s465 + $0x211] sm:$0xff] %vm365, %v360
      %494 = vst.msk [vmem:[%s465 + $0x221] sm:$0xff] %vm365, %v361
      %495 = vst.msk [vmem:[%s465 + $0x231] sm:$0xff] %vm365, %v362
      %496 = vst.msk [vmem:[%s465 + $0x241] sm:$0xff] %vm365, %v363
      %497 = vst.msk [vmem:[%s465 + $0x251] sm:$0xff] %vm365, %v364
      %v498 = vld [vmem:[#allocation2] sm:$0xff]
      %v499 = vld [vmem:[#allocation2 + $0x10] sm:$0xff]
      %v500 = vld [vmem:[#allocation2 + $0x20] sm:$0xff]
      %v501 = vld [vmem:[#allocation2 + $0x30] sm:$0xff]
      %v502 = vld [vmem:[#allocation2 + $0x40] sm:$0xff]
      %v503 = vld [vmem:[#allocation2 + $0x50] sm:$0xff]
      %v504 = vld [vmem:[#allocation2 + $0x60] sm:$0xff]
      %v505 = vld [vmem:[#allocation2 + $0x70] sm:$0xff]
      %v506 = vld [vmem:[#allocation2 + $0xa0] sm:$0xff]
      %v507 = vld [vmem:[#allocation2 + $0xb0] sm:$0xff]
      %v508 = vld [vmem:[#allocation2 + $0xc0] sm:$0xff]
      %v509 = vld [vmem:[#allocation2 + $0xd0] sm:$0xff]
      %v510 = vld [vmem:[#allocation2 + $0xe0] sm:$0xff]
      %v511 = vld [vmem:[#allocation2 + $0xf0] sm:$0xff]
      %v512 = vld [vmem:[#allocation2 + $0x100] sm:$0xff]
      %v513 = vld [vmem:[#allocation2 + $0x110] sm:$0xff]
      %v514 = vld [vmem:[#allocation2 + $0x140] sm:$0xff]
      %v515 = vld [vmem:[#allocation2 + $0x150] sm:$0xff]
      %v516 = vld [vmem:[#allocation2 + $0x160] sm:$0xff]
      %v517 = vld [vmem:[#allocation2 + $0x170] sm:$0xff]
      %v518 = vld [vmem:[#allocation2 + $0x180] sm:$0xff]
      %v519 = vld [vmem:[#allocation2 + $0x190] sm:$0xff]
      %v520 = vld [vmem:[#allocation2 + $0x1a0] sm:$0xff]
      %v521 = vld [vmem:[#allocation2 + $0x1b0] sm:$0xff]
      %v522 = vld [vmem:[#allocation2 + $0x1e0] sm:$0xff]
      %v523 = vld [vmem:[#allocation2 + $0x1f0] sm:$0xff]
      %v524 = vld [vmem:[#allocation2 + $0x200] sm:$0xff]
      %v525 = vld [vmem:[#allocation2 + $0x210] sm:$0xff]
      %v526 = vld [vmem:[#allocation2 + $0x220] sm:$0xff]
      %v527 = vld [vmem:[#allocation2 + $0x230] sm:$0xff]
      %v528 = vld [vmem:[#allocation2 + $0x240] sm:$0xff]
      %v529 = vld [vmem:[#allocation2 + $0x250] sm:$0xff]
      %v530 = vpack.c.bf16 %v498, %v498
      %v531 = vpack.c.bf16 %v499, %v499
      %v532 = vpack.c.bf16 %v500, %v500
      %v533 = vpack.c.bf16 %v501, %v501
      %v534 = vpack.c.bf16 %v502, %v502
      %v535 = vpack.c.bf16 %v503, %v503
      %v536 = vpack.c.bf16 %v504, %v504
      %v537 = vpack.c.bf16 %v505, %v505
      %v538 = vpack.c.bf16 %v506, %v506
      %v539 = vpack.c.bf16 %v507, %v507
      %v540 = vpack.c.bf16 %v508, %v508
      %v541 = vpack.c.bf16 %v509, %v509
      %v542 = vpack.c.bf16 %v510, %v510
      %v543 = vpack.c.bf16 %v511, %v511
      %v544 = vpack.c.bf16 %v512, %v512
      %v545 = vpack.c.bf16 %v513, %v513
      %v546 = vpack.c.bf16 %v514, %v514
      %v547 = vpack.c.bf16 %v515, %v515
      %v548 = vpack.c.bf16 %v516, %v516
      %v549 = vpack.c.bf16 %v517, %v517
      %v550 = vpack.c.bf16 %v518, %v518
      %v551 = vpack.c.bf16 %v519, %v519
      %v552 = vpack.c.bf16 %v520, %v520
      %v553 = vpack.c.bf16 %v521, %v521
      %v554 = vpack.c.bf16 %v522, %v522
      %v555 = vpack.c.bf16 %v523, %v523
      %v556 = vpack.c.bf16 %v524, %v524
      %v557 = vpack.c.bf16 %v525, %v525
      %v558 = vpack.c.bf16 %v526, %v526
      %v559 = vpack.c.bf16 %v527, %v527
      %v560 = vpack.c.bf16 %v528, %v528
      %v561 = vpack.c.bf16 %v529, %v529
      %vm562 = vcmask 519168
      %563 = vst.msk [vmem:[#allocation3] sm:$0xf] %vm562, %v530
      %564 = vst.msk [vmem:[#allocation3 + $0x14] sm:$0xf] %vm562, %v531
      %565 = vst.msk [vmem:[#allocation3 + $0x28] sm:$0xf] %vm562, %v532
      %566 = vst.msk [vmem:[#allocation3 + $0x3c] sm:$0xf] %vm562, %v533
      %567 = vst.msk [vmem:[#allocation3 + $0x50] sm:$0xf] %vm562, %v534
      %568 = vst.msk [vmem:[#allocation3 + $0x64] sm:$0xf] %vm562, %v535
      %569 = vst.msk [vmem:[#allocation3 + $0x78] sm:$0xf] %vm562, %v536
      %570 = vst.msk [vmem:[#allocation3 + $0x8c] sm:$0xf] %vm562, %v537
      %571 = vst.msk [vmem:[#allocation3 + $0xa0] sm:$0xf] %vm562, %v538
      %572 = vst.msk [vmem:[#allocation3 + $0xb4] sm:$0xf] %vm562, %v539
      %573 = vst.msk [vmem:[#allocation3 + $0xc8] sm:$0xf] %vm562, %v540
      %574 = vst.msk [vmem:[#allocation3 + $0xdc] sm:$0xf] %vm562, %v541
      %575 = vst.msk [vmem:[#allocation3 + $0xf0] sm:$0xf] %vm562, %v542
      %576 = vst.msk [vmem:[#allocation3 + $0x104] sm:$0xf] %vm562, %v543
      %577 = vst.msk [vmem:[#allocation3 + $0x118] sm:$0xf] %vm562, %v544
      %578 = vst.msk [vmem:[#allocation3 + $0x12c] sm:$0xf] %vm562, %v545
      %579 = vst.msk [vmem:[#allocation3 + $0x140] sm:$0xf] %vm562, %v546
      %580 = vst.msk [vmem:[#allocation3 + $0x154] sm:$0xf] %vm562, %v547
      %581 = vst.msk [vmem:[#allocation3 + $0x168] sm:$0xf] %vm562, %v548
      %582 = vst.msk [vmem:[#allocation3 + $0x17c] sm:$0xf] %vm562, %v549
      %583 = vst.msk [vmem:[#allocation3 + $0x190] sm:$0xf] %vm562, %v550
      %584 = vst.msk [vmem:[#allocation3 + $0x1a4] sm:$0xf] %vm562, %v551
      %585 = vst.msk [vmem:[#allocation3 + $0x1b8] sm:$0xf] %vm562, %v552
      %586 = vst.msk [vmem:[#allocation3 + $0x1cc] sm:$0xf] %vm562, %v553
      %587 = vst.msk [vmem:[#allocation3 + $0x1e0] sm:$0xf] %vm562, %v554
      %588 = vst.msk [vmem:[#allocation3 + $0x1f4] sm:$0xf] %vm562, %v555
      %589 = vst.msk [vmem:[#allocation3 + $0x208] sm:$0xf] %vm562, %v556
      %590 = vst.msk [vmem:[#allocation3 + $0x21c] sm:$0xf] %vm562, %v557
      %591 = vst.msk [vmem:[#allocation3 + $0x230] sm:$0xf] %vm562, %v558
      %592 = vst.msk [vmem:[#allocation3 + $0x244] sm:$0xf] %vm562, %v559
      %593 = vst.msk [vmem:[#allocation3 + $0x258] sm:$0xf] %vm562, %v560
      %594 = vst.msk [vmem:[#allocation3 + $0x26c] sm:$0xf] %vm562, %v561
      %v595 = vld [vmem:[#allocation2 + $0x1] sm:$0xff]
      %v596 = vld [vmem:[#allocation2 + $0x11] sm:$0xff]
      %v597 = vld [vmem:[#allocation2 + $0x21] sm:$0xff]
      %v598 = vld [vmem:[#allocation2 + $0x31] sm:$0xff]
      %v599 = vld [vmem:[#allocation2 + $0x41] sm:$0xff]
      %v600 = vld [vmem:[#allocation2 + $0x51] sm:$0xff]
      %v601 = vld [vmem:[#allocation2 + $0x61] sm:$0xff]
      %v602 = vld [vmem:[#allocation2 + $0x71] sm:$0xff]
      %v603 = vld [vmem:[#allocation2 + $0xa1] sm:$0xff]
      %v604 = vld [vmem:[#allocation2 + $0xb1] sm:$0xff]
      %v605 = vld [vmem:[#allocation2 + $0xc1] sm:$0xff]
      %v606 = vld [vmem:[#allocation2 + $0xd1] sm:$0xff]
      %v607 = vld [vmem:[#allocation2 + $0xe1] sm:$0xff]
      %v608 = vld [vmem:[#allocation2 + $0xf1] sm:$0xff]
      %v609 = vld [vmem:[#allocation2 + $0x101] sm:$0xff]
      %v610 = vld [vmem:[#allocation2 + $0x111] sm:$0xff]
      %v611 = vld [vmem:[#allocation2 + $0x141] sm:$0xff]
      %v612 = vld [vmem:[#allocation2 + $0x151] sm:$0xff]
      %v613 = vld [vmem:[#allocation2 + $0x161] sm:$0xff]
      %v614 = vld [vmem:[#allocation2 + $0x171] sm:$0xff]
      %v615 = vld [vmem:[#allocation2 + $0x181] sm:$0xff]
      %v616 = vld [vmem:[#allocation2 + $0x191] sm:$0xff]
      %v617 = vld [vmem:[#allocation2 + $0x1a1] sm:$0xff]
      %v618 = vld [vmem:[#allocation2 + $0x1b1] sm:$0xff]
      %v619 = vld [vmem:[#allocation2 + $0x1e1] sm:$0xff]
      %v620 = vld [vmem:[#allocation2 + $0x1f1] sm:$0xff]
      %v621 = vld [vmem:[#allocation2 + $0x201] sm:$0xff]
      %v622 = vld [vmem:[#allocation2 + $0x211] sm:$0xff]
      %v623 = vld [vmem:[#allocation2 + $0x221] sm:$0xff]
      %v624 = vld [vmem:[#allocation2 + $0x231] sm:$0xff]
      %v625 = vld [vmem:[#allocation2 + $0x241] sm:$0xff]
      %v626 = vld [vmem:[#allocation2 + $0x251] sm:$0xff]
      %v627 = vpack.c.bf16 %v595, %v595
      %v628 = vpack.c.bf16 %v596, %v596
      %v629 = vpack.c.bf16 %v597, %v597
      %v630 = vpack.c.bf16 %v598, %v598
      %v631 = vpack.c.bf16 %v599, %v599
      %v632 = vpack.c.bf16 %v600, %v600
      %v633 = vpack.c.bf16 %v601, %v601
      %v634 = vpack.c.bf16 %v602, %v602
      %v635 = vpack.c.bf16 %v603, %v603
      %v636 = vpack.c.bf16 %v604, %v604
      %v637 = vpack.c.bf16 %v605, %v605
      %v638 = vpack.c.bf16 %v606, %v606
      %v639 = vpack.c.bf16 %v607, %v607
      %v640 = vpack.c.bf16 %v608, %v608
      %v641 = vpack.c.bf16 %v609, %v609
      %v642 = vpack.c.bf16 %v610, %v610
      %v643 = vpack.c.bf16 %v611, %v611
      %v644 = vpack.c.bf16 %v612, %v612
      %v645 = vpack.c.bf16 %v613, %v613
      %v646 = vpack.c.bf16 %v614, %v614
      %v647 = vpack.c.bf16 %v615, %v615
      %v648 = vpack.c.bf16 %v616, %v616
      %v649 = vpack.c.bf16 %v617, %v617
      %v650 = vpack.c.bf16 %v618, %v618
      %v651 = vpack.c.bf16 %v619, %v619
      %v652 = vpack.c.bf16 %v620, %v620
      %v653 = vpack.c.bf16 %v621, %v621
      %v654 = vpack.c.bf16 %v622, %v622
      %v655 = vpack.c.bf16 %v623, %v623
      %v656 = vpack.c.bf16 %v624, %v624
      %v657 = vpack.c.bf16 %v625, %v625
      %v658 = vpack.c.bf16 %v626, %v626
      %691 = vrot.lane.b32.xlu0 %v627, 64
      %v692 = vpop.permute.xlu0 %691
      %693 = vrot.lane.b32.xlu0 %v628, 64
      %v694 = vpop.permute.xlu0 %693
      %695 = vrot.lane.b32.xlu0 %v629, 64
      %v696 = vpop.permute.xlu0 %695
      %697 = vrot.lane.b32.xlu0 %v630, 64
      %v698 = vpop.permute.xlu0 %697
      %699 = vrot.lane.b32.xlu0 %v631, 64
      %v700 = vpop.permute.xlu0 %699
      %701 = vrot.lane.b32.xlu0 %v632, 64
      %v702 = vpop.permute.xlu0 %701
      %703 = vrot.lane.b32.xlu0 %v633, 64
      %v704 = vpop.permute.xlu0 %703
      %705 = vrot.lane.b32.xlu0 %v634, 64
      %v706 = vpop.permute.xlu0 %705
      %707 = vrot.lane.b32.xlu0 %v635, 64
      %v708 = vpop.permute.xlu0 %707
      %709 = vrot.lane.b32.xlu0 %v636, 64
      %v710 = vpop.permute.xlu0 %709
      %711 = vrot.lane.b32.xlu0 %v637, 64
      %v712 = vpop.permute.xlu0 %711
      %713 = vrot.lane.b32.xlu0 %v638, 64
      %v714 = vpop.permute.xlu0 %713
      %715 = vrot.lane.b32.xlu0 %v639, 64
      %v716 = vpop.permute.xlu0 %715
      %717 = vrot.lane.b32.xlu0 %v640, 64
      %v718 = vpop.permute.xlu0 %717
      %719 = vrot.lane.b32.xlu0 %v641, 64
      %v720 = vpop.permute.xlu0 %719
      %721 = vrot.lane.b32.xlu0 %v642, 64
      %v722 = vpop.permute.xlu0 %721
      %723 = vrot.lane.b32.xlu0 %v643, 64
      %v724 = vpop.permute.xlu0 %723
      %725 = vrot.lane.b32.xlu0 %v644, 64
      %v726 = vpop.permute.xlu0 %725
      %727 = vrot.lane.b32.xlu0 %v645, 64
      %v728 = vpop.permute.xlu0 %727
      %729 = vrot.lane.b32.xlu0 %v646, 64
      %v730 = vpop.permute.xlu0 %729
      %731 = vrot.lane.b32.xlu0 %v647, 64
      %v732 = vpop.permute.xlu0 %731
      %733 = vrot.lane.b32.xlu0 %v648, 64
      %v734 = vpop.permute.xlu0 %733
      %735 = vrot.lane.b32.xlu0 %v649, 64
      %v736 = vpop.permute.xlu0 %735
      %737 = vrot.lane.b32.xlu0 %v650, 64
      %v738 = vpop.permute.xlu0 %737
      %739 = vrot.lane.b32.xlu0 %v651, 64
      %v740 = vpop.permute.xlu0 %739
      %741 = vrot.lane.b32.xlu0 %v652, 64
      %v742 = vpop.permute.xlu0 %741
      %743 = vrot.lane.b32.xlu0 %v653, 64
      %v744 = vpop.permute.xlu0 %743
      %745 = vrot.lane.b32.xlu0 %v654, 64
      %v746 = vpop.permute.xlu0 %745
      %747 = vrot.lane.b32.xlu0 %v655, 64
      %v748 = vpop.permute.xlu0 %747
      %749 = vrot.lane.b32.xlu0 %v656, 64
      %v750 = vpop.permute.xlu0 %749
      %751 = vrot.lane.b32.xlu0 %v657, 64
      %v752 = vpop.permute.xlu0 %751
      %753 = vrot.lane.b32.xlu0 %v658, 64
      %v754 = vpop.permute.xlu0 %753
      %vm787 = vcmask 1043968
      %788 = vst.msk [vmem:[#allocation3] sm:$0xf] %vm787, %v692
      %789 = vst.msk [vmem:[#allocation3 + $0x14] sm:$0xf] %vm787, %v694
      %790 = vst.msk [vmem:[#allocation3 + $0x28] sm:$0xf] %vm787, %v696
      %791 = vst.msk [vmem:[#allocation3 + $0x3c] sm:$0xf] %vm787, %v698
      %792 = vst.msk [vmem:[#allocation3 + $0x50] sm:$0xf] %vm787, %v700
      %793 = vst.msk [vmem:[#allocation3 + $0x64] sm:$0xf] %vm787, %v702
      %794 = vst.msk [vmem:[#allocation3 + $0x78] sm:$0xf] %vm787, %v704
      %795 = vst.msk [vmem:[#allocation3 + $0x8c] sm:$0xf] %vm787, %v706
      %796 = vst.msk [vmem:[#allocation3 + $0xa0] sm:$0xf] %vm787, %v708
      %797 = vst.msk [vmem:[#allocation3 + $0xb4] sm:$0xf] %vm787, %v710
      %798 = vst.msk [vmem:[#allocation3 + $0xc8] sm:$0xf] %vm787, %v712
      %799 = vst.msk [vmem:[#allocation3 + $0xdc] sm:$0xf] %vm787, %v714
      %800 = vst.msk [vmem:[#allocation3 + $0xf0] sm:$0xf] %vm787, %v716
      %801 = vst.msk [vmem:[#allocation3 + $0x104] sm:$0xf] %vm787, %v718
      %802 = vst.msk [vmem:[#allocation3 + $0x118] sm:$0xf] %vm787, %v720
      %803 = vst.msk [vmem:[#allocation3 + $0x12c] sm:$0xf] %vm787, %v722
      %804 = vst.msk [vmem:[#allocation3 + $0x140] sm:$0xf] %vm787, %v724
      %805 = vst.msk [vmem:[#allocation3 + $0x154] sm:$0xf] %vm787, %v726
      %806 = vst.msk [vmem:[#allocation3 + $0x168] sm:$0xf] %vm787, %v728
      %807 = vst.msk [vmem:[#allocation3 + $0x17c] sm:$0xf] %vm787, %v730
      %808 = vst.msk [vmem:[#allocation3 + $0x190] sm:$0xf] %vm787, %v732
      %809 = vst.msk [vmem:[#allocation3 + $0x1a4] sm:$0xf] %vm787, %v734
      %810 = vst.msk [vmem:[#allocation3 + $0x1b8] sm:$0xf] %vm787, %v736
      %811 = vst.msk [vmem:[#allocation3 + $0x1cc] sm:$0xf] %vm787, %v738
      %812 = vst.msk [vmem:[#allocation3 + $0x1e0] sm:$0xf] %vm787, %v740
      %813 = vst.msk [vmem:[#allocation3 + $0x1f4] sm:$0xf] %vm787, %v742
      %814 = vst.msk [vmem:[#allocation3 + $0x208] sm:$0xf] %vm787, %v744
      %815 = vst.msk [vmem:[#allocation3 + $0x21c] sm:$0xf] %vm787, %v746
      %816 = vst.msk [vmem:[#allocation3 + $0x230] sm:$0xf] %vm787, %v748
      %817 = vst.msk [vmem:[#allocation3 + $0x244] sm:$0xf] %vm787, %v750
      %818 = vst.msk [vmem:[#allocation3 + $0x258] sm:$0xf] %vm787, %v752
      %819 = vst.msk [vmem:[#allocation3 + $0x26c] sm:$0xf] %vm787, %v754
      %v820 = vld [vmem:[#allocation2 + $0x2] sm:$0xff]
      %v821 = vld [vmem:[#allocation2 + $0x12] sm:$0xff]
      %v822 = vld [vmem:[#allocation2 + $0x22] sm:$0xff]
      %v823 = vld [vmem:[#allocation2 + $0x32] sm:$0xff]
      %v824 = vld [vmem:[#allocation2 + $0x42] sm:$0xff]
      %v825 = vld [vmem:[#allocation2 + $0x52] sm:$0xff]
      %v826 = vld [vmem:[#allocation2 + $0x62] sm:$0xff]
      %v827 = vld [vmem:[#allocation2 + $0x72] sm:$0xff]
      %v828 = vld [vmem:[#allocation2 + $0xa2] sm:$0xff]
      %v829 = vld [vmem:[#allocation2 + $0xb2] sm:$0xff]
      %v830 = vld [vmem:[#allocation2 + $0xc2] sm:$0xff]
      %v831 = vld [vmem:[#allocation2 + $0xd2] sm:$0xff]
      %v832 = vld [vmem:[#allocation2 + $0xe2] sm:$0xff]
      %v833 = vld [vmem:[#allocation2 + $0xf2] sm:$0xff]
      %v834 = vld [vmem:[#allocation2 + $0x102] sm:$0xff]
      %v835 = vld [vmem:[#allocation2 + $0x112] sm:$0xff]
      %v836 = vld [vmem:[#allocation2 + $0x142] sm:$0xff]
      %v837 = vld [vmem:[#allocation2 + $0x152] sm:$0xff]
      %v838 = vld [vmem:[#allocation2 + $0x162] sm:$0xff]
      %v839 = vld [vmem:[#allocation2 + $0x172] sm:$0xff]
      %v840 = vld [vmem:[#allocation2 + $0x182] sm:$0xff]
      %v841 = vld [vmem:[#allocation2 + $0x192] sm:$0xff]
      %v842 = vld [vmem:[#allocation2 + $0x1a2] sm:$0xff]
      %v843 = vld [vmem:[#allocation2 + $0x1b2] sm:$0xff]
      %v844 = vld [vmem:[#allocation2 + $0x1e2] sm:$0xff]
      %v845 = vld [vmem:[#allocation2 + $0x1f2] sm:$0xff]
      %v846 = vld [vmem:[#allocation2 + $0x202] sm:$0xff]
      %v847 = vld [vmem:[#allocation2 + $0x212] sm:$0xff]
      %v848 = vld [vmem:[#allocation2 + $0x222] sm:$0xff]
      %v849 = vld [vmem:[#allocation2 + $0x232] sm:$0xff]
      %v850 = vld [vmem:[#allocation2 + $0x242] sm:$0xff]
      %v851 = vld [vmem:[#allocation2 + $0x252] sm:$0xff]
      %v852 = vpack.c.bf16 %v820, %v820
      %v853 = vpack.c.bf16 %v821, %v821
      %v854 = vpack.c.bf16 %v822, %v822
      %v855 = vpack.c.bf16 %v823, %v823
      %v856 = vpack.c.bf16 %v824, %v824
      %v857 = vpack.c.bf16 %v825, %v825
      %v858 = vpack.c.bf16 %v826, %v826
      %v859 = vpack.c.bf16 %v827, %v827
      %v860 = vpack.c.bf16 %v828, %v828
      %v861 = vpack.c.bf16 %v829, %v829
      %v862 = vpack.c.bf16 %v830, %v830
      %v863 = vpack.c.bf16 %v831, %v831
      %v864 = vpack.c.bf16 %v832, %v832
      %v865 = vpack.c.bf16 %v833, %v833
      %v866 = vpack.c.bf16 %v834, %v834
      %v867 = vpack.c.bf16 %v835, %v835
      %v868 = vpack.c.bf16 %v836, %v836
      %v869 = vpack.c.bf16 %v837, %v837
      %v870 = vpack.c.bf16 %v838, %v838
      %v871 = vpack.c.bf16 %v839, %v839
      %v872 = vpack.c.bf16 %v840, %v840
      %v873 = vpack.c.bf16 %v841, %v841
      %v874 = vpack.c.bf16 %v842, %v842
      %v875 = vpack.c.bf16 %v843, %v843
      %v876 = vpack.c.bf16 %v844, %v844
      %v877 = vpack.c.bf16 %v845, %v845
      %v878 = vpack.c.bf16 %v846, %v846
      %v879 = vpack.c.bf16 %v847, %v847
      %v880 = vpack.c.bf16 %v848, %v848
      %v881 = vpack.c.bf16 %v849, %v849
      %v882 = vpack.c.bf16 %v850, %v850
      %v883 = vpack.c.bf16 %v851, %v851
      %884 = vst.msk [vmem:[#allocation3 + $0x4] sm:$0xf] %vm562, %v852
      %885 = vst.msk [vmem:[#allocation3 + $0x18] sm:$0xf] %vm562, %v853
      %886 = vst.msk [vmem:[#allocation3 + $0x2c] sm:$0xf] %vm562, %v854
      %887 = vst.msk [vmem:[#allocation3 + $0x40] sm:$0xf] %vm562, %v855
      %888 = vst.msk [vmem:[#allocation3 + $0x54] sm:$0xf] %vm562, %v856
      %889 = vst.msk [vmem:[#allocation3 + $0x68] sm:$0xf] %vm562, %v857
      %890 = vst.msk [vmem:[#allocation3 + $0x7c] sm:$0xf] %vm562, %v858
      %891 = vst.msk [vmem:[#allocation3 + $0x90] sm:$0xf] %vm562, %v859
      %892 = vst.msk [vmem:[#allocation3 + $0xa4] sm:$0xf] %vm562, %v860
      %893 = vst.msk [vmem:[#allocation3 + $0xb8] sm:$0xf] %vm562, %v861
      %894 = vst.msk [vmem:[#allocation3 + $0xcc] sm:$0xf] %vm562, %v862
      %895 = vst.msk [vmem:[#allocation3 + $0xe0] sm:$0xf] %vm562, %v863
      %896 = vst.msk [vmem:[#allocation3 + $0xf4] sm:$0xf] %vm562, %v864
      %897 = vst.msk [vmem:[#allocation3 + $0x108] sm:$0xf] %vm562, %v865
      %898 = vst.msk [vmem:[#allocation3 + $0x11c] sm:$0xf] %vm562, %v866
      %899 = vst.msk [vmem:[#allocation3 + $0x130] sm:$0xf] %vm562, %v867
      %900 = vst.msk [vmem:[#allocation3 + $0x144] sm:$0xf] %vm562, %v868
      %901 = vst.msk [vmem:[#allocation3 + $0x158] sm:$0xf] %vm562, %v869
      %902 = vst.msk [vmem:[#allocation3 + $0x16c] sm:$0xf] %vm562, %v870
      %903 = vst.msk [vmem:[#allocation3 + $0x180] sm:$0xf] %vm562, %v871
      %904 = vst.msk [vmem:[#allocation3 + $0x194] sm:$0xf] %vm562, %v872
      %905 = vst.msk [vmem:[#allocation3 + $0x1a8] sm:$0xf] %vm562, %v873
      %906 = vst.msk [vmem:[#allocation3 + $0x1bc] sm:$0xf] %vm562, %v874
      %907 = vst.msk [vmem:[#allocation3 + $0x1d0] sm:$0xf] %vm562, %v875
      %908 = vst.msk [vmem:[#allocation3 + $0x1e4] sm:$0xf] %vm562, %v876
      %909 = vst.msk [vmem:[#allocation3 + $0x1f8] sm:$0xf] %vm562, %v877
      %910 = vst.msk [vmem:[#allocation3 + $0x20c] sm:$0xf] %vm562, %v878
      %911 = vst.msk [vmem:[#allocation3 + $0x220] sm:$0xf] %vm562, %v879
      %912 = vst.msk [vmem:[#allocation3 + $0x234] sm:$0xf] %vm562, %v880
      %913 = vst.msk [vmem:[#allocation3 + $0x248] sm:$0xf] %vm562, %v881
      %914 = vst.msk [vmem:[#allocation3 + $0x25c] sm:$0xf] %vm562, %v882
      %915 = vst.msk [vmem:[#allocation3 + $0x270] sm:$0xf] %vm562, %v883
      %v916 = vld [vmem:[%s465] sm:$0xff]
      %v917 = vld [vmem:[%s465 + $0x10] sm:$0xff]
      %v918 = vld [vmem:[%s465 + $0x20] sm:$0xff]
      %v919 = vld [vmem:[%s465 + $0x30] sm:$0xff]
      %v920 = vld [vmem:[%s465 + $0x40] sm:$0xff]
      %v921 = vld [vmem:[%s465 + $0x50] sm:$0xff]
      %v922 = vld [vmem:[%s465 + $0x60] sm:$0xff]
      %v923 = vld [vmem:[%s465 + $0x70] sm:$0xff]
      %v924 = vld [vmem:[%s465 + $0xa0] sm:$0xff]
      %v925 = vld [vmem:[%s465 + $0xb0] sm:$0xff]
      %v926 = vld [vmem:[%s465 + $0xc0] sm:$0xff]
      %v927 = vld [vmem:[%s465 + $0xd0] sm:$0xff]
      %v928 = vld [vmem:[%s465 + $0xe0] sm:$0xff]
      %v929 = vld [vmem:[%s465 + $0xf0] sm:$0xff]
      %v930 = vld [vmem:[%s465 + $0x100] sm:$0xff]
      %v931 = vld [vmem:[%s465 + $0x110] sm:$0xff]
      %v932 = vld [vmem:[%s465 + $0x140] sm:$0xff]
      %v933 = vld [vmem:[%s465 + $0x150] sm:$0xff]
      %v934 = vld [vmem:[%s465 + $0x160] sm:$0xff]
      %v935 = vld [vmem:[%s465 + $0x170] sm:$0xff]
      %v936 = vld [vmem:[%s465 + $0x180] sm:$0xff]
      %v937 = vld [vmem:[%s465 + $0x190] sm:$0xff]
      %v938 = vld [vmem:[%s465 + $0x1a0] sm:$0xff]
      %v939 = vld [vmem:[%s465 + $0x1b0] sm:$0xff]
      %v940 = vld [vmem:[%s465 + $0x1e0] sm:$0xff]
      %v941 = vld [vmem:[%s465 + $0x1f0] sm:$0xff]
      %v942 = vld [vmem:[%s465 + $0x200] sm:$0xff]
      %v943 = vld [vmem:[%s465 + $0x210] sm:$0xff]
      %v944 = vld [vmem:[%s465 + $0x220] sm:$0xff]
      %v945 = vld [vmem:[%s465 + $0x230] sm:$0xff]
      %v946 = vld [vmem:[%s465 + $0x240] sm:$0xff]
      %v947 = vld [vmem:[%s465 + $0x250] sm:$0xff]
      %v948 = vpack.c.bf16 %v916, %v916
      %v949 = vpack.c.bf16 %v917, %v917
      %v950 = vpack.c.bf16 %v918, %v918
      %v951 = vpack.c.bf16 %v919, %v919
      %v952 = vpack.c.bf16 %v920, %v920
      %v953 = vpack.c.bf16 %v921, %v921
      %v954 = vpack.c.bf16 %v922, %v922
      %v955 = vpack.c.bf16 %v923, %v923
      %v956 = vpack.c.bf16 %v924, %v924
      %v957 = vpack.c.bf16 %v925, %v925
      %v958 = vpack.c.bf16 %v926, %v926
      %v959 = vpack.c.bf16 %v927, %v927
      %v960 = vpack.c.bf16 %v928, %v928
      %v961 = vpack.c.bf16 %v929, %v929
      %v962 = vpack.c.bf16 %v930, %v930
      %v963 = vpack.c.bf16 %v931, %v931
      %v964 = vpack.c.bf16 %v932, %v932
      %v965 = vpack.c.bf16 %v933, %v933
      %v966 = vpack.c.bf16 %v934, %v934
      %v967 = vpack.c.bf16 %v935, %v935
      %v968 = vpack.c.bf16 %v936, %v936
      %v969 = vpack.c.bf16 %v937, %v937
      %v970 = vpack.c.bf16 %v938, %v938
      %v971 = vpack.c.bf16 %v939, %v939
      %v972 = vpack.c.bf16 %v940, %v940
      %v973 = vpack.c.bf16 %v941, %v941
      %v974 = vpack.c.bf16 %v942, %v942
      %v975 = vpack.c.bf16 %v943, %v943
      %v976 = vpack.c.bf16 %v944, %v944
      %v977 = vpack.c.bf16 %v945, %v945
      %v978 = vpack.c.bf16 %v946, %v946
      %v979 = vpack.c.bf16 %v947, %v947
      %1012 = vrot.lane.b32.xlu0 %v948, 64
      %v1013 = vpop.permute.xlu0 %1012
      %1014 = vrot.lane.b32.xlu0 %v949, 64
      %v1015 = vpop.permute.xlu0 %1014
      %1016 = vrot.lane.b32.xlu0 %v950, 64
      %v1017 = vpop.permute.xlu0 %1016
      %1018 = vrot.lane.b32.xlu0 %v951, 64
      %v1019 = vpop.permute.xlu0 %1018
      %1020 = vrot.lane.b32.xlu0 %v952, 64
      %v1021 = vpop.permute.xlu0 %1020
      %1022 = vrot.lane.b32.xlu0 %v953, 64
      %v1023 = vpop.permute.xlu0 %1022
      %1024 = vrot.lane.b32.xlu0 %v954, 64
      %v1025 = vpop.permute.xlu0 %1024
      %1026 = vrot.lane.b32.xlu0 %v955, 64
      %v1027 = vpop.permute.xlu0 %1026
      %1028 = vrot.lane.b32.xlu0 %v956, 64
      %v1029 = vpop.permute.xlu0 %1028
      %1030 = vrot.lane.b32.xlu0 %v957, 64
      %v1031 = vpop.permute.xlu0 %1030
      %1032 = vrot.lane.b32.xlu0 %v958, 64
      %v1033 = vpop.permute.xlu0 %1032
      %1034 = vrot.lane.b32.xlu0 %v959, 64
      %v1035 = vpop.permute.xlu0 %1034
      %1036 = vrot.lane.b32.xlu0 %v960, 64
      %v1037 = vpop.permute.xlu0 %1036
      %1038 = vrot.lane.b32.xlu0 %v961, 64
      %v1039 = vpop.permute.xlu0 %1038
      %1040 = vrot.lane.b32.xlu0 %v962, 64
      %v1041 = vpop.permute.xlu0 %1040
      %1042 = vrot.lane.b32.xlu0 %v963, 64
      %v1043 = vpop.permute.xlu0 %1042
      %1044 = vrot.lane.b32.xlu0 %v964, 64
      %v1045 = vpop.permute.xlu0 %1044
      %1046 = vrot.lane.b32.xlu0 %v965, 64
      %v1047 = vpop.permute.xlu0 %1046
      %1048 = vrot.lane.b32.xlu0 %v966, 64
      %v1049 = vpop.permute.xlu0 %1048
      %1050 = vrot.lane.b32.xlu0 %v967, 64
      %v1051 = vpop.permute.xlu0 %1050
      %1052 = vrot.lane.b32.xlu0 %v968, 64
      %v1053 = vpop.permute.xlu0 %1052
      %1054 = vrot.lane.b32.xlu0 %v969, 64
      %v1055 = vpop.permute.xlu0 %1054
      %1056 = vrot.lane.b32.xlu0 %v970, 64
      %v1057 = vpop.permute.xlu0 %1056
      %1058 = vrot.lane.b32.xlu0 %v971, 64
      %v1059 = vpop.permute.xlu0 %1058
      %1060 = vrot.lane.b32.xlu0 %v972, 64
      %v1061 = vpop.permute.xlu0 %1060
      %1062 = vrot.lane.b32.xlu0 %v973, 64
      %v1063 = vpop.permute.xlu0 %1062
      %1064 = vrot.lane.b32.xlu0 %v974, 64
      %v1065 = vpop.permute.xlu0 %1064
      %1066 = vrot.lane.b32.xlu0 %v975, 64
      %v1067 = vpop.permute.xlu0 %1066
      %1068 = vrot.lane.b32.xlu0 %v976, 64
      %v1069 = vpop.permute.xlu0 %1068
      %1070 = vrot.lane.b32.xlu0 %v977, 64
      %v1071 = vpop.permute.xlu0 %1070
      %1072 = vrot.lane.b32.xlu0 %v978, 64
      %v1073 = vpop.permute.xlu0 %1072
      %1074 = vrot.lane.b32.xlu0 %v979, 64
      %v1075 = vpop.permute.xlu0 %1074
      %1108 = vst.msk [vmem:[#allocation3 + $0x4] sm:$0xf] %vm787, %v1013
      %1109 = vst.msk [vmem:[#allocation3 + $0x18] sm:$0xf] %vm787, %v1015
      %1110 = vst.msk [vmem:[#allocation3 + $0x2c] sm:$0xf] %vm787, %v1017
      %1111 = vst.msk [vmem:[#allocation3 + $0x40] sm:$0xf] %vm787, %v1019
      %1112 = vst.msk [vmem:[#allocation3 + $0x54] sm:$0xf] %vm787, %v1021
      %1113 = vst.msk [vmem:[#allocation3 + $0x68] sm:$0xf] %vm787, %v1023
      %1114 = vst.msk [vmem:[#allocation3 + $0x7c] sm:$0xf] %vm787, %v1025
      %1115 = vst.msk [vmem:[#allocation3 + $0x90] sm:$0xf] %vm787, %v1027
      %1116 = vst.msk [vmem:[#allocation3 + $0xa4] sm:$0xf] %vm787, %v1029
      %1117 = vst.msk [vmem:[#allocation3 + $0xb8] sm:$0xf] %vm787, %v1031
      %1118 = vst.msk [vmem:[#allocation3 + $0xcc] sm:$0xf] %vm787, %v1033
      %1119 = vst.msk [vmem:[#allocation3 + $0xe0] sm:$0xf] %vm787, %v1035
      %1120 = vst.msk [vmem:[#allocation3 + $0xf4] sm:$0xf] %vm787, %v1037
      %1121 = vst.msk [vmem:[#allocation3 + $0x108] sm:$0xf] %vm787, %v1039
      %1122 = vst.msk [vmem:[#allocation3 + $0x11c] sm:$0xf] %vm787, %v1041
      %1123 = vst.msk [vmem:[#allocation3 + $0x130] sm:$0xf] %vm787, %v1043
      %1124 = vst.msk [vmem:[#allocation3 + $0x144] sm:$0xf] %vm787, %v1045
      %1125 = vst.msk [vmem:[#allocation3 + $0x158] sm:$0xf] %vm787, %v1047
      %1126 = vst.msk [vmem:[#allocation3 + $0x16c] sm:$0xf] %vm787, %v1049
      %1127 = vst.msk [vmem:[#allocation3 + $0x180] sm:$0xf] %vm787, %v1051
      %1128 = vst.msk [vmem:[#allocation3 + $0x194] sm:$0xf] %vm787, %v1053
      %1129 = vst.msk [vmem:[#allocation3 + $0x1a8] sm:$0xf] %vm787, %v1055
      %1130 = vst.msk [vmem:[#allocation3 + $0x1bc] sm:$0xf] %vm787, %v1057
      %1131 = vst.msk [vmem:[#allocation3 + $0x1d0] sm:$0xf] %vm787, %v1059
      %1132 = vst.msk [vmem:[#allocation3 + $0x1e4] sm:$0xf] %vm787, %v1061
      %1133 = vst.msk [vmem:[#allocation3 + $0x1f8] sm:$0xf] %vm787, %v1063
      %1134 = vst.msk [vmem:[#allocation3 + $0x20c] sm:$0xf] %vm787, %v1065
      %1135 = vst.msk [vmem:[#allocation3 + $0x220] sm:$0xf] %vm787, %v1067
      %1136 = vst.msk [vmem:[#allocation3 + $0x234] sm:$0xf] %vm787, %v1069
      %1137 = vst.msk [vmem:[#allocation3 + $0x248] sm:$0xf] %vm787, %v1071
      %1138 = vst.msk [vmem:[#allocation3 + $0x25c] sm:$0xf] %vm787, %v1073
      %1139 = vst.msk [vmem:[#allocation3 + $0x270] sm:$0xf] %vm787, %v1075
      %v1140 = vld [vmem:[%s465 + $0x1] sm:$0xff]
      %v1141 = vld [vmem:[%s465 + $0x11] sm:$0xff]
      %v1142 = vld [vmem:[%s465 + $0x21] sm:$0xff]
      %v1143 = vld [vmem:[%s465 + $0x31] sm:$0xff]
      %v1144 = vld [vmem:[%s465 + $0x41] sm:$0xff]
      %v1145 = vld [vmem:[%s465 + $0x51] sm:$0xff]
      %v1146 = vld [vmem:[%s465 + $0x61] sm:$0xff]
      %v1147 = vld [vmem:[%s465 + $0x71] sm:$0xff]
      %v1148 = vld [vmem:[%s465 + $0xa1] sm:$0xff]
      %v1149 = vld [vmem:[%s465 + $0xb1] sm:$0xff]
      %v1150 = vld [vmem:[%s465 + $0xc1] sm:$0xff]
      %v1151 = vld [vmem:[%s465 + $0xd1] sm:$0xff]
      %v1152 = vld [vmem:[%s465 + $0xe1] sm:$0xff]
      %v1153 = vld [vmem:[%s465 + $0xf1] sm:$0xff]
      %v1154 = vld [vmem:[%s465 + $0x101] sm:$0xff]
      %v1155 = vld [vmem:[%s465 + $0x111] sm:$0xff]
      %v1156 = vld [vmem:[%s465 + $0x141] sm:$0xff]
      %v1157 = vld [vmem:[%s465 + $0x151] sm:$0xff]
      %v1158 = vld [vmem:[%s465 + $0x161] sm:$0xff]
      %v1159 = vld [vmem:[%s465 + $0x171] sm:$0xff]
      %v1160 = vld [vmem:[%s465 + $0x181] sm:$0xff]
      %v1161 = vld [vmem:[%s465 + $0x191] sm:$0xff]
      %v1162 = vld [vmem:[%s465 + $0x1a1] sm:$0xff]
      %v1163 = vld [vmem:[%s465 + $0x1b1] sm:$0xff]
      %v1164 = vld [vmem:[%s465 + $0x1e1] sm:$0xff]
      %v1165 = vld [vmem:[%s465 + $0x1f1] sm:$0xff]
      %v1166 = vld [vmem:[%s465 + $0x201] sm:$0xff]
      %v1167 = vld [vmem:[%s465 + $0x211] sm:$0xff]
      %v1168 = vld [vmem:[%s465 + $0x221] sm:$0xff]
      %v1169 = vld [vmem:[%s465 + $0x231] sm:$0xff]
      %v1170 = vld [vmem:[%s465 + $0x241] sm:$0xff]
      %v1171 = vld [vmem:[%s465 + $0x251] sm:$0xff]
      %v1172 = vpack.c.bf16 %v1140, %v1140
      %v1173 = vpack.c.bf16 %v1141, %v1141
      %v1174 = vpack.c.bf16 %v1142, %v1142
      %v1175 = vpack.c.bf16 %v1143, %v1143
      %v1176 = vpack.c.bf16 %v1144, %v1144
      %v1177 = vpack.c.bf16 %v1145, %v1145
      %v1178 = vpack.c.bf16 %v1146, %v1146
      %v1179 = vpack.c.bf16 %v1147, %v1147
      %v1180 = vpack.c.bf16 %v1148, %v1148
      %v1181 = vpack.c.bf16 %v1149, %v1149
      %v1182 = vpack.c.bf16 %v1150, %v1150
      %v1183 = vpack.c.bf16 %v1151, %v1151
      %v1184 = vpack.c.bf16 %v1152, %v1152
      %v1185 = vpack.c.bf16 %v1153, %v1153
      %v1186 = vpack.c.bf16 %v1154, %v1154
      %v1187 = vpack.c.bf16 %v1155, %v1155
      %v1188 = vpack.c.bf16 %v1156, %v1156
      %v1189 = vpack.c.bf16 %v1157, %v1157
      %v1190 = vpack.c.bf16 %v1158, %v1158
      %v1191 = vpack.c.bf16 %v1159, %v1159
      %v1192 = vpack.c.bf16 %v1160, %v1160
      %v1193 = vpack.c.bf16 %v1161, %v1161
      %v1194 = vpack.c.bf16 %v1162, %v1162
      %v1195 = vpack.c.bf16 %v1163, %v1163
      %v1196 = vpack.c.bf16 %v1164, %v1164
      %v1197 = vpack.c.bf16 %v1165, %v1165
      %v1198 = vpack.c.bf16 %v1166, %v1166
      %v1199 = vpack.c.bf16 %v1167, %v1167
      %v1200 = vpack.c.bf16 %v1168, %v1168
      %v1201 = vpack.c.bf16 %v1169, %v1169
      %v1202 = vpack.c.bf16 %v1170, %v1170
      %v1203 = vpack.c.bf16 %v1171, %v1171
      %1204 = vst.msk [vmem:[#allocation3 + $0x8] sm:$0xf] %vm562, %v1172
      %1205 = vst.msk [vmem:[#allocation3 + $0x1c] sm:$0xf] %vm562, %v1173
      %1206 = vst.msk [vmem:[#allocation3 + $0x30] sm:$0xf] %vm562, %v1174
      %1207 = vst.msk [vmem:[#allocation3 + $0x44] sm:$0xf] %vm562, %v1175
      %1208 = vst.msk [vmem:[#allocation3 + $0x58] sm:$0xf] %vm562, %v1176
      %1209 = vst.msk [vmem:[#allocation3 + $0x6c] sm:$0xf] %vm562, %v1177
      %1210 = vst.msk [vmem:[#allocation3 + $0x80] sm:$0xf] %vm562, %v1178
      %1211 = vst.msk [vmem:[#allocation3 + $0x94] sm:$0xf] %vm562, %v1179
      %1212 = vst.msk [vmem:[#allocation3 + $0xa8] sm:$0xf] %vm562, %v1180
      %1213 = vst.msk [vmem:[#allocation3 + $0xbc] sm:$0xf] %vm562, %v1181
      %1214 = vst.msk [vmem:[#allocation3 + $0xd0] sm:$0xf] %vm562, %v1182
      %1215 = vst.msk [vmem:[#allocation3 + $0xe4] sm:$0xf] %vm562, %v1183
      %1216 = vst.msk [vmem:[#allocation3 + $0xf8] sm:$0xf] %vm562, %v1184
      %1217 = vst.msk [vmem:[#allocation3 + $0x10c] sm:$0xf] %vm562, %v1185
      %1218 = vst.msk [vmem:[#allocation3 + $0x120] sm:$0xf] %vm562, %v1186
      %1219 = vst.msk [vmem:[#allocation3 + $0x134] sm:$0xf] %vm562, %v1187
      %1220 = vst.msk [vmem:[#allocation3 + $0x148] sm:$0xf] %vm562, %v1188
      %1221 = vst.msk [vmem:[#allocation3 + $0x15c] sm:$0xf] %vm562, %v1189
      %1222 = vst.msk [vmem:[#allocation3 + $0x170] sm:$0xf] %vm562, %v1190
      %1223 = vst.msk [vmem:[#allocation3 + $0x184] sm:$0xf] %vm562, %v1191
      %1224 = vst.msk [vmem:[#allocation3 + $0x198] sm:$0xf] %vm562, %v1192
      %1225 = vst.msk [vmem:[#allocation3 + $0x1ac] sm:$0xf] %vm562, %v1193
      %1226 = vst.msk [vmem:[#allocation3 + $0x1c0] sm:$0xf] %vm562, %v1194
      %1227 = vst.msk [vmem:[#allocation3 + $0x1d4] sm:$0xf] %vm562, %v1195
      %1228 = vst.msk [vmem:[#allocation3 + $0x1e8] sm:$0xf] %vm562, %v1196
      %1229 = vst.msk [vmem:[#allocation3 + $0x1fc] sm:$0xf] %vm562, %v1197
      %1230 = vst.msk [vmem:[#allocation3 + $0x210] sm:$0xf] %vm562, %v1198
      %1231 = vst.msk [vmem:[#allocation3 + $0x224] sm:$0xf] %vm562, %v1199
      %1232 = vst.msk [vmem:[#allocation3 + $0x238] sm:$0xf] %vm562, %v1200
      %1233 = vst.msk [vmem:[#allocation3 + $0x24c] sm:$0xf] %vm562, %v1201
      %1234 = vst.msk [vmem:[#allocation3 + $0x260] sm:$0xf] %vm562, %v1202
      %1235 = vst.msk [vmem:[#allocation3 + $0x274] sm:$0xf] %vm562, %v1203
      %v1236 = vld [vmem:[%s465 + $0x2] sm:$0xff]
      %v1237 = vld [vmem:[%s465 + $0x12] sm:$0xff]
      %v1238 = vld [vmem:[%s465 + $0x22] sm:$0xff]
      %v1239 = vld [vmem:[%s465 + $0x32] sm:$0xff]
      %v1240 = vld [vmem:[%s465 + $0x42] sm:$0xff]
      %v1241 = vld [vmem:[%s465 + $0x52] sm:$0xff]
      %v1242 = vld [vmem:[%s465 + $0x62] sm:$0xff]
      %v1243 = vld [vmem:[%s465 + $0x72] sm:$0xff]
      %v1244 = vld [vmem:[%s465 + $0xa2] sm:$0xff]
      %v1245 = vld [vmem:[%s465 + $0xb2] sm:$0xff]
      %v1246 = vld [vmem:[%s465 + $0xc2] sm:$0xff]
      %v1247 = vld [vmem:[%s465 + $0xd2] sm:$0xff]
      %v1248 = vld [vmem:[%s465 + $0xe2] sm:$0xff]
      %v1249 = vld [vmem:[%s465 + $0xf2] sm:$0xff]
      %v1250 = vld [vmem:[%s465 + $0x102] sm:$0xff]
      %v1251 = vld [vmem:[%s465 + $0x112] sm:$0xff]
      %v1252 = vld [vmem:[%s465 + $0x142] sm:$0xff]
      %v1253 = vld [vmem:[%s465 + $0x152] sm:$0xff]
      %v1254 = vld [vmem:[%s465 + $0x162] sm:$0xff]
      %v1255 = vld [vmem:[%s465 + $0x172] sm:$0xff]
      %v1256 = vld [vmem:[%s465 + $0x182] sm:$0xff]
      %v1257 = vld [vmem:[%s465 + $0x192] sm:$0xff]
      %v1258 = vld [vmem:[%s465 + $0x1a2] sm:$0xff]
      %v1259 = vld [vmem:[%s465 + $0x1b2] sm:$0xff]
      %v1260 = vld [vmem:[%s465 + $0x1e2] sm:$0xff]
      %v1261 = vld [vmem:[%s465 + $0x1f2] sm:$0xff]
      %v1262 = vld [vmem:[%s465 + $0x202] sm:$0xff]
      %v1263 = vld [vmem:[%s465 + $0x212] sm:$0xff]
      %v1264 = vld [vmem:[%s465 + $0x222] sm:$0xff]
      %v1265 = vld [vmem:[%s465 + $0x232] sm:$0xff]
      %v1266 = vld [vmem:[%s465 + $0x242] sm:$0xff]
      %v1267 = vld [vmem:[%s465 + $0x252] sm:$0xff]
      %v1268 = vpack.c.bf16 %v1236, %v1236
      %v1269 = vpack.c.bf16 %v1237, %v1237
      %v1270 = vpack.c.bf16 %v1238, %v1238
      %v1271 = vpack.c.bf16 %v1239, %v1239
      %v1272 = vpack.c.bf16 %v1240, %v1240
      %v1273 = vpack.c.bf16 %v1241, %v1241
      %v1274 = vpack.c.bf16 %v1242, %v1242
      %v1275 = vpack.c.bf16 %v1243, %v1243
      %v1276 = vpack.c.bf16 %v1244, %v1244
      %v1277 = vpack.c.bf16 %v1245, %v1245
      %v1278 = vpack.c.bf16 %v1246, %v1246
      %v1279 = vpack.c.bf16 %v1247, %v1247
      %v1280 = vpack.c.bf16 %v1248, %v1248
      %v1281 = vpack.c.bf16 %v1249, %v1249
      %v1282 = vpack.c.bf16 %v1250, %v1250
      %v1283 = vpack.c.bf16 %v1251, %v1251
      %v1284 = vpack.c.bf16 %v1252, %v1252
      %v1285 = vpack.c.bf16 %v1253, %v1253
      %v1286 = vpack.c.bf16 %v1254, %v1254
      %v1287 = vpack.c.bf16 %v1255, %v1255
      %v1288 = vpack.c.bf16 %v1256, %v1256
      %v1289 = vpack.c.bf16 %v1257, %v1257
      %v1290 = vpack.c.bf16 %v1258, %v1258
      %v1291 = vpack.c.bf16 %v1259, %v1259
      %v1292 = vpack.c.bf16 %v1260, %v1260
      %v1293 = vpack.c.bf16 %v1261, %v1261
      %v1294 = vpack.c.bf16 %v1262, %v1262
      %v1295 = vpack.c.bf16 %v1263, %v1263
      %v1296 = vpack.c.bf16 %v1264, %v1264
      %v1297 = vpack.c.bf16 %v1265, %v1265
      %v1298 = vpack.c.bf16 %v1266, %v1266
      %v1299 = vpack.c.bf16 %v1267, %v1267
      %1332 = vrot.lane.b32.xlu0 %v1268, 64
      %v1333 = vpop.permute.xlu0 %1332
      %1334 = vrot.lane.b32.xlu0 %v1269, 64
      %v1335 = vpop.permute.xlu0 %1334
      %1336 = vrot.lane.b32.xlu0 %v1270, 64
      %v1337 = vpop.permute.xlu0 %1336
      %1338 = vrot.lane.b32.xlu0 %v1271, 64
      %v1339 = vpop.permute.xlu0 %1338
      %1340 = vrot.lane.b32.xlu0 %v1272, 64
      %v1341 = vpop.permute.xlu0 %1340
      %1342 = vrot.lane.b32.xlu0 %v1273, 64
      %v1343 = vpop.permute.xlu0 %1342
      %1344 = vrot.lane.b32.xlu0 %v1274, 64
      %v1345 = vpop.permute.xlu0 %1344
      %1346 = vrot.lane.b32.xlu0 %v1275, 64
      %v1347 = vpop.permute.xlu0 %1346
      %1348 = vrot.lane.b32.xlu0 %v1276, 64
      %v1349 = vpop.permute.xlu0 %1348
      %1350 = vrot.lane.b32.xlu0 %v1277, 64
      %v1351 = vpop.permute.xlu0 %1350
      %1352 = vrot.lane.b32.xlu0 %v1278, 64
      %v1353 = vpop.permute.xlu0 %1352
      %1354 = vrot.lane.b32.xlu0 %v1279, 64
      %v1355 = vpop.permute.xlu0 %1354
      %1356 = vrot.lane.b32.xlu0 %v1280, 64
      %v1357 = vpop.permute.xlu0 %1356
      %1358 = vrot.lane.b32.xlu0 %v1281, 64
      %v1359 = vpop.permute.xlu0 %1358
      %1360 = vrot.lane.b32.xlu0 %v1282, 64
      %v1361 = vpop.permute.xlu0 %1360
      %1362 = vrot.lane.b32.xlu0 %v1283, 64
      %v1363 = vpop.permute.xlu0 %1362
      %1364 = vrot.lane.b32.xlu0 %v1284, 64
      %v1365 = vpop.permute.xlu0 %1364
      %1366 = vrot.lane.b32.xlu0 %v1285, 64
      %v1367 = vpop.permute.xlu0 %1366
      %1368 = vrot.lane.b32.xlu0 %v1286, 64
      %v1369 = vpop.permute.xlu0 %1368
      %1370 = vrot.lane.b32.xlu0 %v1287, 64
      %v1371 = vpop.permute.xlu0 %1370
      %1372 = vrot.lane.b32.xlu0 %v1288, 64
      %v1373 = vpop.permute.xlu0 %1372
      %1374 = vrot.lane.b32.xlu0 %v1289, 64
      %v1375 = vpop.permute.xlu0 %1374
      %1376 = vrot.lane.b32.xlu0 %v1290, 64
      %v1377 = vpop.permute.xlu0 %1376
      %1378 = vrot.lane.b32.xlu0 %v1291, 64
      %v1379 = vpop.permute.xlu0 %1378
      %1380 = vrot.lane.b32.xlu0 %v1292, 64
      %v1381 = vpop.permute.xlu0 %1380
      %1382 = vrot.lane.b32.xlu0 %v1293, 64
      %v1383 = vpop.permute.xlu0 %1382
      %1384 = vrot.lane.b32.xlu0 %v1294, 64
      %v1385 = vpop.permute.xlu0 %1384
      %1386 = vrot.lane.b32.xlu0 %v1295, 64
      %v1387 = vpop.permute.xlu0 %1386
      %1388 = vrot.lane.b32.xlu0 %v1296, 64
      %v1389 = vpop.permute.xlu0 %1388
      %1390 = vrot.lane.b32.xlu0 %v1297, 64
      %v1391 = vpop.permute.xlu0 %1390
      %1392 = vrot.lane.b32.xlu0 %v1298, 64
      %v1393 = vpop.permute.xlu0 %1392
      %1394 = vrot.lane.b32.xlu0 %v1299, 64
      %v1395 = vpop.permute.xlu0 %1394
      %1428 = vst.msk [vmem:[#allocation3 + $0x8] sm:$0xf] %vm787, %v1333
      %1429 = vst.msk [vmem:[#allocation3 + $0x1c] sm:$0xf] %vm787, %v1335
      %1430 = vst.msk [vmem:[#allocation3 + $0x30] sm:$0xf] %vm787, %v1337
      %1431 = vst.msk [vmem:[#allocation3 + $0x44] sm:$0xf] %vm787, %v1339
      %1432 = vst.msk [vmem:[#allocation3 + $0x58] sm:$0xf] %vm787, %v1341
      %1433 = vst.msk [vmem:[#allocation3 + $0x6c] sm:$0xf] %vm787, %v1343
      %1434 = vst.msk [vmem:[#allocation3 + $0x80] sm:$0xf] %vm787, %v1345
      %1435 = vst.msk [vmem:[#allocation3 + $0x94] sm:$0xf] %vm787, %v1347
      %1436 = vst.msk [vmem:[#allocation3 + $0xa8] sm:$0xf] %vm787, %v1349
      %1437 = vst.msk [vmem:[#allocation3 + $0xbc] sm:$0xf] %vm787, %v1351
      %1438 = vst.msk [vmem:[#allocation3 + $0xd0] sm:$0xf] %vm787, %v1353
      %1439 = vst.msk [vmem:[#allocation3 + $0xe4] sm:$0xf] %vm787, %v1355
      %1440 = vst.msk [vmem:[#allocation3 + $0xf8] sm:$0xf] %vm787, %v1357
      %1441 = vst.msk [vmem:[#allocation3 + $0x10c] sm:$0xf] %vm787, %v1359
      %1442 = vst.msk [vmem:[#allocation3 + $0x120] sm:$0xf] %vm787, %v1361
      %1443 = vst.msk [vmem:[#allocation3 + $0x134] sm:$0xf] %vm787, %v1363
      %1444 = vst.msk [vmem:[#allocation3 + $0x148] sm:$0xf] %vm787, %v1365
      %1445 = vst.msk [vmem:[#allocation3 + $0x15c] sm:$0xf] %vm787, %v1367
      %1446 = vst.msk [vmem:[#allocation3 + $0x170] sm:$0xf] %vm787, %v1369
      %1447 = vst.msk [vmem:[#allocation3 + $0x184] sm:$0xf] %vm787, %v1371
      %1448 = vst.msk [vmem:[#allocation3 + $0x198] sm:$0xf] %vm787, %v1373
      %1449 = vst.msk [vmem:[#allocation3 + $0x1ac] sm:$0xf] %vm787, %v1375
      %1450 = vst.msk [vmem:[#allocation3 + $0x1c0] sm:$0xf] %vm787, %v1377
      %1451 = vst.msk [vmem:[#allocation3 + $0x1d4] sm:$0xf] %vm787, %v1379
      %1452 = vst.msk [vmem:[#allocation3 + $0x1e8] sm:$0xf] %vm787, %v1381
      %1453 = vst.msk [vmem:[#allocation3 + $0x1fc] sm:$0xf] %vm787, %v1383
      %1454 = vst.msk [vmem:[#allocation3 + $0x210] sm:$0xf] %vm787, %v1385
      %1455 = vst.msk [vmem:[#allocation3 + $0x224] sm:$0xf] %vm787, %v1387
      %1456 = vst.msk [vmem:[#allocation3 + $0x238] sm:$0xf] %vm787, %v1389
      %1457 = vst.msk [vmem:[#allocation3 + $0x24c] sm:$0xf] %vm787, %v1391
      %1458 = vst.msk [vmem:[#allocation3 + $0x260] sm:$0xf] %vm787, %v1393
      %1459 = vst.msk [vmem:[#allocation3 + $0x274] sm:$0xf] %vm787, %v1395
      %s1460 = scalar_lea.vmem [#allocation2], 32
      %v1461 = vld [vmem:[%s1460] sm:$0xff]
      %v1462 = vld [vmem:[%s1460 + $0x10] sm:$0xff]
      %v1463 = vld [vmem:[%s1460 + $0x20] sm:$0xff]
      %v1464 = vld [vmem:[%s1460 + $0x30] sm:$0xff]
      %v1465 = vld [vmem:[%s1460 + $0x40] sm:$0xff]
      %v1466 = vld [vmem:[%s1460 + $0x50] sm:$0xff]
      %v1467 = vld [vmem:[%s1460 + $0x60] sm:$0xff]
      %v1468 = vld [vmem:[%s1460 + $0x70] sm:$0xff]
      %v1469 = vld [vmem:[%s1460 + $0xa0] sm:$0xff]
      %v1470 = vld [vmem:[%s1460 + $0xb0] sm:$0xff]
      %v1471 = vld [vmem:[%s1460 + $0xc0] sm:$0xff]
      %v1472 = vld [vmem:[%s1460 + $0xd0] sm:$0xff]
      %v1473 = vld [vmem:[%s1460 + $0xe0] sm:$0xff]
      %v1474 = vld [vmem:[%s1460 + $0xf0] sm:$0xff]
      %v1475 = vld [vmem:[%s1460 + $0x100] sm:$0xff]
      %v1476 = vld [vmem:[%s1460 + $0x110] sm:$0xff]
      %v1477 = vld [vmem:[%s1460 + $0x140] sm:$0xff]
      %v1478 = vld [vmem:[%s1460 + $0x150] sm:$0xff]
      %v1479 = vld [vmem:[%s1460 + $0x160] sm:$0xff]
      %v1480 = vld [vmem:[%s1460 + $0x170] sm:$0xff]
      %v1481 = vld [vmem:[%s1460 + $0x180] sm:$0xff]
      %v1482 = vld [vmem:[%s1460 + $0x190] sm:$0xff]
      %v1483 = vld [vmem:[%s1460 + $0x1a0] sm:$0xff]
      %v1484 = vld [vmem:[%s1460 + $0x1b0] sm:$0xff]
      %v1485 = vld [vmem:[%s1460 + $0x1e0] sm:$0xff]
      %v1486 = vld [vmem:[%s1460 + $0x1f0] sm:$0xff]
      %v1487 = vld [vmem:[%s1460 + $0x200] sm:$0xff]
      %v1488 = vld [vmem:[%s1460 + $0x210] sm:$0xff]
      %v1489 = vld [vmem:[%s1460 + $0x220] sm:$0xff]
      %v1490 = vld [vmem:[%s1460 + $0x230] sm:$0xff]
      %v1491 = vld [vmem:[%s1460 + $0x240] sm:$0xff]
      %v1492 = vld [vmem:[%s1460 + $0x250] sm:$0xff]
      %v1493 = vpack.c.bf16 %v1461, %v1461
      %v1494 = vpack.c.bf16 %v1462, %v1462
      %v1495 = vpack.c.bf16 %v1463, %v1463
      %v1496 = vpack.c.bf16 %v1464, %v1464
      %v1497 = vpack.c.bf16 %v1465, %v1465
      %v1498 = vpack.c.bf16 %v1466, %v1466
      %v1499 = vpack.c.bf16 %v1467, %v1467
      %v1500 = vpack.c.bf16 %v1468, %v1468
      %v1501 = vpack.c.bf16 %v1469, %v1469
      %v1502 = vpack.c.bf16 %v1470, %v1470
      %v1503 = vpack.c.bf16 %v1471, %v1471
      %v1504 = vpack.c.bf16 %v1472, %v1472
      %v1505 = vpack.c.bf16 %v1473, %v1473
      %v1506 = vpack.c.bf16 %v1474, %v1474
      %v1507 = vpack.c.bf16 %v1475, %v1475
      %v1508 = vpack.c.bf16 %v1476, %v1476
      %v1509 = vpack.c.bf16 %v1477, %v1477
      %v1510 = vpack.c.bf16 %v1478, %v1478
      %v1511 = vpack.c.bf16 %v1479, %v1479
      %v1512 = vpack.c.bf16 %v1480, %v1480
      %v1513 = vpack.c.bf16 %v1481, %v1481
      %v1514 = vpack.c.bf16 %v1482, %v1482
      %v1515 = vpack.c.bf16 %v1483, %v1483
      %v1516 = vpack.c.bf16 %v1484, %v1484
      %v1517 = vpack.c.bf16 %v1485, %v1485
      %v1518 = vpack.c.bf16 %v1486, %v1486
      %v1519 = vpack.c.bf16 %v1487, %v1487
      %v1520 = vpack.c.bf16 %v1488, %v1488
      %v1521 = vpack.c.bf16 %v1489, %v1489
      %v1522 = vpack.c.bf16 %v1490, %v1490
      %v1523 = vpack.c.bf16 %v1491, %v1491
      %v1524 = vpack.c.bf16 %v1492, %v1492
      %1525 = vst.msk [vmem:[#allocation3 + $0xc] sm:$0xf] %vm562, %v1493
      %1526 = vst.msk [vmem:[#allocation3 + $0x20] sm:$0xf] %vm562, %v1494
      %1527 = vst.msk [vmem:[#allocation3 + $0x34] sm:$0xf] %vm562, %v1495
      %1528 = vst.msk [vmem:[#allocation3 + $0x48] sm:$0xf] %vm562, %v1496
      %1529 = vst.msk [vmem:[#allocation3 + $0x5c] sm:$0xf] %vm562, %v1497
      %1530 = vst.msk [vmem:[#allocation3 + $0x70] sm:$0xf] %vm562, %v1498
      %1531 = vst.msk [vmem:[#allocation3 + $0x84] sm:$0xf] %vm562, %v1499
      %1532 = vst.msk [vmem:[#allocation3 + $0x98] sm:$0xf] %vm562, %v1500
      %1533 = vst.msk [vmem:[#allocation3 + $0xac] sm:$0xf] %vm562, %v1501
      %1534 = vst.msk [vmem:[#allocation3 + $0xc0] sm:$0xf] %vm562, %v1502
      %1535 = vst.msk [vmem:[#allocation3 + $0xd4] sm:$0xf] %vm562, %v1503
      %1536 = vst.msk [vmem:[#allocation3 + $0xe8] sm:$0xf] %vm562, %v1504
      %1537 = vst.msk [vmem:[#allocation3 + $0xfc] sm:$0xf] %vm562, %v1505
      %1538 = vst.msk [vmem:[#allocation3 + $0x110] sm:$0xf] %vm562, %v1506
      %1539 = vst.msk [vmem:[#allocation3 + $0x124] sm:$0xf] %vm562, %v1507
      %1540 = vst.msk [vmem:[#allocation3 + $0x138] sm:$0xf] %vm562, %v1508
      %1541 = vst.msk [vmem:[#allocation3 + $0x14c] sm:$0xf] %vm562, %v1509
      %1542 = vst.msk [vmem:[#allocation3 + $0x160] sm:$0xf] %vm562, %v1510
      %1543 = vst.msk [vmem:[#allocation3 + $0x174] sm:$0xf] %vm562, %v1511
      %1544 = vst.msk [vmem:[#allocation3 + $0x188] sm:$0xf] %vm562, %v1512
      %1545 = vst.msk [vmem:[#allocation3 + $0x19c] sm:$0xf] %vm562, %v1513
      %1546 = vst.msk [vmem:[#allocation3 + $0x1b0] sm:$0xf] %vm562, %v1514
      %1547 = vst.msk [vmem:[#allocation3 + $0x1c4] sm:$0xf] %vm562, %v1515
      %1548 = vst.msk [vmem:[#allocation3 + $0x1d8] sm:$0xf] %vm562, %v1516
      %1549 = vst.msk [vmem:[#allocation3 + $0x1ec] sm:$0xf] %vm562, %v1517
      %1550 = vst.msk [vmem:[#allocation3 + $0x200] sm:$0xf] %vm562, %v1518
      %1551 = vst.msk [vmem:[#allocation3 + $0x214] sm:$0xf] %vm562, %v1519
      %1552 = vst.msk [vmem:[#allocation3 + $0x228] sm:$0xf] %vm562, %v1520
      %1553 = vst.msk [vmem:[#allocation3 + $0x23c] sm:$0xf] %vm562, %v1521
      %1554 = vst.msk [vmem:[#allocation3 + $0x250] sm:$0xf] %vm562, %v1522
      %1555 = vst.msk [vmem:[#allocation3 + $0x264] sm:$0xf] %vm562, %v1523
      %1556 = vst.msk [vmem:[#allocation3 + $0x278] sm:$0xf] %vm562, %v1524
      %v1557 = vld [vmem:[%s1460 + $0x1] sm:$0xff]
      %v1558 = vld [vmem:[%s1460 + $0x11] sm:$0xff]
      %v1559 = vld [vmem:[%s1460 + $0x21] sm:$0xff]
      %v1560 = vld [vmem:[%s1460 + $0x31] sm:$0xff]
      %v1561 = vld [vmem:[%s1460 + $0x41] sm:$0xff]
      %v1562 = vld [vmem:[%s1460 + $0x51] sm:$0xff]
      %v1563 = vld [vmem:[%s1460 + $0x61] sm:$0xff]
      %v1564 = vld [vmem:[%s1460 + $0x71] sm:$0xff]
      %v1565 = vld [vmem:[%s1460 + $0xa1] sm:$0xff]
      %v1566 = vld [vmem:[%s1460 + $0xb1] sm:$0xff]
      %v1567 = vld [vmem:[%s1460 + $0xc1] sm:$0xff]
      %v1568 = vld [vmem:[%s1460 + $0xd1] sm:$0xff]
      %v1569 = vld [vmem:[%s1460 + $0xe1] sm:$0xff]
      %v1570 = vld [vmem:[%s1460 + $0xf1] sm:$0xff]
      %v1571 = vld [vmem:[%s1460 + $0x101] sm:$0xff]
      %v1572 = vld [vmem:[%s1460 + $0x111] sm:$0xff]
      %v1573 = vld [vmem:[%s1460 + $0x141] sm:$0xff]
      %v1574 = vld [vmem:[%s1460 + $0x151] sm:$0xff]
      %v1575 = vld [vmem:[%s1460 + $0x161] sm:$0xff]
      %v1576 = vld [vmem:[%s1460 + $0x171] sm:$0xff]
      %v1577 = vld [vmem:[%s1460 + $0x181] sm:$0xff]
      %v1578 = vld [vmem:[%s1460 + $0x191] sm:$0xff]
      %v1579 = vld [vmem:[%s1460 + $0x1a1] sm:$0xff]
      %v1580 = vld [vmem:[%s1460 + $0x1b1] sm:$0xff]
      %v1581 = vld [vmem:[%s1460 + $0x1e1] sm:$0xff]
      %v1582 = vld [vmem:[%s1460 + $0x1f1] sm:$0xff]
      %v1583 = vld [vmem:[%s1460 + $0x201] sm:$0xff]
      %v1584 = vld [vmem:[%s1460 + $0x211] sm:$0xff]
      %v1585 = vld [vmem:[%s1460 + $0x221] sm:$0xff]
      %v1586 = vld [vmem:[%s1460 + $0x231] sm:$0xff]
      %v1587 = vld [vmem:[%s1460 + $0x241] sm:$0xff]
      %v1588 = vld [vmem:[%s1460 + $0x251] sm:$0xff]
      %v1589 = vpack.c.bf16 %v1557, %v1557
      %v1590 = vpack.c.bf16 %v1558, %v1558
      %v1591 = vpack.c.bf16 %v1559, %v1559
      %v1592 = vpack.c.bf16 %v1560, %v1560
      %v1593 = vpack.c.bf16 %v1561, %v1561
      %v1594 = vpack.c.bf16 %v1562, %v1562
      %v1595 = vpack.c.bf16 %v1563, %v1563
      %v1596 = vpack.c.bf16 %v1564, %v1564
      %v1597 = vpack.c.bf16 %v1565, %v1565
      %v1598 = vpack.c.bf16 %v1566, %v1566
      %v1599 = vpack.c.bf16 %v1567, %v1567
      %v1600 = vpack.c.bf16 %v1568, %v1568
      %v1601 = vpack.c.bf16 %v1569, %v1569
      %v1602 = vpack.c.bf16 %v1570, %v1570
      %v1603 = vpack.c.bf16 %v1571, %v1571
      %v1604 = vpack.c.bf16 %v1572, %v1572
      %v1605 = vpack.c.bf16 %v1573, %v1573
      %v1606 = vpack.c.bf16 %v1574, %v1574
      %v1607 = vpack.c.bf16 %v1575, %v1575
      %v1608 = vpack.c.bf16 %v1576, %v1576
      %v1609 = vpack.c.bf16 %v1577, %v1577
      %v1610 = vpack.c.bf16 %v1578, %v1578
      %v1611 = vpack.c.bf16 %v1579, %v1579
      %v1612 = vpack.c.bf16 %v1580, %v1580
      %v1613 = vpack.c.bf16 %v1581, %v1581
      %v1614 = vpack.c.bf16 %v1582, %v1582
      %v1615 = vpack.c.bf16 %v1583, %v1583
      %v1616 = vpack.c.bf16 %v1584, %v1584
      %v1617 = vpack.c.bf16 %v1585, %v1585
      %v1618 = vpack.c.bf16 %v1586, %v1586
      %v1619 = vpack.c.bf16 %v1587, %v1587
      %v1620 = vpack.c.bf16 %v1588, %v1588
      %1653 = vrot.lane.b32.xlu0 %v1589, 64
      %v1654 = vpop.permute.xlu0 %1653
      %1655 = vrot.lane.b32.xlu0 %v1590, 64
      %v1656 = vpop.permute.xlu0 %1655
      %1657 = vrot.lane.b32.xlu0 %v1591, 64
      %v1658 = vpop.permute.xlu0 %1657
      %1659 = vrot.lane.b32.xlu0 %v1592, 64
      %v1660 = vpop.permute.xlu0 %1659
      %1661 = vrot.lane.b32.xlu0 %v1593, 64
      %v1662 = vpop.permute.xlu0 %1661
      %1663 = vrot.lane.b32.xlu0 %v1594, 64
      %v1664 = vpop.permute.xlu0 %1663
      %1665 = vrot.lane.b32.xlu0 %v1595, 64
      %v1666 = vpop.permute.xlu0 %1665
      %1667 = vrot.lane.b32.xlu0 %v1596, 64
      %v1668 = vpop.permute.xlu0 %1667
      %1669 = vrot.lane.b32.xlu0 %v1597, 64
      %v1670 = vpop.permute.xlu0 %1669
      %1671 = vrot.lane.b32.xlu0 %v1598, 64
      %v1672 = vpop.permute.xlu0 %1671
      %1673 = vrot.lane.b32.xlu0 %v1599, 64
      %v1674 = vpop.permute.xlu0 %1673
      %1675 = vrot.lane.b32.xlu0 %v1600, 64
      %v1676 = vpop.permute.xlu0 %1675
      %1677 = vrot.lane.b32.xlu0 %v1601, 64
      %v1678 = vpop.permute.xlu0 %1677
      %1679 = vrot.lane.b32.xlu0 %v1602, 64
      %v1680 = vpop.permute.xlu0 %1679
      %1681 = vrot.lane.b32.xlu0 %v1603, 64
      %v1682 = vpop.permute.xlu0 %1681
      %1683 = vrot.lane.b32.xlu0 %v1604, 64
      %v1684 = vpop.permute.xlu0 %1683
      %1685 = vrot.lane.b32.xlu0 %v1605, 64
      %v1686 = vpop.permute.xlu0 %1685
      %1687 = vrot.lane.b32.xlu0 %v1606, 64
      %v1688 = vpop.permute.xlu0 %1687
      %1689 = vrot.lane.b32.xlu0 %v1607, 64
      %v1690 = vpop.permute.xlu0 %1689
      %1691 = vrot.lane.b32.xlu0 %v1608, 64
      %v1692 = vpop.permute.xlu0 %1691
      %1693 = vrot.lane.b32.xlu0 %v1609, 64
      %v1694 = vpop.permute.xlu0 %1693
      %1695 = vrot.lane.b32.xlu0 %v1610, 64
      %v1696 = vpop.permute.xlu0 %1695
      %1697 = vrot.lane.b32.xlu0 %v1611, 64
      %v1698 = vpop.permute.xlu0 %1697
      %1699 = vrot.lane.b32.xlu0 %v1612, 64
      %v1700 = vpop.permute.xlu0 %1699
      %1701 = vrot.lane.b32.xlu0 %v1613, 64
      %v1702 = vpop.permute.xlu0 %1701
      %1703 = vrot.lane.b32.xlu0 %v1614, 64
      %v1704 = vpop.permute.xlu0 %1703
      %1705 = vrot.lane.b32.xlu0 %v1615, 64
      %v1706 = vpop.permute.xlu0 %1705
      %1707 = vrot.lane.b32.xlu0 %v1616, 64
      %v1708 = vpop.permute.xlu0 %1707
      %1709 = vrot.lane.b32.xlu0 %v1617, 64
      %v1710 = vpop.permute.xlu0 %1709
      %1711 = vrot.lane.b32.xlu0 %v1618, 64
      %v1712 = vpop.permute.xlu0 %1711
      %1713 = vrot.lane.b32.xlu0 %v1619, 64
      %v1714 = vpop.permute.xlu0 %1713
      %1715 = vrot.lane.b32.xlu0 %v1620, 64
      %v1716 = vpop.permute.xlu0 %1715
      %1749 = vst.msk [vmem:[#allocation3 + $0xc] sm:$0xf] %vm787, %v1654
      %1750 = vst.msk [vmem:[#allocation3 + $0x20] sm:$0xf] %vm787, %v1656
      %1751 = vst.msk [vmem:[#allocation3 + $0x34] sm:$0xf] %vm787, %v1658
      %1752 = vst.msk [vmem:[#allocation3 + $0x48] sm:$0xf] %vm787, %v1660
      %1753 = vst.msk [vmem:[#allocation3 + $0x5c] sm:$0xf] %vm787, %v1662
      %1754 = vst.msk [vmem:[#allocation3 + $0x70] sm:$0xf] %vm787, %v1664
      %1755 = vst.msk [vmem:[#allocation3 + $0x84] sm:$0xf] %vm787, %v1666
      %1756 = vst.msk [vmem:[#allocation3 + $0x98] sm:$0xf] %vm787, %v1668
      %1757 = vst.msk [vmem:[#allocation3 + $0xac] sm:$0xf] %vm787, %v1670
      %1758 = vst.msk [vmem:[#allocation3 + $0xc0] sm:$0xf] %vm787, %v1672
      %1759 = vst.msk [vmem:[#allocation3 + $0xd4] sm:$0xf] %vm787, %v1674
      %1760 = vst.msk [vmem:[#allocation3 + $0xe8] sm:$0xf] %vm787, %v1676
      %1761 = vst.msk [vmem:[#allocation3 + $0xfc] sm:$0xf] %vm787, %v1678
      %1762 = vst.msk [vmem:[#allocation3 + $0x110] sm:$0xf] %vm787, %v1680
      %1763 = vst.msk [vmem:[#allocation3 + $0x124] sm:$0xf] %vm787, %v1682
      %1764 = vst.msk [vmem:[#allocation3 + $0x138] sm:$0xf] %vm787, %v1684
      %1765 = vst.msk [vmem:[#allocation3 + $0x14c] sm:$0xf] %vm787, %v1686
      %1766 = vst.msk [vmem:[#allocation3 + $0x160] sm:$0xf] %vm787, %v1688
      %1767 = vst.msk [vmem:[#allocation3 + $0x174] sm:$0xf] %vm787, %v1690
      %1768 = vst.msk [vmem:[#allocation3 + $0x188] sm:$0xf] %vm787, %v1692
      %1769 = vst.msk [vmem:[#allocation3 + $0x19c] sm:$0xf] %vm787, %v1694
      %1770 = vst.msk [vmem:[#allocation3 + $0x1b0] sm:$0xf] %vm787, %v1696
      %1771 = vst.msk [vmem:[#allocation3 + $0x1c4] sm:$0xf] %vm787, %v1698
      %1772 = vst.msk [vmem:[#allocation3 + $0x1d8] sm:$0xf] %vm787, %v1700
      %1773 = vst.msk [vmem:[#allocation3 + $0x1ec] sm:$0xf] %vm787, %v1702
      %1774 = vst.msk [vmem:[#allocation3 + $0x200] sm:$0xf] %vm787, %v1704
      %1775 = vst.msk [vmem:[#allocation3 + $0x214] sm:$0xf] %vm787, %v1706
      %1776 = vst.msk [vmem:[#allocation3 + $0x228] sm:$0xf] %vm787, %v1708
      %1777 = vst.msk [vmem:[#allocation3 + $0x23c] sm:$0xf] %vm787, %v1710
      %1778 = vst.msk [vmem:[#allocation3 + $0x250] sm:$0xf] %vm787, %v1712
      %1779 = vst.msk [vmem:[#allocation3 + $0x264] sm:$0xf] %vm787, %v1714
      %1780 = vst.msk [vmem:[#allocation3 + $0x278] sm:$0xf] %vm787, %v1716
      %v1781 = vld [vmem:[%s1460 + $0x2] sm:$0xff]
      %v1782 = vld [vmem:[%s1460 + $0x12] sm:$0xff]
      %v1783 = vld [vmem:[%s1460 + $0x22] sm:$0xff]
      %v1784 = vld [vmem:[%s1460 + $0x32] sm:$0xff]
      %v1785 = vld [vmem:[%s1460 + $0x42] sm:$0xff]
      %v1786 = vld [vmem:[%s1460 + $0x52] sm:$0xff]
      %v1787 = vld [vmem:[%s1460 + $0x62] sm:$0xff]
      %v1788 = vld [vmem:[%s1460 + $0x72] sm:$0xff]
      %v1789 = vld [vmem:[%s1460 + $0xa2] sm:$0xff]
      %v1790 = vld [vmem:[%s1460 + $0xb2] sm:$0xff]
      %v1791 = vld [vmem:[%s1460 + $0xc2] sm:$0xff]
      %v1792 = vld [vmem:[%s1460 + $0xd2] sm:$0xff]
      %v1793 = vld [vmem:[%s1460 + $0xe2] sm:$0xff]
      %v1794 = vld [vmem:[%s1460 + $0xf2] sm:$0xff]
      %v1795 = vld [vmem:[%s1460 + $0x102] sm:$0xff]
      %v1796 = vld [vmem:[%s1460 + $0x112] sm:$0xff]
      %v1797 = vld [vmem:[%s1460 + $0x142] sm:$0xff]
      %v1798 = vld [vmem:[%s1460 + $0x152] sm:$0xff]
      %v1799 = vld [vmem:[%s1460 + $0x162] sm:$0xff]
      %v1800 = vld [vmem:[%s1460 + $0x172] sm:$0xff]
      %v1801 = vld [vmem:[%s1460 + $0x182] sm:$0xff]
      %v1802 = vld [vmem:[%s1460 + $0x192] sm:$0xff]
      %v1803 = vld [vmem:[%s1460 + $0x1a2] sm:$0xff]
      %v1804 = vld [vmem:[%s1460 + $0x1b2] sm:$0xff]
      %v1805 = vld [vmem:[%s1460 + $0x1e2] sm:$0xff]
      %v1806 = vld [vmem:[%s1460 + $0x1f2] sm:$0xff]
      %v1807 = vld [vmem:[%s1460 + $0x202] sm:$0xff]
      %v1808 = vld [vmem:[%s1460 + $0x212] sm:$0xff]
      %v1809 = vld [vmem:[%s1460 + $0x222] sm:$0xff]
      %v1810 = vld [vmem:[%s1460 + $0x232] sm:$0xff]
      %v1811 = vld [vmem:[%s1460 + $0x242] sm:$0xff]
      %v1812 = vld [vmem:[%s1460 + $0x252] sm:$0xff]
      %v1813 = vpack.c.bf16 %v1781, %v1781
      %v1814 = vpack.c.bf16 %v1782, %v1782
      %v1815 = vpack.c.bf16 %v1783, %v1783
      %v1816 = vpack.c.bf16 %v1784, %v1784
      %v1817 = vpack.c.bf16 %v1785, %v1785
      %v1818 = vpack.c.bf16 %v1786, %v1786
      %v1819 = vpack.c.bf16 %v1787, %v1787
      %v1820 = vpack.c.bf16 %v1788, %v1788
      %v1821 = vpack.c.bf16 %v1789, %v1789
      %v1822 = vpack.c.bf16 %v1790, %v1790
      %v1823 = vpack.c.bf16 %v1791, %v1791
      %v1824 = vpack.c.bf16 %v1792, %v1792
      %v1825 = vpack.c.bf16 %v1793, %v1793
      %v1826 = vpack.c.bf16 %v1794, %v1794
      %v1827 = vpack.c.bf16 %v1795, %v1795
      %v1828 = vpack.c.bf16 %v1796, %v1796
      %v1829 = vpack.c.bf16 %v1797, %v1797
      %v1830 = vpack.c.bf16 %v1798, %v1798
      %v1831 = vpack.c.bf16 %v1799, %v1799
      %v1832 = vpack.c.bf16 %v1800, %v1800
      %v1833 = vpack.c.bf16 %v1801, %v1801
      %v1834 = vpack.c.bf16 %v1802, %v1802
      %v1835 = vpack.c.bf16 %v1803, %v1803
      %v1836 = vpack.c.bf16 %v1804, %v1804
      %v1837 = vpack.c.bf16 %v1805, %v1805
      %v1838 = vpack.c.bf16 %v1806, %v1806
      %v1839 = vpack.c.bf16 %v1807, %v1807
      %v1840 = vpack.c.bf16 %v1808, %v1808
      %v1841 = vpack.c.bf16 %v1809, %v1809
      %v1842 = vpack.c.bf16 %v1810, %v1810
      %v1843 = vpack.c.bf16 %v1811, %v1811
      %v1844 = vpack.c.bf16 %v1812, %v1812
      %1845 = vst.msk [vmem:[#allocation3 + $0x10] sm:$0xf] %vm562, %v1813
      %1846 = vst.msk [vmem:[#allocation3 + $0x24] sm:$0xf] %vm562, %v1814
      %1847 = vst.msk [vmem:[#allocation3 + $0x38] sm:$0xf] %vm562, %v1815
      %1848 = vst.msk [vmem:[#allocation3 + $0x4c] sm:$0xf] %vm562, %v1816
      %1849 = vst.msk [vmem:[#allocation3 + $0x60] sm:$0xf] %vm562, %v1817
      %1850 = vst.msk [vmem:[#allocation3 + $0x74] sm:$0xf] %vm562, %v1818
      %1851 = vst.msk [vmem:[#allocation3 + $0x88] sm:$0xf] %vm562, %v1819
      %1852 = vst.msk [vmem:[#allocation3 + $0x9c] sm:$0xf] %vm562, %v1820
      %1853 = vst.msk [vmem:[#allocation3 + $0xb0] sm:$0xf] %vm562, %v1821
      %1854 = vst.msk [vmem:[#allocation3 + $0xc4] sm:$0xf] %vm562, %v1822
      %1855 = vst.msk [vmem:[#allocation3 + $0xd8] sm:$0xf] %vm562, %v1823
      %1856 = vst.msk [vmem:[#allocation3 + $0xec] sm:$0xf] %vm562, %v1824
      %1857 = vst.msk [vmem:[#allocation3 + $0x100] sm:$0xf] %vm562, %v1825
      %1858 = vst.msk [vmem:[#allocation3 + $0x114] sm:$0xf] %vm562, %v1826
      %1859 = vst.msk [vmem:[#allocation3 + $0x128] sm:$0xf] %vm562, %v1827
      %1860 = vst.msk [vmem:[#allocation3 + $0x13c] sm:$0xf] %vm562, %v1828
      %1861 = vst.msk [vmem:[#allocation3 + $0x150] sm:$0xf] %vm562, %v1829
      %1862 = vst.msk [vmem:[#allocation3 + $0x164] sm:$0xf] %vm562, %v1830
      %1863 = vst.msk [vmem:[#allocation3 + $0x178] sm:$0xf] %vm562, %v1831
      %1864 = vst.msk [vmem:[#allocation3 + $0x18c] sm:$0xf] %vm562, %v1832
      %1865 = vst.msk [vmem:[#allocation3 + $0x1a0] sm:$0xf] %vm562, %v1833
      %1866 = vst.msk [vmem:[#allocation3 + $0x1b4] sm:$0xf] %vm562, %v1834
      %1867 = vst.msk [vmem:[#allocation3 + $0x1c8] sm:$0xf] %vm562, %v1835
      %1868 = vst.msk [vmem:[#allocation3 + $0x1dc] sm:$0xf] %vm562, %v1836
      %1869 = vst.msk [vmem:[#allocation3 + $0x1f0] sm:$0xf] %vm562, %v1837
      %1870 = vst.msk [vmem:[#allocation3 + $0x204] sm:$0xf] %vm562, %v1838
      %1871 = vst.msk [vmem:[#allocation3 + $0x218] sm:$0xf] %vm562, %v1839
      %1872 = vst.msk [vmem:[#allocation3 + $0x22c] sm:$0xf] %vm562, %v1840
      %1873 = vst.msk [vmem:[#allocation3 + $0x240] sm:$0xf] %vm562, %v1841
      %1874 = vst.msk [vmem:[#allocation3 + $0x254] sm:$0xf] %vm562, %v1842
      %1875 = vst.msk [vmem:[#allocation3 + $0x268] sm:$0xf] %vm562, %v1843
      %1876 = vst.msk [vmem:[#allocation3 + $0x27c] sm:$0xf] %vm562, %v1844
      %v1877 = vld [vmem:[#allocation3] sm:$0xff]
      %v1878 = vld [vmem:[#allocation3 + $0x8] sm:$0xff]
      %v1879 = vld [vmem:[#allocation3 + $0x10] sm:$0xf]
      %v1880 = vld [vmem:[#allocation3 + $0x14] sm:$0xff]
      %v1881 = vld [vmem:[#allocation3 + $0x1c] sm:$0xff]
      %v1882 = vld [vmem:[#allocation3 + $0x24] sm:$0xf]
      %v1883 = vld [vmem:[#allocation3 + $0x28] sm:$0xff]
      %v1884 = vld [vmem:[#allocation3 + $0x30] sm:$0xff]
      %v1885 = vld [vmem:[#allocation3 + $0x38] sm:$0xf]
      %v1886 = vld [vmem:[#allocation3 + $0x3c] sm:$0xff]
      %v1887 = vld [vmem:[#allocation3 + $0x44] sm:$0xff]
      %v1888 = vld [vmem:[#allocation3 + $0x4c] sm:$0xf]
      %v1889 = vld [vmem:[#allocation3 + $0x50] sm:$0xff]
      %v1890 = vld [vmem:[#allocation3 + $0x58] sm:$0xff]
      %v1891 = vld [vmem:[#allocation3 + $0x60] sm:$0xf]
      %v1892 = vld [vmem:[#allocation3 + $0x64] sm:$0xff]
      %v1893 = vld [vmem:[#allocation3 + $0x6c] sm:$0xff]
      %v1894 = vld [vmem:[#allocation3 + $0x74] sm:$0xf]
      %v1895 = vld [vmem:[#allocation3 + $0x78] sm:$0xff]
      %v1896 = vld [vmem:[#allocation3 + $0x80] sm:$0xff]
      %v1897 = vld [vmem:[#allocation3 + $0x88] sm:$0xf]
      %v1898 = vld [vmem:[#allocation3 + $0x8c] sm:$0xff]
      %v1899 = vld [vmem:[#allocation3 + $0x94] sm:$0xff]
      %v1900 = vld [vmem:[#allocation3 + $0x9c] sm:$0xf]
      %v1901 = vld [vmem:[#allocation3 + $0xa0] sm:$0xff]
      %v1902 = vld [vmem:[#allocation3 + $0xa8] sm:$0xff]
      %v1903 = vld [vmem:[#allocation3 + $0xb0] sm:$0xf]
      %v1904 = vld [vmem:[#allocation3 + $0xb4] sm:$0xff]
      %v1905 = vld [vmem:[#allocation3 + $0xbc] sm:$0xff]
      %v1906 = vld [vmem:[#allocation3 + $0xc4] sm:$0xf]
      %v1907 = vld [vmem:[#allocation3 + $0xc8] sm:$0xff]
      %v1908 = vld [vmem:[#allocation3 + $0xd0] sm:$0xff]
      %v1909 = vld [vmem:[#allocation3 + $0xd8] sm:$0xf]
      %v1910 = vld [vmem:[#allocation3 + $0xdc] sm:$0xff]
      %v1911 = vld [vmem:[#allocation3 + $0xe4] sm:$0xff]
      %v1912 = vld [vmem:[#allocation3 + $0xec] sm:$0xf]
      %v1913 = vld [vmem:[#allocation3 + $0xf0] sm:$0xff]
      %v1914 = vld [vmem:[#allocation3 + $0xf8] sm:$0xff]
      %v1915 = vld [vmem:[#allocation3 + $0x100] sm:$0xf]
      %v1916 = vld [vmem:[#allocation3 + $0x104] sm:$0xff]
      %v1917 = vld [vmem:[#allocation3 + $0x10c] sm:$0xff]
      %v1918 = vld [vmem:[#allocation3 + $0x114] sm:$0xf]
      %v1919 = vld [vmem:[#allocation3 + $0x118] sm:$0xff]
      %v1920 = vld [vmem:[#allocation3 + $0x120] sm:$0xff]
      %v1921 = vld [vmem:[#allocation3 + $0x128] sm:$0xf]
      %v1922 = vld [vmem:[#allocation3 + $0x12c] sm:$0xff]
      %v1923 = vld [vmem:[#allocation3 + $0x134] sm:$0xff]
      %v1924 = vld [vmem:[#allocation3 + $0x13c] sm:$0xf]
      %v1925 = vld [vmem:[#allocation3 + $0x140] sm:$0xff]
      %v1926 = vld [vmem:[#allocation3 + $0x148] sm:$0xff]
      %v1927 = vld [vmem:[#allocation3 + $0x150] sm:$0xf]
      %v1928 = vld [vmem:[#allocation3 + $0x154] sm:$0xff]
      %v1929 = vld [vmem:[#allocation3 + $0x15c] sm:$0xff]
      %v1930 = vld [vmem:[#allocation3 + $0x164] sm:$0xf]
      %v1931 = vld [vmem:[#allocation3 + $0x168] sm:$0xff]
      %v1932 = vld [vmem:[#allocation3 + $0x170] sm:$0xff]
      %v1933 = vld [vmem:[#allocation3 + $0x178] sm:$0xf]
      %v1934 = vld [vmem:[#allocation3 + $0x17c] sm:$0xff]
      %v1935 = vld [vmem:[#allocation3 + $0x184] sm:$0xff]
      %v1936 = vld [vmem:[#allocation3 + $0x18c] sm:$0xf]
      %v1937 = vld [vmem:[#allocation3 + $0x190] sm:$0xff]
      %v1938 = vld [vmem:[#allocation3 + $0x198] sm:$0xff]
      %v1939 = vld [vmem:[#allocation3 + $0x1a0] sm:$0xf]
      %v1940 = vld [vmem:[#allocation3 + $0x1a4] sm:$0xff]
      %v1941 = vld [vmem:[#allocation3 + $0x1ac] sm:$0xff]
      %v1942 = vld [vmem:[#allocation3 + $0x1b4] sm:$0xf]
      %v1943 = vld [vmem:[#allocation3 + $0x1b8] sm:$0xff]
      %v1944 = vld [vmem:[#allocation3 + $0x1c0] sm:$0xff]
      %v1945 = vld [vmem:[#allocation3 + $0x1c8] sm:$0xf]
      %v1946 = vld [vmem:[#allocation3 + $0x1cc] sm:$0xff]
      %v1947 = vld [vmem:[#allocation3 + $0x1d4] sm:$0xff]
      %v1948 = vld [vmem:[#allocation3 + $0x1dc] sm:$0xf]
      %v1949 = vld [vmem:[#allocation3 + $0x1e0] sm:$0xff]
      %v1950 = vld [vmem:[#allocation3 + $0x1e8] sm:$0xff]
      %v1951 = vld [vmem:[#allocation3 + $0x1f0] sm:$0xf]
      %v1952 = vld [vmem:[#allocation3 + $0x1f4] sm:$0xff]
      %v1953 = vld [vmem:[#allocation3 + $0x1fc] sm:$0xff]
      %v1954 = vld [vmem:[#allocation3 + $0x204] sm:$0xf]
      %v1955 = vld [vmem:[#allocation3 + $0x208] sm:$0xff]
      %v1956 = vld [vmem:[#allocation3 + $0x210] sm:$0xff]
      %v1957 = vld [vmem:[#allocation3 + $0x218] sm:$0xf]
      %v1958 = vld [vmem:[#allocation3 + $0x21c] sm:$0xff]
      %v1959 = vld [vmem:[#allocation3 + $0x224] sm:$0xff]
      %v1960 = vld [vmem:[#allocation3 + $0x22c] sm:$0xf]
      %v1961 = vld [vmem:[#allocation3 + $0x230] sm:$0xff]
      %v1962 = vld [vmem:[#allocation3 + $0x238] sm:$0xff]
      %v1963 = vld [vmem:[#allocation3 + $0x240] sm:$0xf]
      %v1964 = vld [vmem:[#allocation3 + $0x244] sm:$0xff]
      %v1965 = vld [vmem:[#allocation3 + $0x24c] sm:$0xff]
      %v1966 = vld [vmem:[#allocation3 + $0x254] sm:$0xf]
      %v1967 = vld [vmem:[#allocation3 + $0x258] sm:$0xff]
      %v1968 = vld [vmem:[#allocation3 + $0x260] sm:$0xff]
      %v1969 = vld [vmem:[#allocation3 + $0x268] sm:$0xf]
      %v1970 = vld [vmem:[#allocation3 + $0x26c] sm:$0xff]
      %v1971 = vld [vmem:[#allocation3 + $0x274] sm:$0xff]
      %v1972 = vld [vmem:[#allocation3 + $0x27c] sm:$0xf]
      %v1973 = vld [vmem:[%s2] sm:$0xf]
      %v1974 = vld [vmem:[%s2 + $0x4] sm:$0xf]
      %v1975 = vld [vmem:[%s2 + $0x8] sm:$0xf]
      %v1976 = vld [vmem:[%s2 + $0xc] sm:$0xf]
      %v1977 = vld [vmem:[%s2 + $0x10] sm:$0xf]
      %v1978 = vld [vmem:[%s2 + $0x14] sm:$0xf]
      %v1979 = vld [vmem:[%s2 + $0x18] sm:$0xf]
      %v1980 = vld [vmem:[%s2 + $0x1c] sm:$0xf]
      %v1981 = vld [vmem:[%s2 + $0x20] sm:$0xf]
      %v1982 = vld [vmem:[%s2 + $0x24] sm:$0xf]
      %v1983 = vld [vmem:[%s2 + $0x28] sm:$0xf]
      %v1984 = vld [vmem:[%s2 + $0x2c] sm:$0xf]
      %v1985 = vld [vmem:[%s2 + $0x30] sm:$0xf]
      %v1986 = vld [vmem:[%s2 + $0x34] sm:$0xf]
      %v1987 = vld [vmem:[%s2 + $0x38] sm:$0xf]
      %v1988 = vld [vmem:[%s2 + $0x3c] sm:$0xf]
      %v1989 = vld [vmem:[%s2 + $0x40] sm:$0xf]
      %v1990 = vld [vmem:[%s2 + $0x44] sm:$0xf]
      %v1991 = vld [vmem:[%s2 + $0x48] sm:$0xf]
      %v1992 = vld [vmem:[%s2 + $0x4c] sm:$0xf]
      %v1993 = vld [vmem:[%s2 + $0x50] sm:$0xf]
      %v1994 = vld [vmem:[%s2 + $0x54] sm:$0xf]
      %v1995 = vld [vmem:[%s2 + $0x58] sm:$0xf]
      %v1996 = vld [vmem:[%s2 + $0x5c] sm:$0xf]
      %v1997 = vld [vmem:[%s2 + $0x60] sm:$0xf]
      %v1998 = vld [vmem:[%s2 + $0x64] sm:$0xf]
      %v1999 = vld [vmem:[%s2 + $0x68] sm:$0xf]
      %v2000 = vld [vmem:[%s2 + $0x6c] sm:$0xf]
      %v2001 = vld [vmem:[%s2 + $0x70] sm:$0xf]
      %v2002 = vld [vmem:[%s2 + $0x74] sm:$0xf]
      %v2003 = vld [vmem:[%s2 + $0x78] sm:$0xf]
      %v2004 = vld [vmem:[%s2 + $0x7c] sm:$0xf]
      %v2005 = vld [vmem:[%s2 + $0x80] sm:$0xf]
      %v2006 = vld [vmem:[%s2 + $0x84] sm:$0xf]
      %v2007 = vld [vmem:[%s2 + $0x88] sm:$0xf]
      %v2008 = vld [vmem:[%s2 + $0x8c] sm:$0xf]
      %v2009 = vld [vmem:[%s2 + $0x90] sm:$0xf]
      %v2010 = vld [vmem:[%s2 + $0x94] sm:$0xf]
      %v2011 = vld [vmem:[%s2 + $0x98] sm:$0xf]
      %v2012 = vld [vmem:[%s2 + $0x9c] sm:$0xf]
      %v2013 = vld [vmem:[%s2 + $0xa0] sm:$0xf]
      %v2014 = vld [vmem:[%s2 + $0xa4] sm:$0xf]
      %v2015 = vld [vmem:[%s2 + $0xa8] sm:$0xf]
      %v2016 = vld [vmem:[%s2 + $0xac] sm:$0xf]
      %v2017 = vld [vmem:[%s2 + $0xb0] sm:$0xf]
      %v2018 = vld [vmem:[%s2 + $0xb4] sm:$0xf]
      %v2019 = vld [vmem:[%s2 + $0xb8] sm:$0xf]
      %v2020 = vld [vmem:[%s2 + $0xbc] sm:$0xf]
      %v2021 = vld [vmem:[%s2 + $0xc0] sm:$0xf]
      %v2022 = vld [vmem:[%s2 + $0xc4] sm:$0xf]
      %v2023 = vld [vmem:[%s2 + $0xc8] sm:$0xf]
      %v2024 = vld [vmem:[%s2 + $0xcc] sm:$0xf]
      %v2025 = vld [vmem:[%s2 + $0xd0] sm:$0xf]
      %v2026 = vld [vmem:[%s2 + $0xd4] sm:$0xf]
      %v2027 = vld [vmem:[%s2 + $0xd8] sm:$0xf]
      %v2028 = vld [vmem:[%s2 + $0xdc] sm:$0xf]
      %v2029 = vld [vmem:[%s2 + $0xe0] sm:$0xf]
      %v2030 = vld [vmem:[%s2 + $0xe4] sm:$0xf]
      %v2031 = vld [vmem:[%s2 + $0xe8] sm:$0xf]
      %v2032 = vld [vmem:[%s2 + $0xec] sm:$0xf]
      %v2033 = vld [vmem:[%s2 + $0xf0] sm:$0xf]
      %v2034 = vld [vmem:[%s2 + $0xf4] sm:$0xf]
      %v2035 = vld [vmem:[%s2 + $0xf8] sm:$0xf]
      %v2036 = vld [vmem:[%s2 + $0xfc] sm:$0xf]
      %v2037 = vld [vmem:[%s2 + $0x100] sm:$0xf]
      %v2038 = vld [vmem:[%s2 + $0x104] sm:$0xf]
      %v2039 = vld [vmem:[%s2 + $0x108] sm:$0xf]
      %v2040 = vld [vmem:[%s2 + $0x10c] sm:$0xf]
      %v2041 = vld [vmem:[%s2 + $0x110] sm:$0xf]
      %v2042 = vld [vmem:[%s2 + $0x114] sm:$0xf]
      %v2043 = vld [vmem:[%s2 + $0x118] sm:$0xf]
      %v2044 = vld [vmem:[%s2 + $0x11c] sm:$0xf]
      %v2141 = vunpack.c.l.b16 %v1877
      %v2142 = vunpack.c.h.b16 %v1877
      %v2143 = vunpack.c.l.b16 %v1878
      %v2144 = vunpack.c.h.b16 %v1878
      %v2145 = vunpack.c.l.b16 %v1879
      %v2146 = vunpack.c.l.b16 %v1880
      %v2147 = vunpack.c.h.b16 %v1880
      %v2148 = vunpack.c.l.b16 %v1881
      %v2149 = vunpack.c.h.b16 %v1881
      %v2150 = vunpack.c.l.b16 %v1882
      %v2151 = vunpack.c.l.b16 %v1883
      %v2152 = vunpack.c.h.b16 %v1883
      %v2153 = vunpack.c.l.b16 %v1884
      %v2154 = vunpack.c.h.b16 %v1884
      %v2155 = vunpack.c.l.b16 %v1885
      %v2156 = vunpack.c.l.b16 %v1886
      %v2157 = vunpack.c.h.b16 %v1886
      %v2158 = vunpack.c.l.b16 %v1887
      %v2159 = vunpack.c.h.b16 %v1887
      %v2160 = vunpack.c.l.b16 %v1888
      %v2161 = vunpack.c.l.b16 %v1889
      %v2162 = vunpack.c.h.b16 %v1889
      %v2163 = vunpack.c.l.b16 %v1890
      %v2164 = vunpack.c.h.b16 %v1890
      %v2165 = vunpack.c.l.b16 %v1891
      %v2166 = vunpack.c.l.b16 %v1892
      %v2167 = vunpack.c.h.b16 %v1892
      %v2168 = vunpack.c.l.b16 %v1893
      %v2169 = vunpack.c.h.b16 %v1893
      %v2170 = vunpack.c.l.b16 %v1894
      %v2171 = vunpack.c.l.b16 %v1895
      %v2172 = vunpack.c.h.b16 %v1895
      %v2173 = vunpack.c.l.b16 %v1896
      %v2174 = vunpack.c.h.b16 %v1896
      %v2175 = vunpack.c.l.b16 %v1897
      %v2176 = vunpack.c.l.b16 %v1898
      %v2177 = vunpack.c.h.b16 %v1898
      %v2178 = vunpack.c.l.b16 %v1899
      %v2179 = vunpack.c.h.b16 %v1899
      %v2180 = vunpack.c.l.b16 %v1900
      %v2181 = vunpack.c.l.b16 %v1901
      %v2182 = vunpack.c.h.b16 %v1901
      %v2183 = vunpack.c.l.b16 %v1902
      %v2184 = vunpack.c.h.b16 %v1902
      %v2185 = vunpack.c.l.b16 %v1903
      %v2186 = vunpack.c.l.b16 %v1904
      %v2187 = vunpack.c.h.b16 %v1904
      %v2188 = vunpack.c.l.b16 %v1905
      %v2189 = vunpack.c.h.b16 %v1905
      %v2190 = vunpack.c.l.b16 %v1906
      %v2191 = vunpack.c.l.b16 %v1907
      %v2192 = vunpack.c.h.b16 %v1907
      %v2193 = vunpack.c.l.b16 %v1908
      %v2194 = vunpack.c.h.b16 %v1908
      %v2195 = vunpack.c.l.b16 %v1909
      %v2196 = vunpack.c.l.b16 %v1910
      %v2197 = vunpack.c.h.b16 %v1910
      %v2198 = vunpack.c.l.b16 %v1911
      %v2199 = vunpack.c.h.b16 %v1911
      %v2200 = vunpack.c.l.b16 %v1912
      %v2201 = vunpack.c.l.b16 %v1913
      %v2202 = vunpack.c.h.b16 %v1913
      %v2203 = vunpack.c.l.b16 %v1914
      %v2204 = vunpack.c.h.b16 %v1914
      %v2205 = vunpack.c.l.b16 %v1915
      %v2206 = vunpack.c.l.b16 %v1916
      %v2207 = vunpack.c.h.b16 %v1916
      %v2208 = vunpack.c.l.b16 %v1917
      %v2209 = vunpack.c.h.b16 %v1917
      %v2210 = vunpack.c.l.b16 %v1918
      %v2211 = vunpack.c.l.b16 %v1919
      %v2212 = vunpack.c.h.b16 %v1919
      %v2213 = vunpack.c.l.b16 %v1920
      %v2214 = vunpack.c.h.b16 %v1920
      %v2215 = vunpack.c.l.b16 %v1921
      %v2216 = vunpack.c.l.b16 %v1922
      %v2217 = vunpack.c.h.b16 %v1922
      %v2218 = vunpack.c.l.b16 %v1923
      %v2219 = vunpack.c.h.b16 %v1923
      %v2220 = vunpack.c.l.b16 %v1924
      %v2221 = vunpack.c.l.b16 %v1925
      %v2222 = vunpack.c.h.b16 %v1925
      %v2223 = vunpack.c.l.b16 %v1926
      %v2224 = vunpack.c.h.b16 %v1926
      %v2225 = vunpack.c.l.b16 %v1927
      %v2226 = vunpack.c.l.b16 %v1928
      %v2227 = vunpack.c.h.b16 %v1928
      %v2228 = vunpack.c.l.b16 %v1929
      %v2229 = vunpack.c.h.b16 %v1929
      %v2230 = vunpack.c.l.b16 %v1930
      %v2231 = vunpack.c.l.b16 %v1931
      %v2232 = vunpack.c.h.b16 %v1931
      %v2233 = vunpack.c.l.b16 %v1932
      %v2234 = vunpack.c.h.b16 %v1932
      %v2235 = vunpack.c.l.b16 %v1933
      %v2236 = vunpack.c.l.b16 %v1934
      %v2237 = vunpack.c.h.b16 %v1934
      %v2238 = vunpack.c.l.b16 %v1935
      %v2239 = vunpack.c.h.b16 %v1935
      %v2240 = vunpack.c.l.b16 %v1936
      %v2241 = vunpack.c.l.b16 %v1937
      %v2242 = vunpack.c.h.b16 %v1937
      %v2243 = vunpack.c.l.b16 %v1938
      %v2244 = vunpack.c.h.b16 %v1938
      %v2245 = vunpack.c.l.b16 %v1939
      %v2246 = vunpack.c.l.b16 %v1940
      %v2247 = vunpack.c.h.b16 %v1940
      %v2248 = vunpack.c.l.b16 %v1941
      %v2249 = vunpack.c.h.b16 %v1941
      %v2250 = vunpack.c.l.b16 %v1942
      %v2251 = vunpack.c.l.b16 %v1943
      %v2252 = vunpack.c.h.b16 %v1943
      %v2253 = vunpack.c.l.b16 %v1944
      %v2254 = vunpack.c.h.b16 %v1944
      %v2255 = vunpack.c.l.b16 %v1945
      %v2256 = vunpack.c.l.b16 %v1946
      %v2257 = vunpack.c.h.b16 %v1946
      %v2258 = vunpack.c.l.b16 %v1947
      %v2259 = vunpack.c.h.b16 %v1947
      %v2260 = vunpack.c.l.b16 %v1948
      %v2261 = vunpack.c.l.b16 %v1949
      %v2262 = vunpack.c.h.b16 %v1949
      %v2263 = vunpack.c.l.b16 %v1950
      %v2264 = vunpack.c.h.b16 %v1950
      %v2265 = vunpack.c.l.b16 %v1951
      %v2266 = vunpack.c.l.b16 %v1952
      %v2267 = vunpack.c.h.b16 %v1952
      %v2268 = vunpack.c.l.b16 %v1953
      %v2269 = vunpack.c.h.b16 %v1953
      %v2270 = vunpack.c.l.b16 %v1954
      %v2271 = vunpack.c.l.b16 %v1955
      %v2272 = vunpack.c.h.b16 %v1955
      %v2273 = vunpack.c.l.b16 %v1956
      %v2274 = vunpack.c.h.b16 %v1956
      %v2275 = vunpack.c.l.b16 %v1957
      %v2276 = vunpack.c.l.b16 %v1958
      %v2277 = vunpack.c.h.b16 %v1958
      %v2278 = vunpack.c.l.b16 %v1959
      %v2279 = vunpack.c.h.b16 %v1959
      %v2280 = vunpack.c.l.b16 %v1960
      %v2281 = vunpack.c.l.b16 %v1961
      %v2282 = vunpack.c.h.b16 %v1961
      %v2283 = vunpack.c.l.b16 %v1962
      %v2284 = vunpack.c.h.b16 %v1962
      %v2285 = vunpack.c.l.b16 %v1963
      %v2286 = vunpack.c.l.b16 %v1964
      %v2287 = vunpack.c.h.b16 %v1964
      %v2288 = vunpack.c.l.b16 %v1965
      %v2289 = vunpack.c.h.b16 %v1965
      %v2290 = vunpack.c.l.b16 %v1966
      %v2291 = vunpack.c.l.b16 %v1967
      %v2292 = vunpack.c.h.b16 %v1967
      %v2293 = vunpack.c.l.b16 %v1968
      %v2294 = vunpack.c.h.b16 %v1968
      %v2295 = vunpack.c.l.b16 %v1969
      %v2296 = vunpack.c.l.b16 %v1970
      %v2297 = vunpack.c.h.b16 %v1970
      %v2298 = vunpack.c.l.b16 %v1971
      %v2299 = vunpack.c.h.b16 %v1971
      %v2300 = vunpack.c.l.b16 %v1972
      %v2301 = vpack.c.b16 %v2146, %v2141
      %v2302 = vpack.c.b16 %v2147, %v2142
      %v2303 = vpack.c.b16 %v2148, %v2143
      %v2304 = vpack.c.b16 %v2149, %v2144
      %v2305 = vpack.c.b16 %v2150, %v2145
      %v2306 = vpack.c.b16 %v2156, %v2151
      %v2307 = vpack.c.b16 %v2157, %v2152
      %v2308 = vpack.c.b16 %v2158, %v2153
      %v2309 = vpack.c.b16 %v2159, %v2154
      %v2310 = vpack.c.b16 %v2160, %v2155
      %v2311 = vpack.c.b16 %v2166, %v2161
      %v2312 = vpack.c.b16 %v2167, %v2162
      %v2313 = vpack.c.b16 %v2168, %v2163
      %v2314 = vpack.c.b16 %v2169, %v2164
      %v2315 = vpack.c.b16 %v2170, %v2165
      %v2316 = vpack.c.b16 %v2176, %v2171
      %v2317 = vpack.c.b16 %v2177, %v2172
      %v2318 = vpack.c.b16 %v2178, %v2173
      %v2319 = vpack.c.b16 %v2179, %v2174
      %v2320 = vpack.c.b16 %v2180, %v2175
      %v2321 = vpack.c.b16 %v2186, %v2181
      %v2322 = vpack.c.b16 %v2187, %v2182
      %v2323 = vpack.c.b16 %v2188, %v2183
      %v2324 = vpack.c.b16 %v2189, %v2184
      %v2325 = vpack.c.b16 %v2190, %v2185
      %v2326 = vpack.c.b16 %v2196, %v2191
      %v2327 = vpack.c.b16 %v2197, %v2192
      %v2328 = vpack.c.b16 %v2198, %v2193
      %v2329 = vpack.c.b16 %v2199, %v2194
      %v2330 = vpack.c.b16 %v2200, %v2195
      %v2331 = vpack.c.b16 %v2206, %v2201
      %v2332 = vpack.c.b16 %v2207, %v2202
      %v2333 = vpack.c.b16 %v2208, %v2203
      %v2334 = vpack.c.b16 %v2209, %v2204
      %v2335 = vpack.c.b16 %v2210, %v2205
      %v2336 = vpack.c.b16 %v2216, %v2211
      %v2337 = vpack.c.b16 %v2217, %v2212
      %v2338 = vpack.c.b16 %v2218, %v2213
      %v2339 = vpack.c.b16 %v2219, %v2214
      %v2340 = vpack.c.b16 %v2220, %v2215
      %v2341 = vpack.c.b16 %v2226, %v2221
      %v2342 = vpack.c.b16 %v2227, %v2222
      %v2343 = vpack.c.b16 %v2228, %v2223
      %v2344 = vpack.c.b16 %v2229, %v2224
      %v2345 = vpack.c.b16 %v2230, %v2225
      %v2346 = vpack.c.b16 %v2236, %v2231
      %v2347 = vpack.c.b16 %v2237, %v2232
      %v2348 = vpack.c.b16 %v2238, %v2233
      %v2349 = vpack.c.b16 %v2239, %v2234
      %v2350 = vpack.c.b16 %v2240, %v2235
      %v2351 = vpack.c.b16 %v2246, %v2241
      %v2352 = vpack.c.b16 %v2247, %v2242
      %v2353 = vpack.c.b16 %v2248, %v2243
      %v2354 = vpack.c.b16 %v2249, %v2244
      %v2355 = vpack.c.b16 %v2250, %v2245
      %v2356 = vpack.c.b16 %v2256, %v2251
      %v2357 = vpack.c.b16 %v2257, %v2252
      %v2358 = vpack.c.b16 %v2258, %v2253
      %v2359 = vpack.c.b16 %v2259, %v2254
      %v2360 = vpack.c.b16 %v2260, %v2255
      %v2361 = vpack.c.b16 %v2266, %v2261
      %v2362 = vpack.c.b16 %v2267, %v2262
      %v2363 = vpack.c.b16 %v2268, %v2263
      %v2364 = vpack.c.b16 %v2269, %v2264
      %v2365 = vpack.c.b16 %v2270, %v2265
      %v2366 = vpack.c.b16 %v2276, %v2271
      %v2367 = vpack.c.b16 %v2277, %v2272
      %v2368 = vpack.c.b16 %v2278, %v2273
      %v2369 = vpack.c.b16 %v2279, %v2274
      %v2370 = vpack.c.b16 %v2280, %v2275
      %v2371 = vpack.c.b16 %v2286, %v2281
      %v2372 = vpack.c.b16 %v2287, %v2282
      %v2373 = vpack.c.b16 %v2288, %v2283
      %v2374 = vpack.c.b16 %v2289, %v2284
      %v2375 = vpack.c.b16 %v2290, %v2285
      %v2376 = vpack.c.b16 %v2296, %v2291
      %v2377 = vpack.c.b16 %v2297, %v2292
      %v2378 = vpack.c.b16 %v2298, %v2293
      %v2379 = vpack.c.b16 %v2299, %v2294
      %v2380 = vpack.c.b16 %v2300, %v2295
      %v2517 = vunpack.c.l.b16 %v1973
      %v2518 = vunpack.c.l.b16 %v1974
      %v2519 = vunpack.c.l.b16 %v1975
      %v2520 = vunpack.c.l.b16 %v1976
      %v2521 = vunpack.c.l.b16 %v1977
      %v2522 = vunpack.c.l.b16 %v1978
      %v2523 = vunpack.c.l.b16 %v1979
      %v2524 = vunpack.c.l.b16 %v1980
      %v2525 = vunpack.c.l.b16 %v1981
      %v2526 = vunpack.c.l.b16 %v1982
      %v2527 = vunpack.c.l.b16 %v1983
      %v2528 = vunpack.c.l.b16 %v1984
      %v2529 = vunpack.c.l.b16 %v1985
      %v2530 = vunpack.c.l.b16 %v1986
      %v2531 = vunpack.c.l.b16 %v1987
      %v2532 = vunpack.c.l.b16 %v1988
      %v2533 = vunpack.c.l.b16 %v1989
      %v2534 = vunpack.c.l.b16 %v1990
      %v2535 = vunpack.c.l.b16 %v1991
      %v2536 = vunpack.c.l.b16 %v1992
      %v2537 = vunpack.c.l.b16 %v1993
      %v2538 = vunpack.c.l.b16 %v1994
      %v2539 = vunpack.c.l.b16 %v1995
      %v2540 = vunpack.c.l.b16 %v1996
      %v2541 = vunpack.c.l.b16 %v1997
      %v2542 = vunpack.c.l.b16 %v1998
      %v2543 = vunpack.c.l.b16 %v1999
      %v2544 = vunpack.c.l.b16 %v2000
      %v2545 = vunpack.c.l.b16 %v2001
      %v2546 = vunpack.c.l.b16 %v2002
      %v2547 = vunpack.c.l.b16 %v2003
      %v2548 = vunpack.c.l.b16 %v2004
      %v2549 = vunpack.c.l.b16 %v2005
      %v2550 = vunpack.c.l.b16 %v2006
      %v2551 = vunpack.c.l.b16 %v2007
      %v2552 = vunpack.c.l.b16 %v2008
      %v2553 = vunpack.c.l.b16 %v2009
      %v2554 = vunpack.c.l.b16 %v2010
      %v2555 = vunpack.c.l.b16 %v2011
      %v2556 = vunpack.c.l.b16 %v2012
      %v2557 = vunpack.c.l.b16 %v2013
      %v2558 = vunpack.c.l.b16 %v2014
      %v2559 = vunpack.c.l.b16 %v2015
      %v2560 = vunpack.c.l.b16 %v2016
      %v2561 = vunpack.c.l.b16 %v2017
      %v2562 = vunpack.c.l.b16 %v2018
      %v2563 = vunpack.c.l.b16 %v2019
      %v2564 = vunpack.c.l.b16 %v2020
      %v2565 = vunpack.c.l.b16 %v2021
      %v2566 = vunpack.c.l.b16 %v2022
      %v2567 = vunpack.c.l.b16 %v2023
      %v2568 = vunpack.c.l.b16 %v2024
      %v2569 = vunpack.c.l.b16 %v2025
      %v2570 = vunpack.c.l.b16 %v2026
      %v2571 = vunpack.c.l.b16 %v2027
      %v2572 = vunpack.c.l.b16 %v2028
      %v2573 = vunpack.c.l.b16 %v2029
      %v2574 = vunpack.c.l.b16 %v2030
      %v2575 = vunpack.c.l.b16 %v2031
      %v2576 = vunpack.c.l.b16 %v2032
      %v2577 = vunpack.c.l.b16 %v2033
      %v2578 = vunpack.c.l.b16 %v2034
      %v2579 = vunpack.c.l.b16 %v2035
      %v2580 = vunpack.c.l.b16 %v2036
      %v2581 = vunpack.c.l.b16 %v2037
      %v2582 = vunpack.c.l.b16 %v2038
      %v2583 = vunpack.c.l.b16 %v2039
      %v2584 = vunpack.c.l.b16 %v2040
      %v2585 = vunpack.c.l.b16 %v2041
      %v2586 = vunpack.c.l.b16 %v2042
      %v2587 = vunpack.c.l.b16 %v2043
      %v2588 = vunpack.c.l.b16 %v2044
      %v2589 = vpack.c.b16 %v2518, %v2517
      %v2590 = vpack.c.b16 %v2520, %v2519
      %v2591 = vpack.c.b16 %v2522, %v2521
      %v2592 = vpack.c.b16 %v2524, %v2523
      %v2593 = vpack.c.b16 %v2526, %v2525
      %v2594 = vpack.c.b16 %v2528, %v2527
      %v2595 = vpack.c.b16 %v2530, %v2529
      %v2596 = vpack.c.b16 %v2532, %v2531
      %v2597 = vpack.c.b16 %v2534, %v2533
      %v2598 = vpack.c.b16 %v2536, %v2535
      %v2599 = vpack.c.b16 %v2538, %v2537
      %v2600 = vpack.c.b16 %v2540, %v2539
      %v2601 = vpack.c.b16 %v2542, %v2541
      %v2602 = vpack.c.b16 %v2544, %v2543
      %v2603 = vpack.c.b16 %v2546, %v2545
      %v2604 = vpack.c.b16 %v2548, %v2547
      %v2605 = vpack.c.b16 %v2550, %v2549
      %v2606 = vpack.c.b16 %v2552, %v2551
      %v2607 = vpack.c.b16 %v2554, %v2553
      %v2608 = vpack.c.b16 %v2556, %v2555
      %v2609 = vpack.c.b16 %v2558, %v2557
      %v2610 = vpack.c.b16 %v2560, %v2559
      %v2611 = vpack.c.b16 %v2562, %v2561
      %v2612 = vpack.c.b16 %v2564, %v2563
      %v2613 = vpack.c.b16 %v2566, %v2565
      %v2614 = vpack.c.b16 %v2568, %v2567
      %v2615 = vpack.c.b16 %v2570, %v2569
      %v2616 = vpack.c.b16 %v2572, %v2571
      %v2617 = vpack.c.b16 %v2574, %v2573
      %v2618 = vpack.c.b16 %v2576, %v2575
      %v2619 = vpack.c.b16 %v2578, %v2577
      %v2620 = vpack.c.b16 %v2580, %v2579
      %v2621 = vpack.c.b16 %v2582, %v2581
      %v2622 = vpack.c.b16 %v2584, %v2583
      %v2623 = vpack.c.b16 %v2586, %v2585
      %v2624 = vpack.c.b16 %v2588, %v2587
      %v2662 = vsel %vm365, %v2305, 0
      %v2665 = vsel %vm365, %v2310, 0
      %v2668 = vsel %vm365, %v2315, 0
      %v2671 = vsel %vm365, %v2320, 0
      %v2674 = vsel %vm365, %v2325, 0
      %v2677 = vsel %vm365, %v2330, 0
      %v2680 = vsel %vm365, %v2335, 0
      %v2683 = vsel %vm365, %v2340, 0
      %v2686 = vsel %vm365, %v2345, 0
      %v2689 = vsel %vm365, %v2350, 0
      %v2692 = vsel %vm365, %v2355, 0
      %v2695 = vsel %vm365, %v2360, 0
      %v2698 = vsel %vm365, %v2365, 0
      %v2701 = vsel %vm365, %v2370, 0
      %v2704 = vsel %vm365, %v2375, 0
      %v2707 = vsel %vm365, %v2380, 0
      %2709 = vmatpush.bf16.msra.mxu0 %v2596
      %2710 = vmatpush.bf16.msra.mxu0 %v2595
      %2711 = vmatpush.bf16.msra.mxu0 %v2594
      %2712 = vmatpush.bf16.msra.mxu0 %v2593
      %2713 = vmatpush.bf16.msra.mxu0 %v2592
      %2714 = vmatpush.bf16.msra.mxu0 %v2591
      %2715 = vmatpush.bf16.msra.mxu0 %v2590
      %2716 = vmatpush.bf16.msra.mxu0 %v2589
      %2717 = vmatmul.bf16.gmra.mxu0 %v2301
      %v2718 = vpop.f32.mrf.mxu0
      %v2719 = vadd.f32 0.0, %v2718
      %v2720 = vpop.f32.mrf.mxu0
      %v2721 = vadd.f32 0.0, %v2720
      %2722 = vmatmul.bf16.gmra.mxu0 %v2306
      %v2723 = vpop.f32.mrf.mxu0
      %v2724 = vadd.f32 0.0, %v2723
      %v2725 = vpop.f32.mrf.mxu0
      %v2726 = vadd.f32 0.0, %v2725
      %2727 = vmatmul.bf16.gmra.mxu0 %v2311
      %v2728 = vpop.f32.mrf.mxu0
      %v2729 = vadd.f32 0.0, %v2728
      %v2730 = vpop.f32.mrf.mxu0
      %v2731 = vadd.f32 0.0, %v2730
      %2732 = vmatmul.bf16.gmra.mxu0 %v2316
      %v2733 = vpop.f32.mrf.mxu0
      %v2734 = vadd.f32 0.0, %v2733
      %v2735 = vpop.f32.mrf.mxu0
      %v2736 = vadd.f32 0.0, %v2735
      %2737 = vmatmul.bf16.gmra.mxu0 %v2321
      %v2738 = vpop.f32.mrf.mxu0
      %v2739 = vadd.f32 0.0, %v2738
      %v2740 = vpop.f32.mrf.mxu0
      %v2741 = vadd.f32 0.0, %v2740
      %2742 = vmatmul.bf16.gmra.mxu0 %v2326
      %v2743 = vpop.f32.mrf.mxu0
      %v2744 = vadd.f32 0.0, %v2743
      %v2745 = vpop.f32.mrf.mxu0
      %v2746 = vadd.f32 0.0, %v2745
      %2747 = vmatmul.bf16.gmra.mxu0 %v2331
      %v2748 = vpop.f32.mrf.mxu0
      %v2749 = vadd.f32 0.0, %v2748
      %v2750 = vpop.f32.mrf.mxu0
      %v2751 = vadd.f32 0.0, %v2750
      %2752 = vmatmul.bf16.gmra.mxu0 %v2336
      %v2753 = vpop.f32.mrf.mxu0
      %v2754 = vadd.f32 0.0, %v2753
      %v2755 = vpop.f32.mrf.mxu0
      %v2756 = vadd.f32 0.0, %v2755
      %2757 = vmatmul.bf16.gmra.mxu0 %v2341
      %v2758 = vpop.f32.mrf.mxu0
      %v2759 = vadd.f32 0.0, %v2758
      %v2760 = vpop.f32.mrf.mxu0
      %v2761 = vadd.f32 0.0, %v2760
      %2762 = vmatmul.bf16.gmra.mxu0 %v2346
      %v2763 = vpop.f32.mrf.mxu0
      %v2764 = vadd.f32 0.0, %v2763
      %v2765 = vpop.f32.mrf.mxu0
      %v2766 = vadd.f32 0.0, %v2765
      %2767 = vmatmul.bf16.gmra.mxu0 %v2351
      %v2768 = vpop.f32.mrf.mxu0
      %v2769 = vadd.f32 0.0, %v2768
      %v2770 = vpop.f32.mrf.mxu0
      %v2771 = vadd.f32 0.0, %v2770
      %2772 = vmatmul.bf16.gmra.mxu0 %v2356
      %v2773 = vpop.f32.mrf.mxu0
      %v2774 = vadd.f32 0.0, %v2773
      %v2775 = vpop.f32.mrf.mxu0
      %v2776 = vadd.f32 0.0, %v2775
      %2777 = vmatmul.bf16.gmra.mxu0 %v2361
      %v2778 = vpop.f32.mrf.mxu0
      %v2779 = vadd.f32 0.0, %v2778
      %v2780 = vpop.f32.mrf.mxu0
      %v2781 = vadd.f32 0.0, %v2780
      %2782 = vmatmul.bf16.gmra.mxu0 %v2366
      %v2783 = vpop.f32.mrf.mxu0
      %v2784 = vadd.f32 0.0, %v2783
      %v2785 = vpop.f32.mrf.mxu0
      %v2786 = vadd.f32 0.0, %v2785
      %2787 = vmatmul.bf16.gmra.mxu0 %v2371
      %v2788 = vpop.f32.mrf.mxu0
      %v2789 = vadd.f32 0.0, %v2788
      %v2790 = vpop.f32.mrf.mxu0
      %v2791 = vadd.f32 0.0, %v2790
      %2792 = vmatmul.bf16.gmra.mxu0 %v2376
      %v2793 = vpop.f32.mrf.mxu0
      %v2794 = vadd.f32 0.0, %v2793
      %v2795 = vpop.f32.mrf.mxu0
      %v2796 = vadd.f32 0.0, %v2795
      %2797 = vdwg.mxu0
      %2798 = vmatpush.bf16.msra.mxu0 %v2604
      %2799 = vmatpush.bf16.msra.mxu0 %v2603
      %2800 = vmatpush.bf16.msra.mxu0 %v2602
      %2801 = vmatpush.bf16.msra.mxu0 %v2601
      %2802 = vmatpush.bf16.msra.mxu0 %v2600
      %2803 = vmatpush.bf16.msra.mxu0 %v2599
      %2804 = vmatpush.bf16.msra.mxu0 %v2598
      %2805 = vmatpush.bf16.msra.mxu0 %v2597
      %2806 = vmatmul.bf16.gmra.mxu0 %v2302
      %v2807 = vpop.f32.mrf.mxu0
      %v2808 = vadd.f32 %v2719, %v2807
      %v2809 = vpop.f32.mrf.mxu0
      %v2810 = vadd.f32 %v2721, %v2809
      %2811 = vmatmul.bf16.gmra.mxu0 %v2307
      %v2812 = vpop.f32.mrf.mxu0
      %v2813 = vadd.f32 %v2724, %v2812
      %v2814 = vpop.f32.mrf.mxu0
      %v2815 = vadd.f32 %v2726, %v2814
      %2816 = vmatmul.bf16.gmra.mxu0 %v2312
      %v2817 = vpop.f32.mrf.mxu0
      %v2818 = vadd.f32 %v2729, %v2817
      %v2819 = vpop.f32.mrf.mxu0
      %v2820 = vadd.f32 %v2731, %v2819
      %2821 = vmatmul.bf16.gmra.mxu0 %v2317
      %v2822 = vpop.f32.mrf.mxu0
      %v2823 = vadd.f32 %v2734, %v2822
      %v2824 = vpop.f32.mrf.mxu0
      %v2825 = vadd.f32 %v2736, %v2824
      %2826 = vmatmul.bf16.gmra.mxu0 %v2322
      %v2827 = vpop.f32.mrf.mxu0
      %v2828 = vadd.f32 %v2739, %v2827
      %v2829 = vpop.f32.mrf.mxu0
      %v2830 = vadd.f32 %v2741, %v2829
      %2831 = vmatmul.bf16.gmra.mxu0 %v2327
      %v2832 = vpop.f32.mrf.mxu0
      %v2833 = vadd.f32 %v2744, %v2832
      %v2834 = vpop.f32.mrf.mxu0
      %v2835 = vadd.f32 %v2746, %v2834
      %2836 = vmatmul.bf16.gmra.mxu0 %v2332
      %v2837 = vpop.f32.mrf.mxu0
      %v2838 = vadd.f32 %v2749, %v2837
      %v2839 = vpop.f32.mrf.mxu0
      %v2840 = vadd.f32 %v2751, %v2839
      %2841 = vmatmul.bf16.gmra.mxu0 %v2337
      %v2842 = vpop.f32.mrf.mxu0
      %v2843 = vadd.f32 %v2754, %v2842
      %v2844 = vpop.f32.mrf.mxu0
      %v2845 = vadd.f32 %v2756, %v2844
      %2846 = vmatmul.bf16.gmra.mxu0 %v2342
      %v2847 = vpop.f32.mrf.mxu0
      %v2848 = vadd.f32 %v2759, %v2847
      %v2849 = vpop.f32.mrf.mxu0
      %v2850 = vadd.f32 %v2761, %v2849
      %2851 = vmatmul.bf16.gmra.mxu0 %v2347
      %v2852 = vpop.f32.mrf.mxu0
      %v2853 = vadd.f32 %v2764, %v2852
      %v2854 = vpop.f32.mrf.mxu0
      %v2855 = vadd.f32 %v2766, %v2854
      %2856 = vmatmul.bf16.gmra.mxu0 %v2352
      %v2857 = vpop.f32.mrf.mxu0
      %v2858 = vadd.f32 %v2769, %v2857
      %v2859 = vpop.f32.mrf.mxu0
      %v2860 = vadd.f32 %v2771, %v2859
      %2861 = vmatmul.bf16.gmra.mxu0 %v2357
      %v2862 = vpop.f32.mrf.mxu0
      %v2863 = vadd.f32 %v2774, %v2862
      %v2864 = vpop.f32.mrf.mxu0
      %v2865 = vadd.f32 %v2776, %v2864
      %2866 = vmatmul.bf16.gmra.mxu0 %v2362
      %v2867 = vpop.f32.mrf.mxu0
      %v2868 = vadd.f32 %v2779, %v2867
      %v2869 = vpop.f32.mrf.mxu0
      %v2870 = vadd.f32 %v2781, %v2869
      %2871 = vmatmul.bf16.gmra.mxu0 %v2367
      %v2872 = vpop.f32.mrf.mxu0
      %v2873 = vadd.f32 %v2784, %v2872
      %v2874 = vpop.f32.mrf.mxu0
      %v2875 = vadd.f32 %v2786, %v2874
      %2876 = vmatmul.bf16.gmra.mxu0 %v2372
      %v2877 = vpop.f32.mrf.mxu0
      %v2878 = vadd.f32 %v2789, %v2877
      %v2879 = vpop.f32.mrf.mxu0
      %v2880 = vadd.f32 %v2791, %v2879
      %2881 = vmatmul.bf16.gmra.mxu0 %v2377
      %v2882 = vpop.f32.mrf.mxu0
      %v2883 = vadd.f32 %v2794, %v2882
      %v2884 = vpop.f32.mrf.mxu0
      %v2885 = vadd.f32 %v2796, %v2884
      %2886 = vdwg.mxu0
      %2887 = vmatpush.bf16.msra.mxu0 %v2612
      %2888 = vmatpush.bf16.msra.mxu0 %v2611
      %2889 = vmatpush.bf16.msra.mxu0 %v2610
      %2890 = vmatpush.bf16.msra.mxu0 %v2609
      %2891 = vmatpush.bf16.msra.mxu0 %v2608
      %2892 = vmatpush.bf16.msra.mxu0 %v2607
      %2893 = vmatpush.bf16.msra.mxu0 %v2606
      %2894 = vmatpush.bf16.msra.mxu0 %v2605
      %2895 = vmatmul.bf16.gmra.mxu0 %v2303
      %v2896 = vpop.f32.mrf.mxu0
      %v2897 = vadd.f32 %v2808, %v2896
      %v2898 = vpop.f32.mrf.mxu0
      %v2899 = vadd.f32 %v2810, %v2898
      %2900 = vmatmul.bf16.gmra.mxu0 %v2308
      %v2901 = vpop.f32.mrf.mxu0
      %v2902 = vadd.f32 %v2813, %v2901
      %v2903 = vpop.f32.mrf.mxu0
      %v2904 = vadd.f32 %v2815, %v2903
      %2905 = vmatmul.bf16.gmra.mxu0 %v2313
      %v2906 = vpop.f32.mrf.mxu0
      %v2907 = vadd.f32 %v2818, %v2906
      %v2908 = vpop.f32.mrf.mxu0
      %v2909 = vadd.f32 %v2820, %v2908
      %2910 = vmatmul.bf16.gmra.mxu0 %v2318
      %v2911 = vpop.f32.mrf.mxu0
      %v2912 = vadd.f32 %v2823, %v2911
      %v2913 = vpop.f32.mrf.mxu0
      %v2914 = vadd.f32 %v2825, %v2913
      %2915 = vmatmul.bf16.gmra.mxu0 %v2323
      %v2916 = vpop.f32.mrf.mxu0
      %v2917 = vadd.f32 %v2828, %v2916
      %v2918 = vpop.f32.mrf.mxu0
      %v2919 = vadd.f32 %v2830, %v2918
      %2920 = vmatmul.bf16.gmra.mxu0 %v2328
      %v2921 = vpop.f32.mrf.mxu0
      %v2922 = vadd.f32 %v2833, %v2921
      %v2923 = vpop.f32.mrf.mxu0
      %v2924 = vadd.f32 %v2835, %v2923
      %2925 = vmatmul.bf16.gmra.mxu0 %v2333
      %v2926 = vpop.f32.mrf.mxu0
      %v2927 = vadd.f32 %v2838, %v2926
      %v2928 = vpop.f32.mrf.mxu0
      %v2929 = vadd.f32 %v2840, %v2928
      %2930 = vmatmul.bf16.gmra.mxu0 %v2338
      %v2931 = vpop.f32.mrf.mxu0
      %v2932 = vadd.f32 %v2843, %v2931
      %v2933 = vpop.f32.mrf.mxu0
      %v2934 = vadd.f32 %v2845, %v2933
      %2935 = vmatmul.bf16.gmra.mxu0 %v2343
      %v2936 = vpop.f32.mrf.mxu0
      %v2937 = vadd.f32 %v2848, %v2936
      %v2938 = vpop.f32.mrf.mxu0
      %v2939 = vadd.f32 %v2850, %v2938
      %2940 = vmatmul.bf16.gmra.mxu0 %v2348
      %v2941 = vpop.f32.mrf.mxu0
      %v2942 = vadd.f32 %v2853, %v2941
      %v2943 = vpop.f32.mrf.mxu0
      %v2944 = vadd.f32 %v2855, %v2943
      %2945 = vmatmul.bf16.gmra.mxu0 %v2353
      %v2946 = vpop.f32.mrf.mxu0
      %v2947 = vadd.f32 %v2858, %v2946
      %v2948 = vpop.f32.mrf.mxu0
      %v2949 = vadd.f32 %v2860, %v2948
      %2950 = vmatmul.bf16.gmra.mxu0 %v2358
      %v2951 = vpop.f32.mrf.mxu0
      %v2952 = vadd.f32 %v2863, %v2951
      %v2953 = vpop.f32.mrf.mxu0
      %v2954 = vadd.f32 %v2865, %v2953
      %2955 = vmatmul.bf16.gmra.mxu0 %v2363
      %v2956 = vpop.f32.mrf.mxu0
      %v2957 = vadd.f32 %v2868, %v2956
      %v2958 = vpop.f32.mrf.mxu0
      %v2959 = vadd.f32 %v2870, %v2958
      %2960 = vmatmul.bf16.gmra.mxu0 %v2368
      %v2961 = vpop.f32.mrf.mxu0
      %v2962 = vadd.f32 %v2873, %v2961
      %v2963 = vpop.f32.mrf.mxu0
      %v2964 = vadd.f32 %v2875, %v2963
      %2965 = vmatmul.bf16.gmra.mxu0 %v2373
      %v2966 = vpop.f32.mrf.mxu0
      %v2967 = vadd.f32 %v2878, %v2966
      %v2968 = vpop.f32.mrf.mxu0
      %v2969 = vadd.f32 %v2880, %v2968
      %2970 = vmatmul.bf16.gmra.mxu0 %v2378
      %v2971 = vpop.f32.mrf.mxu0
      %v2972 = vadd.f32 %v2883, %v2971
      %v2973 = vpop.f32.mrf.mxu0
      %v2974 = vadd.f32 %v2885, %v2973
      %2975 = vdwg.mxu0
      %2976 = vmatpush.bf16.msra.mxu0 %v2620
      %2977 = vmatpush.bf16.msra.mxu0 %v2619
      %2978 = vmatpush.bf16.msra.mxu0 %v2618
      %2979 = vmatpush.bf16.msra.mxu0 %v2617
      %2980 = vmatpush.bf16.msra.mxu0 %v2616
      %2981 = vmatpush.bf16.msra.mxu0 %v2615
      %2982 = vmatpush.bf16.msra.mxu0 %v2614
      %2983 = vmatpush.bf16.msra.mxu0 %v2613
      %2984 = vmatmul.bf16.gmra.mxu0 %v2304
      %v2985 = vpop.f32.mrf.mxu0
      %v2986 = vadd.f32 %v2897, %v2985
      %v2987 = vpop.f32.mrf.mxu0
      %v2988 = vadd.f32 %v2899, %v2987
      %2989 = vmatmul.bf16.gmra.mxu0 %v2309
      %v2990 = vpop.f32.mrf.mxu0
      %v2991 = vadd.f32 %v2902, %v2990
      %v2992 = vpop.f32.mrf.mxu0
      %v2993 = vadd.f32 %v2904, %v2992
      %2994 = vmatmul.bf16.gmra.mxu0 %v2314
      %v2995 = vpop.f32.mrf.mxu0
      %v2996 = vadd.f32 %v2907, %v2995
      %v2997 = vpop.f32.mrf.mxu0
      %v2998 = vadd.f32 %v2909, %v2997
      %2999 = vmatmul.bf16.gmra.mxu0 %v2319
      %v3000 = vpop.f32.mrf.mxu0
      %v3001 = vadd.f32 %v2912, %v3000
      %v3002 = vpop.f32.mrf.mxu0
      %v3003 = vadd.f32 %v2914, %v3002
      %3004 = vmatmul.bf16.gmra.mxu0 %v2324
      %v3005 = vpop.f32.mrf.mxu0
      %v3006 = vadd.f32 %v2917, %v3005
      %v3007 = vpop.f32.mrf.mxu0
      %v3008 = vadd.f32 %v2919, %v3007
      %3009 = vmatmul.bf16.gmra.mxu0 %v2329
      %v3010 = vpop.f32.mrf.mxu0
      %v3011 = vadd.f32 %v2922, %v3010
      %v3012 = vpop.f32.mrf.mxu0
      %v3013 = vadd.f32 %v2924, %v3012
      %3014 = vmatmul.bf16.gmra.mxu0 %v2334
      %v3015 = vpop.f32.mrf.mxu0
      %v3016 = vadd.f32 %v2927, %v3015
      %v3017 = vpop.f32.mrf.mxu0
      %v3018 = vadd.f32 %v2929, %v3017
      %3019 = vmatmul.bf16.gmra.mxu0 %v2339
      %v3020 = vpop.f32.mrf.mxu0
      %v3021 = vadd.f32 %v2932, %v3020
      %v3022 = vpop.f32.mrf.mxu0
      %v3023 = vadd.f32 %v2934, %v3022
      %3024 = vmatmul.bf16.gmra.mxu0 %v2344
      %v3025 = vpop.f32.mrf.mxu0
      %v3026 = vadd.f32 %v2937, %v3025
      %v3027 = vpop.f32.mrf.mxu0
      %v3028 = vadd.f32 %v2939, %v3027
      %3029 = vmatmul.bf16.gmra.mxu0 %v2349
      %v3030 = vpop.f32.mrf.mxu0
      %v3031 = vadd.f32 %v2942, %v3030
      %v3032 = vpop.f32.mrf.mxu0
      %v3033 = vadd.f32 %v2944, %v3032
      %3034 = vmatmul.bf16.gmra.mxu0 %v2354
      %v3035 = vpop.f32.mrf.mxu0
      %v3036 = vadd.f32 %v2947, %v3035
      %v3037 = vpop.f32.mrf.mxu0
      %v3038 = vadd.f32 %v2949, %v3037
      %3039 = vmatmul.bf16.gmra.mxu0 %v2359
      %v3040 = vpop.f32.mrf.mxu0
      %v3041 = vadd.f32 %v2952, %v3040
      %v3042 = vpop.f32.mrf.mxu0
      %v3043 = vadd.f32 %v2954, %v3042
      %3044 = vmatmul.bf16.gmra.mxu0 %v2364
      %v3045 = vpop.f32.mrf.mxu0
      %v3046 = vadd.f32 %v2957, %v3045
      %v3047 = vpop.f32.mrf.mxu0
      %v3048 = vadd.f32 %v2959, %v3047
      %3049 = vmatmul.bf16.gmra.mxu0 %v2369
      %v3050 = vpop.f32.mrf.mxu0
      %v3051 = vadd.f32 %v2962, %v3050
      %v3052 = vpop.f32.mrf.mxu0
      %v3053 = vadd.f32 %v2964, %v3052
      %3054 = vmatmul.bf16.gmra.mxu0 %v2374
      %v3055 = vpop.f32.mrf.mxu0
      %v3056 = vadd.f32 %v2967, %v3055
      %v3057 = vpop.f32.mrf.mxu0
      %v3058 = vadd.f32 %v2969, %v3057
      %3059 = vmatmul.bf16.gmra.mxu0 %v2379
      %v3060 = vpop.f32.mrf.mxu0
      %v3061 = vadd.f32 %v2972, %v3060
      %v3062 = vpop.f32.mrf.mxu0
      %v3063 = vadd.f32 %v2974, %v3062
      %3064 = vdwg.mxu0
      %3065 = vmatpush.bf16.msra.mxu0 0
      %3066 = vmatpush.bf16.msra.mxu0 0
      %3067 = vmatpush.bf16.msra.mxu0 0
      %3068 = vmatpush.bf16.msra.mxu0 0
      %3069 = vmatpush.bf16.msra.mxu0 %v2624
      %3070 = vmatpush.bf16.msra.mxu0 %v2623
      %3071 = vmatpush.bf16.msra.mxu0 %v2622
      %3072 = vmatpush.bf16.msra.mxu0 %v2621
      %3073 = vmatmul.bf16.gmra.mxu0 %v2662
      %v3074 = vpop.f32.mrf.mxu0
      %v3075 = vadd.f32 %v2986, %v3074
      %v3076 = vpop.f32.mrf.mxu0
      %v3077 = vadd.f32 %v2988, %v3076
      %3078 = vmatmul.bf16.gmra.mxu0 %v2665
      %v3079 = vpop.f32.mrf.mxu0
      %v3080 = vadd.f32 %v2991, %v3079
      %v3081 = vpop.f32.mrf.mxu0
      %v3082 = vadd.f32 %v2993, %v3081
      %3083 = vmatmul.bf16.gmra.mxu0 %v2668
      %v3084 = vpop.f32.mrf.mxu0
      %v3085 = vadd.f32 %v2996, %v3084
      %v3086 = vpop.f32.mrf.mxu0
      %v3087 = vadd.f32 %v2998, %v3086
      %3088 = vmatmul.bf16.gmra.mxu0 %v2671
      %v3089 = vpop.f32.mrf.mxu0
      %v3090 = vadd.f32 %v3001, %v3089
      %v3091 = vpop.f32.mrf.mxu0
      %v3092 = vadd.f32 %v3003, %v3091
      %3093 = vmatmul.bf16.gmra.mxu0 %v2674
      %v3094 = vpop.f32.mrf.mxu0
      %v3095 = vadd.f32 %v3006, %v3094
      %v3096 = vpop.f32.mrf.mxu0
      %v3097 = vadd.f32 %v3008, %v3096
      %3098 = vmatmul.bf16.gmra.mxu0 %v2677
      %v3099 = vpop.f32.mrf.mxu0
      %v3100 = vadd.f32 %v3011, %v3099
      %v3101 = vpop.f32.mrf.mxu0
      %v3102 = vadd.f32 %v3013, %v3101
      %3103 = vmatmul.bf16.gmra.mxu0 %v2680
      %v3104 = vpop.f32.mrf.mxu0
      %v3105 = vadd.f32 %v3016, %v3104
      %v3106 = vpop.f32.mrf.mxu0
      %v3107 = vadd.f32 %v3018, %v3106
      %3108 = vmatmul.bf16.gmra.mxu0 %v2683
      %v3109 = vpop.f32.mrf.mxu0
      %v3110 = vadd.f32 %v3021, %v3109
      %v3111 = vpop.f32.mrf.mxu0
      %v3112 = vadd.f32 %v3023, %v3111
      %3113 = vmatmul.bf16.gmra.mxu0 %v2686
      %v3114 = vpop.f32.mrf.mxu0
      %v3115 = vadd.f32 %v3026, %v3114
      %v3116 = vpop.f32.mrf.mxu0
      %v3117 = vadd.f32 %v3028, %v3116
      %3118 = vmatmul.bf16.gmra.mxu0 %v2689
      %v3119 = vpop.f32.mrf.mxu0
      %v3120 = vadd.f32 %v3031, %v3119
      %v3121 = vpop.f32.mrf.mxu0
      %v3122 = vadd.f32 %v3033, %v3121
      %3123 = vmatmul.bf16.gmra.mxu0 %v2692
      %v3124 = vpop.f32.mrf.mxu0
      %v3125 = vadd.f32 %v3036, %v3124
      %v3126 = vpop.f32.mrf.mxu0
      %v3127 = vadd.f32 %v3038, %v3126
      %3128 = vmatmul.bf16.gmra.mxu0 %v2695
      %v3129 = vpop.f32.mrf.mxu0
      %v3130 = vadd.f32 %v3041, %v3129
      %v3131 = vpop.f32.mrf.mxu0
      %v3132 = vadd.f32 %v3043, %v3131
      %3133 = vmatmul.bf16.gmra.mxu0 %v2698
      %v3134 = vpop.f32.mrf.mxu0
      %v3135 = vadd.f32 %v3046, %v3134
      %v3136 = vpop.f32.mrf.mxu0
      %v3137 = vadd.f32 %v3048, %v3136
      %3138 = vmatmul.bf16.gmra.mxu0 %v2701
      %v3139 = vpop.f32.mrf.mxu0
      %v3140 = vadd.f32 %v3051, %v3139
      %v3141 = vpop.f32.mrf.mxu0
      %v3142 = vadd.f32 %v3053, %v3141
      %3143 = vmatmul.bf16.gmra.mxu0 %v2704
      %v3144 = vpop.f32.mrf.mxu0
      %v3145 = vadd.f32 %v3056, %v3144
      %v3146 = vpop.f32.mrf.mxu0
      %v3147 = vadd.f32 %v3058, %v3146
      %3148 = vmatmul.bf16.gmra.mxu0 %v2707
      %v3149 = vpop.f32.mrf.mxu0
      %v3150 = vadd.f32 %v3061, %v3149
      %v3151 = vpop.f32.mrf.mxu0
      %v3152 = vadd.f32 %v3063, %v3151
      %3153 = vdwg.mxu0
      %v3154 = vmax.f32 %v3075, 0.0
      %v3155 = vmax.f32 %v3077, 0.0
      %v3156 = vmax.f32 %v3080, 0.0
      %v3157 = vmax.f32 %v3082, 0.0
      %v3158 = vmax.f32 %v3085, 0.0
      %v3159 = vmax.f32 %v3087, 0.0
      %v3160 = vmax.f32 %v3090, 0.0
      %v3161 = vmax.f32 %v3092, 0.0
      %v3162 = vmax.f32 %v3095, 0.0
      %v3163 = vmax.f32 %v3097, 0.0
      %v3164 = vmax.f32 %v3100, 0.0
      %v3165 = vmax.f32 %v3102, 0.0
      %v3166 = vmax.f32 %v3105, 0.0
      %v3167 = vmax.f32 %v3107, 0.0
      %v3168 = vmax.f32 %v3110, 0.0
      %v3169 = vmax.f32 %v3112, 0.0
      %v3170 = vmax.f32 %v3115, 0.0
      %v3171 = vmax.f32 %v3117, 0.0
      %v3172 = vmax.f32 %v3120, 0.0
      %v3173 = vmax.f32 %v3122, 0.0
      %v3174 = vmax.f32 %v3125, 0.0
      %v3175 = vmax.f32 %v3127, 0.0
      %v3176 = vmax.f32 %v3130, 0.0
      %v3177 = vmax.f32 %v3132, 0.0
      %v3178 = vmax.f32 %v3135, 0.0
      %v3179 = vmax.f32 %v3137, 0.0
      %v3180 = vmax.f32 %v3140, 0.0
      %v3181 = vmax.f32 %v3142, 0.0
      %v3182 = vmax.f32 %v3145, 0.0
      %v3183 = vmax.f32 %v3147, 0.0
      %v3184 = vmax.f32 %v3150, 0.0
      %v3185 = vmax.f32 %v3152, 0.0
      %3186 = vst.msk [vmem:[%s465 + $0x1] sm:$0xff] %vm365, %v3154
      %3187 = vst.msk [vmem:[%s465 + $0x11] sm:$0xff] %vm365, %v3155
      %3188 = vst.msk [vmem:[%s465 + $0x21] sm:$0xff] %vm365, %v3156
      %3189 = vst.msk [vmem:[%s465 + $0x31] sm:$0xff] %vm365, %v3157
      %3190 = vst.msk [vmem:[%s465 + $0x41] sm:$0xff] %vm365, %v3158
      %3191 = vst.msk [vmem:[%s465 + $0x51] sm:$0xff] %vm365, %v3159
      %3192 = vst.msk [vmem:[%s465 + $0x61] sm:$0xff] %vm365, %v3160
      %3193 = vst.msk [vmem:[%s465 + $0x71] sm:$0xff] %vm365, %v3161
      %3194 = vst.msk [vmem:[%s465 + $0xa1] sm:$0xff] %vm365, %v3162
      %3195 = vst.msk [vmem:[%s465 + $0xb1] sm:$0xff] %vm365, %v3163
      %3196 = vst.msk [vmem:[%s465 + $0xc1] sm:$0xff] %vm365, %v3164
      %3197 = vst.msk [vmem:[%s465 + $0xd1] sm:$0xff] %vm365, %v3165
      %3198 = vst.msk [vmem:[%s465 + $0xe1] sm:$0xff] %vm365, %v3166
      %3199 = vst.msk [vmem:[%s465 + $0xf1] sm:$0xff] %vm365, %v3167
      %3200 = vst.msk [vmem:[%s465 + $0x101] sm:$0xff] %vm365, %v3168
      %3201 = vst.msk [vmem:[%s465 + $0x111] sm:$0xff] %vm365, %v3169
      %3202 = vst.msk [vmem:[%s465 + $0x141] sm:$0xff] %vm365, %v3170
      %3203 = vst.msk [vmem:[%s465 + $0x151] sm:$0xff] %vm365, %v3171
      %3204 = vst.msk [vmem:[%s465 + $0x161] sm:$0xff] %vm365, %v3172
      %3205 = vst.msk [vmem:[%s465 + $0x171] sm:$0xff] %vm365, %v3173
      %3206 = vst.msk [vmem:[%s465 + $0x181] sm:$0xff] %vm365, %v3174
      %3207 = vst.msk [vmem:[%s465 + $0x191] sm:$0xff] %vm365, %v3175
      %3208 = vst.msk [vmem:[%s465 + $0x1a1] sm:$0xff] %vm365, %v3176
      %3209 = vst.msk [vmem:[%s465 + $0x1b1] sm:$0xff] %vm365, %v3177
      %3210 = vst.msk [vmem:[%s465 + $0x1e1] sm:$0xff] %vm365, %v3178
      %3211 = vst.msk [vmem:[%s465 + $0x1f1] sm:$0xff] %vm365, %v3179
      %3212 = vst.msk [vmem:[%s465 + $0x201] sm:$0xff] %vm365, %v3180
      %3213 = vst.msk [vmem:[%s465 + $0x211] sm:$0xff] %vm365, %v3181
      %3214 = vst.msk [vmem:[%s465 + $0x221] sm:$0xff] %vm365, %v3182
      %3215 = vst.msk [vmem:[%s465 + $0x231] sm:$0xff] %vm365, %v3183
      %3216 = vst.msk [vmem:[%s465 + $0x241] sm:$0xff] %vm365, %v3184
      %3217 = vst.msk [vmem:[%s465 + $0x251] sm:$0xff] %vm365, %v3185
      %v3218 = vld [vmem:[#allocation2] sm:$0xff]
      %v3219 = vld [vmem:[#allocation2 + $0x10] sm:$0xff]
      %v3220 = vld [vmem:[#allocation2 + $0x20] sm:$0xff]
      %v3221 = vld [vmem:[#allocation2 + $0x30] sm:$0xff]
      %v3222 = vld [vmem:[#allocation2 + $0x40] sm:$0xff]
      %v3223 = vld [vmem:[#allocation2 + $0x50] sm:$0xff]
      %v3224 = vld [vmem:[#allocation2 + $0x60] sm:$0xff]
      %v3225 = vld [vmem:[#allocation2 + $0x70] sm:$0xff]
      %v3226 = vld [vmem:[#allocation2 + $0xa0] sm:$0xff]
      %v3227 = vld [vmem:[#allocation2 + $0xb0] sm:$0xff]
      %v3228 = vld [vmem:[#allocation2 + $0xc0] sm:$0xff]
      %v3229 = vld [vmem:[#allocation2 + $0xd0] sm:$0xff]
      %v3230 = vld [vmem:[#allocation2 + $0xe0] sm:$0xff]
      %v3231 = vld [vmem:[#allocation2 + $0xf0] sm:$0xff]
      %v3232 = vld [vmem:[#allocation2 + $0x100] sm:$0xff]
      %v3233 = vld [vmem:[#allocation2 + $0x110] sm:$0xff]
      %v3234 = vld [vmem:[#allocation2 + $0x140] sm:$0xff]
      %v3235 = vld [vmem:[#allocation2 + $0x150] sm:$0xff]
      %v3236 = vld [vmem:[#allocation2 + $0x160] sm:$0xff]
      %v3237 = vld [vmem:[#allocation2 + $0x170] sm:$0xff]
      %v3238 = vld [vmem:[#allocation2 + $0x180] sm:$0xff]
      %v3239 = vld [vmem:[#allocation2 + $0x190] sm:$0xff]
      %v3240 = vld [vmem:[#allocation2 + $0x1a0] sm:$0xff]
      %v3241 = vld [vmem:[#allocation2 + $0x1b0] sm:$0xff]
      %v3242 = vld [vmem:[#allocation2 + $0x1e0] sm:$0xff]
      %v3243 = vld [vmem:[#allocation2 + $0x1f0] sm:$0xff]
      %v3244 = vld [vmem:[#allocation2 + $0x200] sm:$0xff]
      %v3245 = vld [vmem:[#allocation2 + $0x210] sm:$0xff]
      %v3246 = vld [vmem:[#allocation2 + $0x220] sm:$0xff]
      %v3247 = vld [vmem:[#allocation2 + $0x230] sm:$0xff]
      %v3248 = vld [vmem:[#allocation2 + $0x240] sm:$0xff]
      %v3249 = vld [vmem:[#allocation2 + $0x250] sm:$0xff]
      %v3250 = vpack.c.bf16 %v3218, %v3218
      %v3251 = vpack.c.bf16 %v3219, %v3219
      %v3252 = vpack.c.bf16 %v3220, %v3220
      %v3253 = vpack.c.bf16 %v3221, %v3221
      %v3254 = vpack.c.bf16 %v3222, %v3222
      %v3255 = vpack.c.bf16 %v3223, %v3223
      %v3256 = vpack.c.bf16 %v3224, %v3224
      %v3257 = vpack.c.bf16 %v3225, %v3225
      %v3258 = vpack.c.bf16 %v3226, %v3226
      %v3259 = vpack.c.bf16 %v3227, %v3227
      %v3260 = vpack.c.bf16 %v3228, %v3228
      %v3261 = vpack.c.bf16 %v3229, %v3229
      %v3262 = vpack.c.bf16 %v3230, %v3230
      %v3263 = vpack.c.bf16 %v3231, %v3231
      %v3264 = vpack.c.bf16 %v3232, %v3232
      %v3265 = vpack.c.bf16 %v3233, %v3233
      %v3266 = vpack.c.bf16 %v3234, %v3234
      %v3267 = vpack.c.bf16 %v3235, %v3235
      %v3268 = vpack.c.bf16 %v3236, %v3236
      %v3269 = vpack.c.bf16 %v3237, %v3237
      %v3270 = vpack.c.bf16 %v3238, %v3238
      %v3271 = vpack.c.bf16 %v3239, %v3239
      %v3272 = vpack.c.bf16 %v3240, %v3240
      %v3273 = vpack.c.bf16 %v3241, %v3241
      %v3274 = vpack.c.bf16 %v3242, %v3242
      %v3275 = vpack.c.bf16 %v3243, %v3243
      %v3276 = vpack.c.bf16 %v3244, %v3244
      %v3277 = vpack.c.bf16 %v3245, %v3245
      %v3278 = vpack.c.bf16 %v3246, %v3246
      %v3279 = vpack.c.bf16 %v3247, %v3247
      %v3280 = vpack.c.bf16 %v3248, %v3248
      %v3281 = vpack.c.bf16 %v3249, %v3249
      %3282 = vst.msk [vmem:[#allocation3] sm:$0xf] %vm562, %v3250
      %3283 = vst.msk [vmem:[#allocation3 + $0x14] sm:$0xf] %vm562, %v3251
      %3284 = vst.msk [vmem:[#allocation3 + $0x28] sm:$0xf] %vm562, %v3252
      %3285 = vst.msk [vmem:[#allocation3 + $0x3c] sm:$0xf] %vm562, %v3253
      %3286 = vst.msk [vmem:[#allocation3 + $0x50] sm:$0xf] %vm562, %v3254
      %3287 = vst.msk [vmem:[#allocation3 + $0x64] sm:$0xf] %vm562, %v3255
      %3288 = vst.msk [vmem:[#allocation3 + $0x78] sm:$0xf] %vm562, %v3256
      %3289 = vst.msk [vmem:[#allocation3 + $0x8c] sm:$0xf] %vm562, %v3257
      %3290 = vst.msk [vmem:[#allocation3 + $0xa0] sm:$0xf] %vm562, %v3258
      %3291 = vst.msk [vmem:[#allocation3 + $0xb4] sm:$0xf] %vm562, %v3259
      %3292 = vst.msk [vmem:[#allocation3 + $0xc8] sm:$0xf] %vm562, %v3260
      %3293 = vst.msk [vmem:[#allocation3 + $0xdc] sm:$0xf] %vm562, %v3261
      %3294 = vst.msk [vmem:[#allocation3 + $0xf0] sm:$0xf] %vm562, %v3262
      %3295 = vst.msk [vmem:[#allocation3 + $0x104] sm:$0xf] %vm562, %v3263
      %3296 = vst.msk [vmem:[#allocation3 + $0x118] sm:$0xf] %vm562, %v3264
      %3297 = vst.msk [vmem:[#allocation3 + $0x12c] sm:$0xf] %vm562, %v3265
      %3298 = vst.msk [vmem:[#allocation3 + $0x140] sm:$0xf] %vm562, %v3266
      %3299 = vst.msk [vmem:[#allocation3 + $0x154] sm:$0xf] %vm562, %v3267
      %3300 = vst.msk [vmem:[#allocation3 + $0x168] sm:$0xf] %vm562, %v3268
      %3301 = vst.msk [vmem:[#allocation3 + $0x17c] sm:$0xf] %vm562, %v3269
      %3302 = vst.msk [vmem:[#allocation3 + $0x190] sm:$0xf] %vm562, %v3270
      %3303 = vst.msk [vmem:[#allocation3 + $0x1a4] sm:$0xf] %vm562, %v3271
      %3304 = vst.msk [vmem:[#allocation3 + $0x1b8] sm:$0xf] %vm562, %v3272
      %3305 = vst.msk [vmem:[#allocation3 + $0x1cc] sm:$0xf] %vm562, %v3273
      %3306 = vst.msk [vmem:[#allocation3 + $0x1e0] sm:$0xf] %vm562, %v3274
      %3307 = vst.msk [vmem:[#allocation3 + $0x1f4] sm:$0xf] %vm562, %v3275
      %3308 = vst.msk [vmem:[#allocation3 + $0x208] sm:$0xf] %vm562, %v3276
      %3309 = vst.msk [vmem:[#allocation3 + $0x21c] sm:$0xf] %vm562, %v3277
      %3310 = vst.msk [vmem:[#allocation3 + $0x230] sm:$0xf] %vm562, %v3278
      %3311 = vst.msk [vmem:[#allocation3 + $0x244] sm:$0xf] %vm562, %v3279
      %3312 = vst.msk [vmem:[#allocation3 + $0x258] sm:$0xf] %vm562, %v3280
      %3313 = vst.msk [vmem:[#allocation3 + $0x26c] sm:$0xf] %vm562, %v3281
      %v3314 = vld [vmem:[#allocation2 + $0x1] sm:$0xff]
      %v3315 = vld [vmem:[#allocation2 + $0x11] sm:$0xff]
      %v3316 = vld [vmem:[#allocation2 + $0x21] sm:$0xff]
      %v3317 = vld [vmem:[#allocation2 + $0x31] sm:$0xff]
      %v3318 = vld [vmem:[#allocation2 + $0x41] sm:$0xff]
      %v3319 = vld [vmem:[#allocation2 + $0x51] sm:$0xff]
      %v3320 = vld [vmem:[#allocation2 + $0x61] sm:$0xff]
      %v3321 = vld [vmem:[#allocation2 + $0x71] sm:$0xff]
      %v3322 = vld [vmem:[#allocation2 + $0xa1] sm:$0xff]
      %v3323 = vld [vmem:[#allocation2 + $0xb1] sm:$0xff]
      %v3324 = vld [vmem:[#allocation2 + $0xc1] sm:$0xff]
      %v3325 = vld [vmem:[#allocation2 + $0xd1] sm:$0xff]
      %v3326 = vld [vmem:[#allocation2 + $0xe1] sm:$0xff]
      %v3327 = vld [vmem:[#allocation2 + $0xf1] sm:$0xff]
      %v3328 = vld [vmem:[#allocation2 + $0x101] sm:$0xff]
      %v3329 = vld [vmem:[#allocation2 + $0x111] sm:$0xff]
      %v3330 = vld [vmem:[#allocation2 + $0x141] sm:$0xff]
      %v3331 = vld [vmem:[#allocation2 + $0x151] sm:$0xff]
      %v3332 = vld [vmem:[#allocation2 + $0x161] sm:$0xff]
      %v3333 = vld [vmem:[#allocation2 + $0x171] sm:$0xff]
      %v3334 = vld [vmem:[#allocation2 + $0x181] sm:$0xff]
      %v3335 = vld [vmem:[#allocation2 + $0x191] sm:$0xff]
      %v3336 = vld [vmem:[#allocation2 + $0x1a1] sm:$0xff]
      %v3337 = vld [vmem:[#allocation2 + $0x1b1] sm:$0xff]
      %v3338 = vld [vmem:[#allocation2 + $0x1e1] sm:$0xff]
      %v3339 = vld [vmem:[#allocation2 + $0x1f1] sm:$0xff]
      %v3340 = vld [vmem:[#allocation2 + $0x201] sm:$0xff]
      %v3341 = vld [vmem:[#allocation2 + $0x211] sm:$0xff]
      %v3342 = vld [vmem:[#allocation2 + $0x221] sm:$0xff]
      %v3343 = vld [vmem:[#allocation2 + $0x231] sm:$0xff]
      %v3344 = vld [vmem:[#allocation2 + $0x241] sm:$0xff]
      %v3345 = vld [vmem:[#allocation2 + $0x251] sm:$0xff]
      %v3346 = vpack.c.bf16 %v3314, %v3314
      %v3347 = vpack.c.bf16 %v3315, %v3315
      %v3348 = vpack.c.bf16 %v3316, %v3316
      %v3349 = vpack.c.bf16 %v3317, %v3317
      %v3350 = vpack.c.bf16 %v3318, %v3318
      %v3351 = vpack.c.bf16 %v3319, %v3319
      %v3352 = vpack.c.bf16 %v3320, %v3320
      %v3353 = vpack.c.bf16 %v3321, %v3321
      %v3354 = vpack.c.bf16 %v3322, %v3322
      %v3355 = vpack.c.bf16 %v3323, %v3323
      %v3356 = vpack.c.bf16 %v3324, %v3324
      %v3357 = vpack.c.bf16 %v3325, %v3325
      %v3358 = vpack.c.bf16 %v3326, %v3326
      %v3359 = vpack.c.bf16 %v3327, %v3327
      %v3360 = vpack.c.bf16 %v3328, %v3328
      %v3361 = vpack.c.bf16 %v3329, %v3329
      %v3362 = vpack.c.bf16 %v3330, %v3330
      %v3363 = vpack.c.bf16 %v3331, %v3331
      %v3364 = vpack.c.bf16 %v3332, %v3332
      %v3365 = vpack.c.bf16 %v3333, %v3333
      %v3366 = vpack.c.bf16 %v3334, %v3334
      %v3367 = vpack.c.bf16 %v3335, %v3335
      %v3368 = vpack.c.bf16 %v3336, %v3336
      %v3369 = vpack.c.bf16 %v3337, %v3337
      %v3370 = vpack.c.bf16 %v3338, %v3338
      %v3371 = vpack.c.bf16 %v3339, %v3339
      %v3372 = vpack.c.bf16 %v3340, %v3340
      %v3373 = vpack.c.bf16 %v3341, %v3341
      %v3374 = vpack.c.bf16 %v3342, %v3342
      %v3375 = vpack.c.bf16 %v3343, %v3343
      %v3376 = vpack.c.bf16 %v3344, %v3344
      %v3377 = vpack.c.bf16 %v3345, %v3345
      %3410 = vrot.lane.b32.xlu0 %v3346, 64
      %v3411 = vpop.permute.xlu0 %3410
      %3412 = vrot.lane.b32.xlu0 %v3347, 64
      %v3413 = vpop.permute.xlu0 %3412
      %3414 = vrot.lane.b32.xlu0 %v3348, 64
      %v3415 = vpop.permute.xlu0 %3414
      %3416 = vrot.lane.b32.xlu0 %v3349, 64
      %v3417 = vpop.permute.xlu0 %3416
      %3418 = vrot.lane.b32.xlu0 %v3350, 64
      %v3419 = vpop.permute.xlu0 %3418
      %3420 = vrot.lane.b32.xlu0 %v3351, 64
      %v3421 = vpop.permute.xlu0 %3420
      %3422 = vrot.lane.b32.xlu0 %v3352, 64
      %v3423 = vpop.permute.xlu0 %3422
      %3424 = vrot.lane.b32.xlu0 %v3353, 64
      %v3425 = vpop.permute.xlu0 %3424
      %3426 = vrot.lane.b32.xlu0 %v3354, 64
      %v3427 = vpop.permute.xlu0 %3426
      %3428 = vrot.lane.b32.xlu0 %v3355, 64
      %v3429 = vpop.permute.xlu0 %3428
      %3430 = vrot.lane.b32.xlu0 %v3356, 64
      %v3431 = vpop.permute.xlu0 %3430
      %3432 = vrot.lane.b32.xlu0 %v3357, 64
      %v3433 = vpop.permute.xlu0 %3432
      %3434 = vrot.lane.b32.xlu0 %v3358, 64
      %v3435 = vpop.permute.xlu0 %3434
      %3436 = vrot.lane.b32.xlu0 %v3359, 64
      %v3437 = vpop.permute.xlu0 %3436
      %3438 = vrot.lane.b32.xlu0 %v3360, 64
      %v3439 = vpop.permute.xlu0 %3438
      %3440 = vrot.lane.b32.xlu0 %v3361, 64
      %v3441 = vpop.permute.xlu0 %3440
      %3442 = vrot.lane.b32.xlu0 %v3362, 64
      %v3443 = vpop.permute.xlu0 %3442
      %3444 = vrot.lane.b32.xlu0 %v3363, 64
      %v3445 = vpop.permute.xlu0 %3444
      %3446 = vrot.lane.b32.xlu0 %v3364, 64
      %v3447 = vpop.permute.xlu0 %3446
      %3448 = vrot.lane.b32.xlu0 %v3365, 64
      %v3449 = vpop.permute.xlu0 %3448
      %3450 = vrot.lane.b32.xlu0 %v3366, 64
      %v3451 = vpop.permute.xlu0 %3450
      %3452 = vrot.lane.b32.xlu0 %v3367, 64
      %v3453 = vpop.permute.xlu0 %3452
      %3454 = vrot.lane.b32.xlu0 %v3368, 64
      %v3455 = vpop.permute.xlu0 %3454
      %3456 = vrot.lane.b32.xlu0 %v3369, 64
      %v3457 = vpop.permute.xlu0 %3456
      %3458 = vrot.lane.b32.xlu0 %v3370, 64
      %v3459 = vpop.permute.xlu0 %3458
      %3460 = vrot.lane.b32.xlu0 %v3371, 64
      %v3461 = vpop.permute.xlu0 %3460
      %3462 = vrot.lane.b32.xlu0 %v3372, 64
      %v3463 = vpop.permute.xlu0 %3462
      %3464 = vrot.lane.b32.xlu0 %v3373, 64
      %v3465 = vpop.permute.xlu0 %3464
      %3466 = vrot.lane.b32.xlu0 %v3374, 64
      %v3467 = vpop.permute.xlu0 %3466
      %3468 = vrot.lane.b32.xlu0 %v3375, 64
      %v3469 = vpop.permute.xlu0 %3468
      %3470 = vrot.lane.b32.xlu0 %v3376, 64
      %v3471 = vpop.permute.xlu0 %3470
      %3472 = vrot.lane.b32.xlu0 %v3377, 64
      %v3473 = vpop.permute.xlu0 %3472
      %3506 = vst.msk [vmem:[#allocation3] sm:$0xf] %vm787, %v3411
      %3507 = vst.msk [vmem:[#allocation3 + $0x14] sm:$0xf] %vm787, %v3413
      %3508 = vst.msk [vmem:[#allocation3 + $0x28] sm:$0xf] %vm787, %v3415
      %3509 = vst.msk [vmem:[#allocation3 + $0x3c] sm:$0xf] %vm787, %v3417
      %3510 = vst.msk [vmem:[#allocation3 + $0x50] sm:$0xf] %vm787, %v3419
      %3511 = vst.msk [vmem:[#allocation3 + $0x64] sm:$0xf] %vm787, %v3421
      %3512 = vst.msk [vmem:[#allocation3 + $0x78] sm:$0xf] %vm787, %v3423
      %3513 = vst.msk [vmem:[#allocation3 + $0x8c] sm:$0xf] %vm787, %v3425
      %3514 = vst.msk [vmem:[#allocation3 + $0xa0] sm:$0xf] %vm787, %v3427
      %3515 = vst.msk [vmem:[#allocation3 + $0xb4] sm:$0xf] %vm787, %v3429
      %3516 = vst.msk [vmem:[#allocation3 + $0xc8] sm:$0xf] %vm787, %v3431
      %3517 = vst.msk [vmem:[#allocation3 + $0xdc] sm:$0xf] %vm787, %v3433
      %3518 = vst.msk [vmem:[#allocation3 + $0xf0] sm:$0xf] %vm787, %v3435
      %3519 = vst.msk [vmem:[#allocation3 + $0x104] sm:$0xf] %vm787, %v3437
      %3520 = vst.msk [vmem:[#allocation3 + $0x118] sm:$0xf] %vm787, %v3439
      %3521 = vst.msk [vmem:[#allocation3 + $0x12c] sm:$0xf] %vm787, %v3441
      %3522 = vst.msk [vmem:[#allocation3 + $0x140] sm:$0xf] %vm787, %v3443
      %3523 = vst.msk [vmem:[#allocation3 + $0x154] sm:$0xf] %vm787, %v3445
      %3524 = vst.msk [vmem:[#allocation3 + $0x168] sm:$0xf] %vm787, %v3447
      %3525 = vst.msk [vmem:[#allocation3 + $0x17c] sm:$0xf] %vm787, %v3449
      %3526 = vst.msk [vmem:[#allocation3 + $0x190] sm:$0xf] %vm787, %v3451
      %3527 = vst.msk [vmem:[#allocation3 + $0x1a4] sm:$0xf] %vm787, %v3453
      %3528 = vst.msk [vmem:[#allocation3 + $0x1b8] sm:$0xf] %vm787, %v3455
      %3529 = vst.msk [vmem:[#allocation3 + $0x1cc] sm:$0xf] %vm787, %v3457
      %3530 = vst.msk [vmem:[#allocation3 + $0x1e0] sm:$0xf] %vm787, %v3459
      %3531 = vst.msk [vmem:[#allocation3 + $0x1f4] sm:$0xf] %vm787, %v3461
      %3532 = vst.msk [vmem:[#allocation3 + $0x208] sm:$0xf] %vm787, %v3463
      %3533 = vst.msk [vmem:[#allocation3 + $0x21c] sm:$0xf] %vm787, %v3465
      %3534 = vst.msk [vmem:[#allocation3 + $0x230] sm:$0xf] %vm787, %v3467
      %3535 = vst.msk [vmem:[#allocation3 + $0x244] sm:$0xf] %vm787, %v3469
      %3536 = vst.msk [vmem:[#allocation3 + $0x258] sm:$0xf] %vm787, %v3471
      %3537 = vst.msk [vmem:[#allocation3 + $0x26c] sm:$0xf] %vm787, %v3473
      %v3538 = vld [vmem:[#allocation2 + $0x2] sm:$0xff]
      %v3539 = vld [vmem:[#allocation2 + $0x12] sm:$0xff]
      %v3540 = vld [vmem:[#allocation2 + $0x22] sm:$0xff]
      %v3541 = vld [vmem:[#allocation2 + $0x32] sm:$0xff]
      %v3542 = vld [vmem:[#allocation2 + $0x42] sm:$0xff]
      %v3543 = vld [vmem:[#allocation2 + $0x52] sm:$0xff]
      %v3544 = vld [vmem:[#allocation2 + $0x62] sm:$0xff]
      %v3545 = vld [vmem:[#allocation2 + $0x72] sm:$0xff]
      %v3546 = vld [vmem:[#allocation2 + $0xa2] sm:$0xff]
      %v3547 = vld [vmem:[#allocation2 + $0xb2] sm:$0xff]
      %v3548 = vld [vmem:[#allocation2 + $0xc2] sm:$0xff]
      %v3549 = vld [vmem:[#allocation2 + $0xd2] sm:$0xff]
      %v3550 = vld [vmem:[#allocation2 + $0xe2] sm:$0xff]
      %v3551 = vld [vmem:[#allocation2 + $0xf2] sm:$0xff]
      %v3552 = vld [vmem:[#allocation2 + $0x102] sm:$0xff]
      %v3553 = vld [vmem:[#allocation2 + $0x112] sm:$0xff]
      %v3554 = vld [vmem:[#allocation2 + $0x142] sm:$0xff]
      %v3555 = vld [vmem:[#allocation2 + $0x152] sm:$0xff]
      %v3556 = vld [vmem:[#allocation2 + $0x162] sm:$0xff]
      %v3557 = vld [vmem:[#allocation2 + $0x172] sm:$0xff]
      %v3558 = vld [vmem:[#allocation2 + $0x182] sm:$0xff]
      %v3559 = vld [vmem:[#allocation2 + $0x192] sm:$0xff]
      %v3560 = vld [vmem:[#allocation2 + $0x1a2] sm:$0xff]
      %v3561 = vld [vmem:[#allocation2 + $0x1b2] sm:$0xff]
      %v3562 = vld [vmem:[#allocation2 + $0x1e2] sm:$0xff]
      %v3563 = vld [vmem:[#allocation2 + $0x1f2] sm:$0xff]
      %v3564 = vld [vmem:[#allocation2 + $0x202] sm:$0xff]
      %v3565 = vld [vmem:[#allocation2 + $0x212] sm:$0xff]
      %v3566 = vld [vmem:[#allocation2 + $0x222] sm:$0xff]
      %v3567 = vld [vmem:[#allocation2 + $0x232] sm:$0xff]
      %v3568 = vld [vmem:[#allocation2 + $0x242] sm:$0xff]
      %v3569 = vld [vmem:[#allocation2 + $0x252] sm:$0xff]
      %v3570 = vpack.c.bf16 %v3538, %v3538
      %v3571 = vpack.c.bf16 %v3539, %v3539
      %v3572 = vpack.c.bf16 %v3540, %v3540
      %v3573 = vpack.c.bf16 %v3541, %v3541
      %v3574 = vpack.c.bf16 %v3542, %v3542
      %v3575 = vpack.c.bf16 %v3543, %v3543
      %v3576 = vpack.c.bf16 %v3544, %v3544
      %v3577 = vpack.c.bf16 %v3545, %v3545
      %v3578 = vpack.c.bf16 %v3546, %v3546
      %v3579 = vpack.c.bf16 %v3547, %v3547
      %v3580 = vpack.c.bf16 %v3548, %v3548
      %v3581 = vpack.c.bf16 %v3549, %v3549
      %v3582 = vpack.c.bf16 %v3550, %v3550
      %v3583 = vpack.c.bf16 %v3551, %v3551
      %v3584 = vpack.c.bf16 %v3552, %v3552
      %v3585 = vpack.c.bf16 %v3553, %v3553
      %v3586 = vpack.c.bf16 %v3554, %v3554
      %v3587 = vpack.c.bf16 %v3555, %v3555
      %v3588 = vpack.c.bf16 %v3556, %v3556
      %v3589 = vpack.c.bf16 %v3557, %v3557
      %v3590 = vpack.c.bf16 %v3558, %v3558
      %v3591 = vpack.c.bf16 %v3559, %v3559
      %v3592 = vpack.c.bf16 %v3560, %v3560
      %v3593 = vpack.c.bf16 %v3561, %v3561
      %v3594 = vpack.c.bf16 %v3562, %v3562
      %v3595 = vpack.c.bf16 %v3563, %v3563
      %v3596 = vpack.c.bf16 %v3564, %v3564
      %v3597 = vpack.c.bf16 %v3565, %v3565
      %v3598 = vpack.c.bf16 %v3566, %v3566
      %v3599 = vpack.c.bf16 %v3567, %v3567
      %v3600 = vpack.c.bf16 %v3568, %v3568
      %v3601 = vpack.c.bf16 %v3569, %v3569
      %3602 = vst.msk [vmem:[#allocation3 + $0x4] sm:$0xf] %vm562, %v3570
      %3603 = vst.msk [vmem:[#allocation3 + $0x18] sm:$0xf] %vm562, %v3571
      %3604 = vst.msk [vmem:[#allocation3 + $0x2c] sm:$0xf] %vm562, %v3572
      %3605 = vst.msk [vmem:[#allocation3 + $0x40] sm:$0xf] %vm562, %v3573
      %3606 = vst.msk [vmem:[#allocation3 + $0x54] sm:$0xf] %vm562, %v3574
      %3607 = vst.msk [vmem:[#allocation3 + $0x68] sm:$0xf] %vm562, %v3575
      %3608 = vst.msk [vmem:[#allocation3 + $0x7c] sm:$0xf] %vm562, %v3576
      %3609 = vst.msk [vmem:[#allocation3 + $0x90] sm:$0xf] %vm562, %v3577
      %3610 = vst.msk [vmem:[#allocation3 + $0xa4] sm:$0xf] %vm562, %v3578
      %3611 = vst.msk [vmem:[#allocation3 + $0xb8] sm:$0xf] %vm562, %v3579
      %3612 = vst.msk [vmem:[#allocation3 + $0xcc] sm:$0xf] %vm562, %v3580
      %3613 = vst.msk [vmem:[#allocation3 + $0xe0] sm:$0xf] %vm562, %v3581
      %3614 = vst.msk [vmem:[#allocation3 + $0xf4] sm:$0xf] %vm562, %v3582
      %3615 = vst.msk [vmem:[#allocation3 + $0x108] sm:$0xf] %vm562, %v3583
      %3616 = vst.msk [vmem:[#allocation3 + $0x11c] sm:$0xf] %vm562, %v3584
      %3617 = vst.msk [vmem:[#allocation3 + $0x130] sm:$0xf] %vm562, %v3585
      %3618 = vst.msk [vmem:[#allocation3 + $0x144] sm:$0xf] %vm562, %v3586
      %3619 = vst.msk [vmem:[#allocation3 + $0x158] sm:$0xf] %vm562, %v3587
      %3620 = vst.msk [vmem:[#allocation3 + $0x16c] sm:$0xf] %vm562, %v3588
      %3621 = vst.msk [vmem:[#allocation3 + $0x180] sm:$0xf] %vm562, %v3589
      %3622 = vst.msk [vmem:[#allocation3 + $0x194] sm:$0xf] %vm562, %v3590
      %3623 = vst.msk [vmem:[#allocation3 + $0x1a8] sm:$0xf] %vm562, %v3591
      %3624 = vst.msk [vmem:[#allocation3 + $0x1bc] sm:$0xf] %vm562, %v3592
      %3625 = vst.msk [vmem:[#allocation3 + $0x1d0] sm:$0xf] %vm562, %v3593
      %3626 = vst.msk [vmem:[#allocation3 + $0x1e4] sm:$0xf] %vm562, %v3594
      %3627 = vst.msk [vmem:[#allocation3 + $0x1f8] sm:$0xf] %vm562, %v3595
      %3628 = vst.msk [vmem:[#allocation3 + $0x20c] sm:$0xf] %vm562, %v3596
      %3629 = vst.msk [vmem:[#allocation3 + $0x220] sm:$0xf] %vm562, %v3597
      %3630 = vst.msk [vmem:[#allocation3 + $0x234] sm:$0xf] %vm562, %v3598
      %3631 = vst.msk [vmem:[#allocation3 + $0x248] sm:$0xf] %vm562, %v3599
      %3632 = vst.msk [vmem:[#allocation3 + $0x25c] sm:$0xf] %vm562, %v3600
      %3633 = vst.msk [vmem:[#allocation3 + $0x270] sm:$0xf] %vm562, %v3601
      %v3634 = vld [vmem:[%s465] sm:$0xff]
      %v3635 = vld [vmem:[%s465 + $0x10] sm:$0xff]
      %v3636 = vld [vmem:[%s465 + $0x20] sm:$0xff]
      %v3637 = vld [vmem:[%s465 + $0x30] sm:$0xff]
      %v3638 = vld [vmem:[%s465 + $0x40] sm:$0xff]
      %v3639 = vld [vmem:[%s465 + $0x50] sm:$0xff]
      %v3640 = vld [vmem:[%s465 + $0x60] sm:$0xff]
      %v3641 = vld [vmem:[%s465 + $0x70] sm:$0xff]
      %v3642 = vld [vmem:[%s465 + $0xa0] sm:$0xff]
      %v3643 = vld [vmem:[%s465 + $0xb0] sm:$0xff]
      %v3644 = vld [vmem:[%s465 + $0xc0] sm:$0xff]
      %v3645 = vld [vmem:[%s465 + $0xd0] sm:$0xff]
      %v3646 = vld [vmem:[%s465 + $0xe0] sm:$0xff]
      %v3647 = vld [vmem:[%s465 + $0xf0] sm:$0xff]
      %v3648 = vld [vmem:[%s465 + $0x100] sm:$0xff]
      %v3649 = vld [vmem:[%s465 + $0x110] sm:$0xff]
      %v3650 = vld [vmem:[%s465 + $0x140] sm:$0xff]
      %v3651 = vld [vmem:[%s465 + $0x150] sm:$0xff]
      %v3652 = vld [vmem:[%s465 + $0x160] sm:$0xff]
      %v3653 = vld [vmem:[%s465 + $0x170] sm:$0xff]
      %v3654 = vld [vmem:[%s465 + $0x180] sm:$0xff]
      %v3655 = vld [vmem:[%s465 + $0x190] sm:$0xff]
      %v3656 = vld [vmem:[%s465 + $0x1a0] sm:$0xff]
      %v3657 = vld [vmem:[%s465 + $0x1b0] sm:$0xff]
      %v3658 = vld [vmem:[%s465 + $0x1e0] sm:$0xff]
      %v3659 = vld [vmem:[%s465 + $0x1f0] sm:$0xff]
      %v3660 = vld [vmem:[%s465 + $0x200] sm:$0xff]
      %v3661 = vld [vmem:[%s465 + $0x210] sm:$0xff]
      %v3662 = vld [vmem:[%s465 + $0x220] sm:$0xff]
      %v3663 = vld [vmem:[%s465 + $0x230] sm:$0xff]
      %v3664 = vld [vmem:[%s465 + $0x240] sm:$0xff]
      %v3665 = vld [vmem:[%s465 + $0x250] sm:$0xff]
      %v3666 = vpack.c.bf16 %v3634, %v3634
      %v3667 = vpack.c.bf16 %v3635, %v3635
      %v3668 = vpack.c.bf16 %v3636, %v3636
      %v3669 = vpack.c.bf16 %v3637, %v3637
      %v3670 = vpack.c.bf16 %v3638, %v3638
      %v3671 = vpack.c.bf16 %v3639, %v3639
      %v3672 = vpack.c.bf16 %v3640, %v3640
      %v3673 = vpack.c.bf16 %v3641, %v3641
      %v3674 = vpack.c.bf16 %v3642, %v3642
      %v3675 = vpack.c.bf16 %v3643, %v3643
      %v3676 = vpack.c.bf16 %v3644, %v3644
      %v3677 = vpack.c.bf16 %v3645, %v3645
      %v3678 = vpack.c.bf16 %v3646, %v3646
      %v3679 = vpack.c.bf16 %v3647, %v3647
      %v3680 = vpack.c.bf16 %v3648, %v3648
      %v3681 = vpack.c.bf16 %v3649, %v3649
      %v3682 = vpack.c.bf16 %v3650, %v3650
      %v3683 = vpack.c.bf16 %v3651, %v3651
      %v3684 = vpack.c.bf16 %v3652, %v3652
      %v3685 = vpack.c.bf16 %v3653, %v3653
      %v3686 = vpack.c.bf16 %v3654, %v3654
      %v3687 = vpack.c.bf16 %v3655, %v3655
      %v3688 = vpack.c.bf16 %v3656, %v3656
      %v3689 = vpack.c.bf16 %v3657, %v3657
      %v3690 = vpack.c.bf16 %v3658, %v3658
      %v3691 = vpack.c.bf16 %v3659, %v3659
      %v3692 = vpack.c.bf16 %v3660, %v3660
      %v3693 = vpack.c.bf16 %v3661, %v3661
      %v3694 = vpack.c.bf16 %v3662, %v3662
      %v3695 = vpack.c.bf16 %v3663, %v3663
      %v3696 = vpack.c.bf16 %v3664, %v3664
      %v3697 = vpack.c.bf16 %v3665, %v3665
      %3730 = vrot.lane.b32.xlu0 %v3666, 64
      %v3731 = vpop.permute.xlu0 %3730
      %3732 = vrot.lane.b32.xlu0 %v3667, 64
      %v3733 = vpop.permute.xlu0 %3732
      %3734 = vrot.lane.b32.xlu0 %v3668, 64
      %v3735 = vpop.permute.xlu0 %3734
      %3736 = vrot.lane.b32.xlu0 %v3669, 64
      %v3737 = vpop.permute.xlu0 %3736
      %3738 = vrot.lane.b32.xlu0 %v3670, 64
      %v3739 = vpop.permute.xlu0 %3738
      %3740 = vrot.lane.b32.xlu0 %v3671, 64
      %v3741 = vpop.permute.xlu0 %3740
      %3742 = vrot.lane.b32.xlu0 %v3672, 64
      %v3743 = vpop.permute.xlu0 %3742
      %3744 = vrot.lane.b32.xlu0 %v3673, 64
      %v3745 = vpop.permute.xlu0 %3744
      %3746 = vrot.lane.b32.xlu0 %v3674, 64
      %v3747 = vpop.permute.xlu0 %3746
      %3748 = vrot.lane.b32.xlu0 %v3675, 64
      %v3749 = vpop.permute.xlu0 %3748
      %3750 = vrot.lane.b32.xlu0 %v3676, 64
      %v3751 = vpop.permute.xlu0 %3750
      %3752 = vrot.lane.b32.xlu0 %v3677, 64
      %v3753 = vpop.permute.xlu0 %3752
      %3754 = vrot.lane.b32.xlu0 %v3678, 64
      %v3755 = vpop.permute.xlu0 %3754
      %3756 = vrot.lane.b32.xlu0 %v3679, 64
      %v3757 = vpop.permute.xlu0 %3756
      %3758 = vrot.lane.b32.xlu0 %v3680, 64
      %v3759 = vpop.permute.xlu0 %3758
      %3760 = vrot.lane.b32.xlu0 %v3681, 64
      %v3761 = vpop.permute.xlu0 %3760
      %3762 = vrot.lane.b32.xlu0 %v3682, 64
      %v3763 = vpop.permute.xlu0 %3762
      %3764 = vrot.lane.b32.xlu0 %v3683, 64
      %v3765 = vpop.permute.xlu0 %3764
      %3766 = vrot.lane.b32.xlu0 %v3684, 64
      %v3767 = vpop.permute.xlu0 %3766
      %3768 = vrot.lane.b32.xlu0 %v3685, 64
      %v3769 = vpop.permute.xlu0 %3768
      %3770 = vrot.lane.b32.xlu0 %v3686, 64
      %v3771 = vpop.permute.xlu0 %3770
      %3772 = vrot.lane.b32.xlu0 %v3687, 64
      %v3773 = vpop.permute.xlu0 %3772
      %3774 = vrot.lane.b32.xlu0 %v3688, 64
      %v3775 = vpop.permute.xlu0 %3774
      %3776 = vrot.lane.b32.xlu0 %v3689, 64
      %v3777 = vpop.permute.xlu0 %3776
      %3778 = vrot.lane.b32.xlu0 %v3690, 64
      %v3779 = vpop.permute.xlu0 %3778
      %3780 = vrot.lane.b32.xlu0 %v3691, 64
      %v3781 = vpop.permute.xlu0 %3780
      %3782 = vrot.lane.b32.xlu0 %v3692, 64
      %v3783 = vpop.permute.xlu0 %3782
      %3784 = vrot.lane.b32.xlu0 %v3693, 64
      %v3785 = vpop.permute.xlu0 %3784
      %3786 = vrot.lane.b32.xlu0 %v3694, 64
      %v3787 = vpop.permute.xlu0 %3786
      %3788 = vrot.lane.b32.xlu0 %v3695, 64
      %v3789 = vpop.permute.xlu0 %3788
      %3790 = vrot.lane.b32.xlu0 %v3696, 64
      %v3791 = vpop.permute.xlu0 %3790
      %3792 = vrot.lane.b32.xlu0 %v3697, 64
      %v3793 = vpop.permute.xlu0 %3792
      %3826 = vst.msk [vmem:[#allocation3 + $0x4] sm:$0xf] %vm787, %v3731
      %3827 = vst.msk [vmem:[#allocation3 + $0x18] sm:$0xf] %vm787, %v3733
      %3828 = vst.msk [vmem:[#allocation3 + $0x2c] sm:$0xf] %vm787, %v3735
      %3829 = vst.msk [vmem:[#allocation3 + $0x40] sm:$0xf] %vm787, %v3737
      %3830 = vst.msk [vmem:[#allocation3 + $0x54] sm:$0xf] %vm787, %v3739
      %3831 = vst.msk [vmem:[#allocation3 + $0x68] sm:$0xf] %vm787, %v3741
      %3832 = vst.msk [vmem:[#allocation3 + $0x7c] sm:$0xf] %vm787, %v3743
      %3833 = vst.msk [vmem:[#allocation3 + $0x90] sm:$0xf] %vm787, %v3745
      %3834 = vst.msk [vmem:[#allocation3 + $0xa4] sm:$0xf] %vm787, %v3747
      %3835 = vst.msk [vmem:[#allocation3 + $0xb8] sm:$0xf] %vm787, %v3749
      %3836 = vst.msk [vmem:[#allocation3 + $0xcc] sm:$0xf] %vm787, %v3751
      %3837 = vst.msk [vmem:[#allocation3 + $0xe0] sm:$0xf] %vm787, %v3753
      %3838 = vst.msk [vmem:[#allocation3 + $0xf4] sm:$0xf] %vm787, %v3755
      %3839 = vst.msk [vmem:[#allocation3 + $0x108] sm:$0xf] %vm787, %v3757
      %3840 = vst.msk [vmem:[#allocation3 + $0x11c] sm:$0xf] %vm787, %v3759
      %3841 = vst.msk [vmem:[#allocation3 + $0x130] sm:$0xf] %vm787, %v3761
      %3842 = vst.msk [vmem:[#allocation3 + $0x144] sm:$0xf] %vm787, %v3763
      %3843 = vst.msk [vmem:[#allocation3 + $0x158] sm:$0xf] %vm787, %v3765
      %3844 = vst.msk [vmem:[#allocation3 + $0x16c] sm:$0xf] %vm787, %v3767
      %3845 = vst.msk [vmem:[#allocation3 + $0x180] sm:$0xf] %vm787, %v3769
      %3846 = vst.msk [vmem:[#allocation3 + $0x194] sm:$0xf] %vm787, %v3771
      %3847 = vst.msk [vmem:[#allocation3 + $0x1a8] sm:$0xf] %vm787, %v3773
      %3848 = vst.msk [vmem:[#allocation3 + $0x1bc] sm:$0xf] %vm787, %v3775
      %3849 = vst.msk [vmem:[#allocation3 + $0x1d0] sm:$0xf] %vm787, %v3777
      %3850 = vst.msk [vmem:[#allocation3 + $0x1e4] sm:$0xf] %vm787, %v3779
      %3851 = vst.msk [vmem:[#allocation3 + $0x1f8] sm:$0xf] %vm787, %v3781
      %3852 = vst.msk [vmem:[#allocation3 + $0x20c] sm:$0xf] %vm787, %v3783
      %3853 = vst.msk [vmem:[#allocation3 + $0x220] sm:$0xf] %vm787, %v3785
      %3854 = vst.msk [vmem:[#allocation3 + $0x234] sm:$0xf] %vm787, %v3787
      %3855 = vst.msk [vmem:[#allocation3 + $0x248] sm:$0xf] %vm787, %v3789
      %3856 = vst.msk [vmem:[#allocation3 + $0x25c] sm:$0xf] %vm787, %v3791
      %3857 = vst.msk [vmem:[#allocation3 + $0x270] sm:$0xf] %vm787, %v3793
      %v3858 = vld [vmem:[%s465 + $0x1] sm:$0xff]
      %v3859 = vld [vmem:[%s465 + $0x11] sm:$0xff]
      %v3860 = vld [vmem:[%s465 + $0x21] sm:$0xff]
      %v3861 = vld [vmem:[%s465 + $0x31] sm:$0xff]
      %v3862 = vld [vmem:[%s465 + $0x41] sm:$0xff]
      %v3863 = vld [vmem:[%s465 + $0x51] sm:$0xff]
      %v3864 = vld [vmem:[%s465 + $0x61] sm:$0xff]
      %v3865 = vld [vmem:[%s465 + $0x71] sm:$0xff]
      %v3866 = vld [vmem:[%s465 + $0xa1] sm:$0xff]
      %v3867 = vld [vmem:[%s465 + $0xb1] sm:$0xff]
      %v3868 = vld [vmem:[%s465 + $0xc1] sm:$0xff]
      %v3869 = vld [vmem:[%s465 + $0xd1] sm:$0xff]
      %v3870 = vld [vmem:[%s465 + $0xe1] sm:$0xff]
      %v3871 = vld [vmem:[%s465 + $0xf1] sm:$0xff]
      %v3872 = vld [vmem:[%s465 + $0x101] sm:$0xff]
      %v3873 = vld [vmem:[%s465 + $0x111] sm:$0xff]
      %v3874 = vld [vmem:[%s465 + $0x141] sm:$0xff]
      %v3875 = vld [vmem:[%s465 + $0x151] sm:$0xff]
      %v3876 = vld [vmem:[%s465 + $0x161] sm:$0xff]
      %v3877 = vld [vmem:[%s465 + $0x171] sm:$0xff]
      %v3878 = vld [vmem:[%s465 + $0x181] sm:$0xff]
      %v3879 = vld [vmem:[%s465 + $0x191] sm:$0xff]
      %v3880 = vld [vmem:[%s465 + $0x1a1] sm:$0xff]
      %v3881 = vld [vmem:[%s465 + $0x1b1] sm:$0xff]
      %v3882 = vld [vmem:[%s465 + $0x1e1] sm:$0xff]
      %v3883 = vld [vmem:[%s465 + $0x1f1] sm:$0xff]
      %v3884 = vld [vmem:[%s465 + $0x201] sm:$0xff]
      %v3885 = vld [vmem:[%s465 + $0x211] sm:$0xff]
      %v3886 = vld [vmem:[%s465 + $0x221] sm:$0xff]
      %v3887 = vld [vmem:[%s465 + $0x231] sm:$0xff]
      %v3888 = vld [vmem:[%s465 + $0x241] sm:$0xff]
      %v3889 = vld [vmem:[%s465 + $0x251] sm:$0xff]
      %v3890 = vpack.c.bf16 %v3858, %v3858
      %v3891 = vpack.c.bf16 %v3859, %v3859
      %v3892 = vpack.c.bf16 %v3860, %v3860
      %v3893 = vpack.c.bf16 %v3861, %v3861
      %v3894 = vpack.c.bf16 %v3862, %v3862
      %v3895 = vpack.c.bf16 %v3863, %v3863
      %v3896 = vpack.c.bf16 %v3864, %v3864
      %v3897 = vpack.c.bf16 %v3865, %v3865
      %v3898 = vpack.c.bf16 %v3866, %v3866
      %v3899 = vpack.c.bf16 %v3867, %v3867
      %v3900 = vpack.c.bf16 %v3868, %v3868
      %v3901 = vpack.c.bf16 %v3869, %v3869
      %v3902 = vpack.c.bf16 %v3870, %v3870
      %v3903 = vpack.c.bf16 %v3871, %v3871
      %v3904 = vpack.c.bf16 %v3872, %v3872
      %v3905 = vpack.c.bf16 %v3873, %v3873
      %v3906 = vpack.c.bf16 %v3874, %v3874
      %v3907 = vpack.c.bf16 %v3875, %v3875
      %v3908 = vpack.c.bf16 %v3876, %v3876
      %v3909 = vpack.c.bf16 %v3877, %v3877
      %v3910 = vpack.c.bf16 %v3878, %v3878
      %v3911 = vpack.c.bf16 %v3879, %v3879
      %v3912 = vpack.c.bf16 %v3880, %v3880
      %v3913 = vpack.c.bf16 %v3881, %v3881
      %v3914 = vpack.c.bf16 %v3882, %v3882
      %v3915 = vpack.c.bf16 %v3883, %v3883
      %v3916 = vpack.c.bf16 %v3884, %v3884
      %v3917 = vpack.c.bf16 %v3885, %v3885
      %v3918 = vpack.c.bf16 %v3886, %v3886
      %v3919 = vpack.c.bf16 %v3887, %v3887
      %v3920 = vpack.c.bf16 %v3888, %v3888
      %v3921 = vpack.c.bf16 %v3889, %v3889
      %3922 = vst.msk [vmem:[#allocation3 + $0x8] sm:$0xf] %vm562, %v3890
      %3923 = vst.msk [vmem:[#allocation3 + $0x1c] sm:$0xf] %vm562, %v3891
      %3924 = vst.msk [vmem:[#allocation3 + $0x30] sm:$0xf] %vm562, %v3892
      %3925 = vst.msk [vmem:[#allocation3 + $0x44] sm:$0xf] %vm562, %v3893
      %3926 = vst.msk [vmem:[#allocation3 + $0x58] sm:$0xf] %vm562, %v3894
      %3927 = vst.msk [vmem:[#allocation3 + $0x6c] sm:$0xf] %vm562, %v3895
      %3928 = vst.msk [vmem:[#allocation3 + $0x80] sm:$0xf] %vm562, %v3896
      %3929 = vst.msk [vmem:[#allocation3 + $0x94] sm:$0xf] %vm562, %v3897
      %3930 = vst.msk [vmem:[#allocation3 + $0xa8] sm:$0xf] %vm562, %v3898
      %3931 = vst.msk [vmem:[#allocation3 + $0xbc] sm:$0xf] %vm562, %v3899
      %3932 = vst.msk [vmem:[#allocation3 + $0xd0] sm:$0xf] %vm562, %v3900
      %3933 = vst.msk [vmem:[#allocation3 + $0xe4] sm:$0xf] %vm562, %v3901
      %3934 = vst.msk [vmem:[#allocation3 + $0xf8] sm:$0xf] %vm562, %v3902
      %3935 = vst.msk [vmem:[#allocation3 + $0x10c] sm:$0xf] %vm562, %v3903
      %3936 = vst.msk [vmem:[#allocation3 + $0x120] sm:$0xf] %vm562, %v3904
      %3937 = vst.msk [vmem:[#allocation3 + $0x134] sm:$0xf] %vm562, %v3905
      %3938 = vst.msk [vmem:[#allocation3 + $0x148] sm:$0xf] %vm562, %v3906
      %3939 = vst.msk [vmem:[#allocation3 + $0x15c] sm:$0xf] %vm562, %v3907
      %3940 = vst.msk [vmem:[#allocation3 + $0x170] sm:$0xf] %vm562, %v3908
      %3941 = vst.msk [vmem:[#allocation3 + $0x184] sm:$0xf] %vm562, %v3909
      %3942 = vst.msk [vmem:[#allocation3 + $0x198] sm:$0xf] %vm562, %v3910
      %3943 = vst.msk [vmem:[#allocation3 + $0x1ac] sm:$0xf] %vm562, %v3911
      %3944 = vst.msk [vmem:[#allocation3 + $0x1c0] sm:$0xf] %vm562, %v3912
      %3945 = vst.msk [vmem:[#allocation3 + $0x1d4] sm:$0xf] %vm562, %v3913
      %3946 = vst.msk [vmem:[#allocation3 + $0x1e8] sm:$0xf] %vm562, %v3914
      %3947 = vst.msk [vmem:[#allocation3 + $0x1fc] sm:$0xf] %vm562, %v3915
      %3948 = vst.msk [vmem:[#allocation3 + $0x210] sm:$0xf] %vm562, %v3916
      %3949 = vst.msk [vmem:[#allocation3 + $0x224] sm:$0xf] %vm562, %v3917
      %3950 = vst.msk [vmem:[#allocation3 + $0x238] sm:$0xf] %vm562, %v3918
      %3951 = vst.msk [vmem:[#allocation3 + $0x24c] sm:$0xf] %vm562, %v3919
      %3952 = vst.msk [vmem:[#allocation3 + $0x260] sm:$0xf] %vm562, %v3920
      %3953 = vst.msk [vmem:[#allocation3 + $0x274] sm:$0xf] %vm562, %v3921
      %v3954 = vld [vmem:[%s465 + $0x2] sm:$0xff]
      %v3955 = vld [vmem:[%s465 + $0x12] sm:$0xff]
      %v3956 = vld [vmem:[%s465 + $0x22] sm:$0xff]
      %v3957 = vld [vmem:[%s465 + $0x32] sm:$0xff]
      %v3958 = vld [vmem:[%s465 + $0x42] sm:$0xff]
      %v3959 = vld [vmem:[%s465 + $0x52] sm:$0xff]
      %v3960 = vld [vmem:[%s465 + $0x62] sm:$0xff]
      %v3961 = vld [vmem:[%s465 + $0x72] sm:$0xff]
      %v3962 = vld [vmem:[%s465 + $0xa2] sm:$0xff]
      %v3963 = vld [vmem:[%s465 + $0xb2] sm:$0xff]
      %v3964 = vld [vmem:[%s465 + $0xc2] sm:$0xff]
      %v3965 = vld [vmem:[%s465 + $0xd2] sm:$0xff]
      %v3966 = vld [vmem:[%s465 + $0xe2] sm:$0xff]
      %v3967 = vld [vmem:[%s465 + $0xf2] sm:$0xff]
      %v3968 = vld [vmem:[%s465 + $0x102] sm:$0xff]
      %v3969 = vld [vmem:[%s465 + $0x112] sm:$0xff]
      %v3970 = vld [vmem:[%s465 + $0x142] sm:$0xff]
      %v3971 = vld [vmem:[%s465 + $0x152] sm:$0xff]
      %v3972 = vld [vmem:[%s465 + $0x162] sm:$0xff]
      %v3973 = vld [vmem:[%s465 + $0x172] sm:$0xff]
      %v3974 = vld [vmem:[%s465 + $0x182] sm:$0xff]
      %v3975 = vld [vmem:[%s465 + $0x192] sm:$0xff]
      %v3976 = vld [vmem:[%s465 + $0x1a2] sm:$0xff]
      %v3977 = vld [vmem:[%s465 + $0x1b2] sm:$0xff]
      %v3978 = vld [vmem:[%s465 + $0x1e2] sm:$0xff]
      %v3979 = vld [vmem:[%s465 + $0x1f2] sm:$0xff]
      %v3980 = vld [vmem:[%s465 + $0x202] sm:$0xff]
      %v3981 = vld [vmem:[%s465 + $0x212] sm:$0xff]
      %v3982 = vld [vmem:[%s465 + $0x222] sm:$0xff]
      %v3983 = vld [vmem:[%s465 + $0x232] sm:$0xff]
      %v3984 = vld [vmem:[%s465 + $0x242] sm:$0xff]
      %v3985 = vld [vmem:[%s465 + $0x252] sm:$0xff]
      %v3986 = vpack.c.bf16 %v3954, %v3954
      %v3987 = vpack.c.bf16 %v3955, %v3955
      %v3988 = vpack.c.bf16 %v3956, %v3956
      %v3989 = vpack.c.bf16 %v3957, %v3957
      %v3990 = vpack.c.bf16 %v3958, %v3958
      %v3991 = vpack.c.bf16 %v3959, %v3959
      %v3992 = vpack.c.bf16 %v3960, %v3960
      %v3993 = vpack.c.bf16 %v3961, %v3961
      %v3994 = vpack.c.bf16 %v3962, %v3962
      %v3995 = vpack.c.bf16 %v3963, %v3963
      %v3996 = vpack.c.bf16 %v3964, %v3964
      %v3997 = vpack.c.bf16 %v3965, %v3965
      %v3998 = vpack.c.bf16 %v3966, %v3966
      %v3999 = vpack.c.bf16 %v3967, %v3967
      %v4000 = vpack.c.bf16 %v3968, %v3968
      %v4001 = vpack.c.bf16 %v3969, %v3969
      %v4002 = vpack.c.bf16 %v3970, %v3970
      %v4003 = vpack.c.bf16 %v3971, %v3971
      %v4004 = vpack.c.bf16 %v3972, %v3972
      %v4005 = vpack.c.bf16 %v3973, %v3973
      %v4006 = vpack.c.bf16 %v3974, %v3974
      %v4007 = vpack.c.bf16 %v3975, %v3975
      %v4008 = vpack.c.bf16 %v3976, %v3976
      %v4009 = vpack.c.bf16 %v3977, %v3977
      %v4010 = vpack.c.bf16 %v3978, %v3978
      %v4011 = vpack.c.bf16 %v3979, %v3979
      %v4012 = vpack.c.bf16 %v3980, %v3980
      %v4013 = vpack.c.bf16 %v3981, %v3981
      %v4014 = vpack.c.bf16 %v3982, %v3982
      %v4015 = vpack.c.bf16 %v3983, %v3983
      %v4016 = vpack.c.bf16 %v3984, %v3984
      %v4017 = vpack.c.bf16 %v3985, %v3985
      %4050 = vrot.lane.b32.xlu0 %v3986, 64
      %v4051 = vpop.permute.xlu0 %4050
      %4052 = vrot.lane.b32.xlu0 %v3987, 64
      %v4053 = vpop.permute.xlu0 %4052
      %4054 = vrot.lane.b32.xlu0 %v3988, 64
      %v4055 = vpop.permute.xlu0 %4054
      %4056 = vrot.lane.b32.xlu0 %v3989, 64
      %v4057 = vpop.permute.xlu0 %4056
      %4058 = vrot.lane.b32.xlu0 %v3990, 64
      %v4059 = vpop.permute.xlu0 %4058
      %4060 = vrot.lane.b32.xlu0 %v3991, 64
      %v4061 = vpop.permute.xlu0 %4060
      %4062 = vrot.lane.b32.xlu0 %v3992, 64
      %v4063 = vpop.permute.xlu0 %4062
      %4064 = vrot.lane.b32.xlu0 %v3993, 64
      %v4065 = vpop.permute.xlu0 %4064
      %4066 = vrot.lane.b32.xlu0 %v3994, 64
      %v4067 = vpop.permute.xlu0 %4066
      %4068 = vrot.lane.b32.xlu0 %v3995, 64
      %v4069 = vpop.permute.xlu0 %4068
      %4070 = vrot.lane.b32.xlu0 %v3996, 64
      %v4071 = vpop.permute.xlu0 %4070
      %4072 = vrot.lane.b32.xlu0 %v3997, 64
      %v4073 = vpop.permute.xlu0 %4072
      %4074 = vrot.lane.b32.xlu0 %v3998, 64
      %v4075 = vpop.permute.xlu0 %4074
      %4076 = vrot.lane.b32.xlu0 %v3999, 64
      %v4077 = vpop.permute.xlu0 %4076
      %4078 = vrot.lane.b32.xlu0 %v4000, 64
      %v4079 = vpop.permute.xlu0 %4078
      %4080 = vrot.lane.b32.xlu0 %v4001, 64
      %v4081 = vpop.permute.xlu0 %4080
      %4082 = vrot.lane.b32.xlu0 %v4002, 64
      %v4083 = vpop.permute.xlu0 %4082
      %4084 = vrot.lane.b32.xlu0 %v4003, 64
      %v4085 = vpop.permute.xlu0 %4084
      %4086 = vrot.lane.b32.xlu0 %v4004, 64
      %v4087 = vpop.permute.xlu0 %4086
      %4088 = vrot.lane.b32.xlu0 %v4005, 64
      %v4089 = vpop.permute.xlu0 %4088
      %4090 = vrot.lane.b32.xlu0 %v4006, 64
      %v4091 = vpop.permute.xlu0 %4090
      %4092 = vrot.lane.b32.xlu0 %v4007, 64
      %v4093 = vpop.permute.xlu0 %4092
      %4094 = vrot.lane.b32.xlu0 %v4008, 64
      %v4095 = vpop.permute.xlu0 %4094
      %4096 = vrot.lane.b32.xlu0 %v4009, 64
      %v4097 = vpop.permute.xlu0 %4096
      %4098 = vrot.lane.b32.xlu0 %v4010, 64
      %v4099 = vpop.permute.xlu0 %4098
      %4100 = vrot.lane.b32.xlu0 %v4011, 64
      %v4101 = vpop.permute.xlu0 %4100
      %4102 = vrot.lane.b32.xlu0 %v4012, 64
      %v4103 = vpop.permute.xlu0 %4102
      %4104 = vrot.lane.b32.xlu0 %v4013, 64
      %v4105 = vpop.permute.xlu0 %4104
      %4106 = vrot.lane.b32.xlu0 %v4014, 64
      %v4107 = vpop.permute.xlu0 %4106
      %4108 = vrot.lane.b32.xlu0 %v4015, 64
      %v4109 = vpop.permute.xlu0 %4108
      %4110 = vrot.lane.b32.xlu0 %v4016, 64
      %v4111 = vpop.permute.xlu0 %4110
      %4112 = vrot.lane.b32.xlu0 %v4017, 64
      %v4113 = vpop.permute.xlu0 %4112
      %4146 = vst.msk [vmem:[#allocation3 + $0x8] sm:$0xf] %vm787, %v4051
      %4147 = vst.msk [vmem:[#allocation3 + $0x1c] sm:$0xf] %vm787, %v4053
      %4148 = vst.msk [vmem:[#allocation3 + $0x30] sm:$0xf] %vm787, %v4055
      %4149 = vst.msk [vmem:[#allocation3 + $0x44] sm:$0xf] %vm787, %v4057
      %4150 = vst.msk [vmem:[#allocation3 + $0x58] sm:$0xf] %vm787, %v4059
      %4151 = vst.msk [vmem:[#allocation3 + $0x6c] sm:$0xf] %vm787, %v4061
      %4152 = vst.msk [vmem:[#allocation3 + $0x80] sm:$0xf] %vm787, %v4063
      %4153 = vst.msk [vmem:[#allocation3 + $0x94] sm:$0xf] %vm787, %v4065
      %4154 = vst.msk [vmem:[#allocation3 + $0xa8] sm:$0xf] %vm787, %v4067
      %4155 = vst.msk [vmem:[#allocation3 + $0xbc] sm:$0xf] %vm787, %v4069
      %4156 = vst.msk [vmem:[#allocation3 + $0xd0] sm:$0xf] %vm787, %v4071
      %4157 = vst.msk [vmem:[#allocation3 + $0xe4] sm:$0xf] %vm787, %v4073
      %4158 = vst.msk [vmem:[#allocation3 + $0xf8] sm:$0xf] %vm787, %v4075
      %4159 = vst.msk [vmem:[#allocation3 + $0x10c] sm:$0xf] %vm787, %v4077
      %4160 = vst.msk [vmem:[#allocation3 + $0x120] sm:$0xf] %vm787, %v4079
      %4161 = vst.msk [vmem:[#allocation3 + $0x134] sm:$0xf] %vm787, %v4081
      %4162 = vst.msk [vmem:[#allocation3 + $0x148] sm:$0xf] %vm787, %v4083
      %4163 = vst.msk [vmem:[#allocation3 + $0x15c] sm:$0xf] %vm787, %v4085
      %4164 = vst.msk [vmem:[#allocation3 + $0x170] sm:$0xf] %vm787, %v4087
      %4165 = vst.msk [vmem:[#allocation3 + $0x184] sm:$0xf] %vm787, %v4089
      %4166 = vst.msk [vmem:[#allocation3 + $0x198] sm:$0xf] %vm787, %v4091
      %4167 = vst.msk [vmem:[#allocation3 + $0x1ac] sm:$0xf] %vm787, %v4093
      %4168 = vst.msk [vmem:[#allocation3 + $0x1c0] sm:$0xf] %vm787, %v4095
      %4169 = vst.msk [vmem:[#allocation3 + $0x1d4] sm:$0xf] %vm787, %v4097
      %4170 = vst.msk [vmem:[#allocation3 + $0x1e8] sm:$0xf] %vm787, %v4099
      %4171 = vst.msk [vmem:[#allocation3 + $0x1fc] sm:$0xf] %vm787, %v4101
      %4172 = vst.msk [vmem:[#allocation3 + $0x210] sm:$0xf] %vm787, %v4103
      %4173 = vst.msk [vmem:[#allocation3 + $0x224] sm:$0xf] %vm787, %v4105
      %4174 = vst.msk [vmem:[#allocation3 + $0x238] sm:$0xf] %vm787, %v4107
      %4175 = vst.msk [vmem:[#allocation3 + $0x24c] sm:$0xf] %vm787, %v4109
      %4176 = vst.msk [vmem:[#allocation3 + $0x260] sm:$0xf] %vm787, %v4111
      %4177 = vst.msk [vmem:[#allocation3 + $0x274] sm:$0xf] %vm787, %v4113
      %v4178 = vld [vmem:[%s1460] sm:$0xff]
      %v4179 = vld [vmem:[%s1460 + $0x10] sm:$0xff]
      %v4180 = vld [vmem:[%s1460 + $0x20] sm:$0xff]
      %v4181 = vld [vmem:[%s1460 + $0x30] sm:$0xff]
      %v4182 = vld [vmem:[%s1460 + $0x40] sm:$0xff]
      %v4183 = vld [vmem:[%s1460 + $0x50] sm:$0xff]
      %v4184 = vld [vmem:[%s1460 + $0x60] sm:$0xff]
      %v4185 = vld [vmem:[%s1460 + $0x70] sm:$0xff]
      %v4186 = vld [vmem:[%s1460 + $0xa0] sm:$0xff]
      %v4187 = vld [vmem:[%s1460 + $0xb0] sm:$0xff]
      %v4188 = vld [vmem:[%s1460 + $0xc0] sm:$0xff]
      %v4189 = vld [vmem:[%s1460 + $0xd0] sm:$0xff]
      %v4190 = vld [vmem:[%s1460 + $0xe0] sm:$0xff]
      %v4191 = vld [vmem:[%s1460 + $0xf0] sm:$0xff]
      %v4192 = vld [vmem:[%s1460 + $0x100] sm:$0xff]
      %v4193 = vld [vmem:[%s1460 + $0x110] sm:$0xff]
      %v4194 = vld [vmem:[%s1460 + $0x140] sm:$0xff]
      %v4195 = vld [vmem:[%s1460 + $0x150] sm:$0xff]
      %v4196 = vld [vmem:[%s1460 + $0x160] sm:$0xff]
      %v4197 = vld [vmem:[%s1460 + $0x170] sm:$0xff]
      %v4198 = vld [vmem:[%s1460 + $0x180] sm:$0xff]
      %v4199 = vld [vmem:[%s1460 + $0x190] sm:$0xff]
      %v4200 = vld [vmem:[%s1460 + $0x1a0] sm:$0xff]
      %v4201 = vld [vmem:[%s1460 + $0x1b0] sm:$0xff]
      %v4202 = vld [vmem:[%s1460 + $0x1e0] sm:$0xff]
      %v4203 = vld [vmem:[%s1460 + $0x1f0] sm:$0xff]
      %v4204 = vld [vmem:[%s1460 + $0x200] sm:$0xff]
      %v4205 = vld [vmem:[%s1460 + $0x210] sm:$0xff]
      %v4206 = vld [vmem:[%s1460 + $0x220] sm:$0xff]
      %v4207 = vld [vmem:[%s1460 + $0x230] sm:$0xff]
      %v4208 = vld [vmem:[%s1460 + $0x240] sm:$0xff]
      %v4209 = vld [vmem:[%s1460 + $0x250] sm:$0xff]
      %v4210 = vpack.c.bf16 %v4178, %v4178
      %v4211 = vpack.c.bf16 %v4179, %v4179
      %v4212 = vpack.c.bf16 %v4180, %v4180
      %v4213 = vpack.c.bf16 %v4181, %v4181
      %v4214 = vpack.c.bf16 %v4182, %v4182
      %v4215 = vpack.c.bf16 %v4183, %v4183
      %v4216 = vpack.c.bf16 %v4184, %v4184
      %v4217 = vpack.c.bf16 %v4185, %v4185
      %v4218 = vpack.c.bf16 %v4186, %v4186
      %v4219 = vpack.c.bf16 %v4187, %v4187
      %v4220 = vpack.c.bf16 %v4188, %v4188
      %v4221 = vpack.c.bf16 %v4189, %v4189
      %v4222 = vpack.c.bf16 %v4190, %v4190
      %v4223 = vpack.c.bf16 %v4191, %v4191
      %v4224 = vpack.c.bf16 %v4192, %v4192
      %v4225 = vpack.c.bf16 %v4193, %v4193
      %v4226 = vpack.c.bf16 %v4194, %v4194
      %v4227 = vpack.c.bf16 %v4195, %v4195
      %v4228 = vpack.c.bf16 %v4196, %v4196
      %v4229 = vpack.c.bf16 %v4197, %v4197
      %v4230 = vpack.c.bf16 %v4198, %v4198
      %v4231 = vpack.c.bf16 %v4199, %v4199
      %v4232 = vpack.c.bf16 %v4200, %v4200
      %v4233 = vpack.c.bf16 %v4201, %v4201
      %v4234 = vpack.c.bf16 %v4202, %v4202
      %v4235 = vpack.c.bf16 %v4203, %v4203
      %v4236 = vpack.c.bf16 %v4204, %v4204
      %v4237 = vpack.c.bf16 %v4205, %v4205
      %v4238 = vpack.c.bf16 %v4206, %v4206
      %v4239 = vpack.c.bf16 %v4207, %v4207
      %v4240 = vpack.c.bf16 %v4208, %v4208
      %v4241 = vpack.c.bf16 %v4209, %v4209
      %4242 = vst.msk [vmem:[#allocation3 + $0xc] sm:$0xf] %vm562, %v4210
      %4243 = vst.msk [vmem:[#allocation3 + $0x20] sm:$0xf] %vm562, %v4211
      %4244 = vst.msk [vmem:[#allocation3 + $0x34] sm:$0xf] %vm562, %v4212
      %4245 = vst.msk [vmem:[#allocation3 + $0x48] sm:$0xf] %vm562, %v4213
      %4246 = vst.msk [vmem:[#allocation3 + $0x5c] sm:$0xf] %vm562, %v4214
      %4247 = vst.msk [vmem:[#allocation3 + $0x70] sm:$0xf] %vm562, %v4215
      %4248 = vst.msk [vmem:[#allocation3 + $0x84] sm:$0xf] %vm562, %v4216
      %4249 = vst.msk [vmem:[#allocation3 + $0x98] sm:$0xf] %vm562, %v4217
      %4250 = vst.msk [vmem:[#allocation3 + $0xac] sm:$0xf] %vm562, %v4218
      %4251 = vst.msk [vmem:[#allocation3 + $0xc0] sm:$0xf] %vm562, %v4219
      %4252 = vst.msk [vmem:[#allocation3 + $0xd4] sm:$0xf] %vm562, %v4220
      %4253 = vst.msk [vmem:[#allocation3 + $0xe8] sm:$0xf] %vm562, %v4221
      %4254 = vst.msk [vmem:[#allocation3 + $0xfc] sm:$0xf] %vm562, %v4222
      %4255 = vst.msk [vmem:[#allocation3 + $0x110] sm:$0xf] %vm562, %v4223
      %4256 = vst.msk [vmem:[#allocation3 + $0x124] sm:$0xf] %vm562, %v4224
      %4257 = vst.msk [vmem:[#allocation3 + $0x138] sm:$0xf] %vm562, %v4225
      %4258 = vst.msk [vmem:[#allocation3 + $0x14c] sm:$0xf] %vm562, %v4226
      %4259 = vst.msk [vmem:[#allocation3 + $0x160] sm:$0xf] %vm562, %v4227
      %4260 = vst.msk [vmem:[#allocation3 + $0x174] sm:$0xf] %vm562, %v4228
      %4261 = vst.msk [vmem:[#allocation3 + $0x188] sm:$0xf] %vm562, %v4229
      %4262 = vst.msk [vmem:[#allocation3 + $0x19c] sm:$0xf] %vm562, %v4230
      %4263 = vst.msk [vmem:[#allocation3 + $0x1b0] sm:$0xf] %vm562, %v4231
      %4264 = vst.msk [vmem:[#allocation3 + $0x1c4] sm:$0xf] %vm562, %v4232
      %4265 = vst.msk [vmem:[#allocation3 + $0x1d8] sm:$0xf] %vm562, %v4233
      %4266 = vst.msk [vmem:[#allocation3 + $0x1ec] sm:$0xf] %vm562, %v4234
      %4267 = vst.msk [vmem:[#allocation3 + $0x200] sm:$0xf] %vm562, %v4235
      %4268 = vst.msk [vmem:[#allocation3 + $0x214] sm:$0xf] %vm562, %v4236
      %4269 = vst.msk [vmem:[#allocation3 + $0x228] sm:$0xf] %vm562, %v4237
      %4270 = vst.msk [vmem:[#allocation3 + $0x23c] sm:$0xf] %vm562, %v4238
      %4271 = vst.msk [vmem:[#allocation3 + $0x250] sm:$0xf] %vm562, %v4239
      %4272 = vst.msk [vmem:[#allocation3 + $0x264] sm:$0xf] %vm562, %v4240
      %4273 = vst.msk [vmem:[#allocation3 + $0x278] sm:$0xf] %vm562, %v4241
      %v4274 = vld [vmem:[%s1460 + $0x1] sm:$0xff]
      %v4275 = vld [vmem:[%s1460 + $0x11] sm:$0xff]
      %v4276 = vld [vmem:[%s1460 + $0x21] sm:$0xff]
      %v4277 = vld [vmem:[%s1460 + $0x31] sm:$0xff]
      %v4278 = vld [vmem:[%s1460 + $0x41] sm:$0xff]
      %v4279 = vld [vmem:[%s1460 + $0x51] sm:$0xff]
      %v4280 = vld [vmem:[%s1460 + $0x61] sm:$0xff]
      %v4281 = vld [vmem:[%s1460 + $0x71] sm:$0xff]
      %v4282 = vld [vmem:[%s1460 + $0xa1] sm:$0xff]
      %v4283 = vld [vmem:[%s1460 + $0xb1] sm:$0xff]
      %v4284 = vld [vmem:[%s1460 + $0xc1] sm:$0xff]
      %v4285 = vld [vmem:[%s1460 + $0xd1] sm:$0xff]
      %v4286 = vld [vmem:[%s1460 + $0xe1] sm:$0xff]
      %v4287 = vld [vmem:[%s1460 + $0xf1] sm:$0xff]
      %v4288 = vld [vmem:[%s1460 + $0x101] sm:$0xff]
      %v4289 = vld [vmem:[%s1460 + $0x111] sm:$0xff]
      %v4290 = vld [vmem:[%s1460 + $0x141] sm:$0xff]
      %v4291 = vld [vmem:[%s1460 + $0x151] sm:$0xff]
      %v4292 = vld [vmem:[%s1460 + $0x161] sm:$0xff]
      %v4293 = vld [vmem:[%s1460 + $0x171] sm:$0xff]
      %v4294 = vld [vmem:[%s1460 + $0x181] sm:$0xff]
      %v4295 = vld [vmem:[%s1460 + $0x191] sm:$0xff]
      %v4296 = vld [vmem:[%s1460 + $0x1a1] sm:$0xff]
      %v4297 = vld [vmem:[%s1460 + $0x1b1] sm:$0xff]
      %v4298 = vld [vmem:[%s1460 + $0x1e1] sm:$0xff]
      %v4299 = vld [vmem:[%s1460 + $0x1f1] sm:$0xff]
      %v4300 = vld [vmem:[%s1460 + $0x201] sm:$0xff]
      %v4301 = vld [vmem:[%s1460 + $0x211] sm:$0xff]
      %v4302 = vld [vmem:[%s1460 + $0x221] sm:$0xff]
      %v4303 = vld [vmem:[%s1460 + $0x231] sm:$0xff]
      %v4304 = vld [vmem:[%s1460 + $0x241] sm:$0xff]
      %v4305 = vld [vmem:[%s1460 + $0x251] sm:$0xff]
      %v4306 = vpack.c.bf16 %v4274, %v4274
      %v4307 = vpack.c.bf16 %v4275, %v4275
      %v4308 = vpack.c.bf16 %v4276, %v4276
      %v4309 = vpack.c.bf16 %v4277, %v4277
      %v4310 = vpack.c.bf16 %v4278, %v4278
      %v4311 = vpack.c.bf16 %v4279, %v4279
      %v4312 = vpack.c.bf16 %v4280, %v4280
      %v4313 = vpack.c.bf16 %v4281, %v4281
      %v4314 = vpack.c.bf16 %v4282, %v4282
      %v4315 = vpack.c.bf16 %v4283, %v4283
      %v4316 = vpack.c.bf16 %v4284, %v4284
      %v4317 = vpack.c.bf16 %v4285, %v4285
      %v4318 = vpack.c.bf16 %v4286, %v4286
      %v4319 = vpack.c.bf16 %v4287, %v4287
      %v4320 = vpack.c.bf16 %v4288, %v4288
      %v4321 = vpack.c.bf16 %v4289, %v4289
      %v4322 = vpack.c.bf16 %v4290, %v4290
      %v4323 = vpack.c.bf16 %v4291, %v4291
      %v4324 = vpack.c.bf16 %v4292, %v4292
      %v4325 = vpack.c.bf16 %v4293, %v4293
      %v4326 = vpack.c.bf16 %v4294, %v4294
      %v4327 = vpack.c.bf16 %v4295, %v4295
      %v4328 = vpack.c.bf16 %v4296, %v4296
      %v4329 = vpack.c.bf16 %v4297, %v4297
      %v4330 = vpack.c.bf16 %v4298, %v4298
      %v4331 = vpack.c.bf16 %v4299, %v4299
      %v4332 = vpack.c.bf16 %v4300, %v4300
      %v4333 = vpack.c.bf16 %v4301, %v4301
      %v4334 = vpack.c.bf16 %v4302, %v4302
      %v4335 = vpack.c.bf16 %v4303, %v4303
      %v4336 = vpack.c.bf16 %v4304, %v4304
      %v4337 = vpack.c.bf16 %v4305, %v4305
      %4370 = vrot.lane.b32.xlu0 %v4306, 64
      %v4371 = vpop.permute.xlu0 %4370
      %4372 = vrot.lane.b32.xlu0 %v4307, 64
      %v4373 = vpop.permute.xlu0 %4372
      %4374 = vrot.lane.b32.xlu0 %v4308, 64
      %v4375 = vpop.permute.xlu0 %4374
      %4376 = vrot.lane.b32.xlu0 %v4309, 64
      %v4377 = vpop.permute.xlu0 %4376
      %4378 = vrot.lane.b32.xlu0 %v4310, 64
      %v4379 = vpop.permute.xlu0 %4378
      %4380 = vrot.lane.b32.xlu0 %v4311, 64
      %v4381 = vpop.permute.xlu0 %4380
      %4382 = vrot.lane.b32.xlu0 %v4312, 64
      %v4383 = vpop.permute.xlu0 %4382
      %4384 = vrot.lane.b32.xlu0 %v4313, 64
      %v4385 = vpop.permute.xlu0 %4384
      %4386 = vrot.lane.b32.xlu0 %v4314, 64
      %v4387 = vpop.permute.xlu0 %4386
      %4388 = vrot.lane.b32.xlu0 %v4315, 64
      %v4389 = vpop.permute.xlu0 %4388
      %4390 = vrot.lane.b32.xlu0 %v4316, 64
      %v4391 = vpop.permute.xlu0 %4390
      %4392 = vrot.lane.b32.xlu0 %v4317, 64
      %v4393 = vpop.permute.xlu0 %4392
      %4394 = vrot.lane.b32.xlu0 %v4318, 64
      %v4395 = vpop.permute.xlu0 %4394
      %4396 = vrot.lane.b32.xlu0 %v4319, 64
      %v4397 = vpop.permute.xlu0 %4396
      %4398 = vrot.lane.b32.xlu0 %v4320, 64
      %v4399 = vpop.permute.xlu0 %4398
      %4400 = vrot.lane.b32.xlu0 %v4321, 64
      %v4401 = vpop.permute.xlu0 %4400
      %4402 = vrot.lane.b32.xlu0 %v4322, 64
      %v4403 = vpop.permute.xlu0 %4402
      %4404 = vrot.lane.b32.xlu0 %v4323, 64
      %v4405 = vpop.permute.xlu0 %4404
      %4406 = vrot.lane.b32.xlu0 %v4324, 64
      %v4407 = vpop.permute.xlu0 %4406
      %4408 = vrot.lane.b32.xlu0 %v4325, 64
      %v4409 = vpop.permute.xlu0 %4408
      %4410 = vrot.lane.b32.xlu0 %v4326, 64
      %v4411 = vpop.permute.xlu0 %4410
      %4412 = vrot.lane.b32.xlu0 %v4327, 64
      %v4413 = vpop.permute.xlu0 %4412
      %4414 = vrot.lane.b32.xlu0 %v4328, 64
      %v4415 = vpop.permute.xlu0 %4414
      %4416 = vrot.lane.b32.xlu0 %v4329, 64
      %v4417 = vpop.permute.xlu0 %4416
      %4418 = vrot.lane.b32.xlu0 %v4330, 64
      %v4419 = vpop.permute.xlu0 %4418
      %4420 = vrot.lane.b32.xlu0 %v4331, 64
      %v4421 = vpop.permute.xlu0 %4420
      %4422 = vrot.lane.b32.xlu0 %v4332, 64
      %v4423 = vpop.permute.xlu0 %4422
      %4424 = vrot.lane.b32.xlu0 %v4333, 64
      %v4425 = vpop.permute.xlu0 %4424
      %4426 = vrot.lane.b32.xlu0 %v4334, 64
      %v4427 = vpop.permute.xlu0 %4426
      %4428 = vrot.lane.b32.xlu0 %v4335, 64
      %v4429 = vpop.permute.xlu0 %4428
      %4430 = vrot.lane.b32.xlu0 %v4336, 64
      %v4431 = vpop.permute.xlu0 %4430
      %4432 = vrot.lane.b32.xlu0 %v4337, 64
      %v4433 = vpop.permute.xlu0 %4432
      %4466 = vst.msk [vmem:[#allocation3 + $0xc] sm:$0xf] %vm787, %v4371
      %4467 = vst.msk [vmem:[#allocation3 + $0x20] sm:$0xf] %vm787, %v4373
      %4468 = vst.msk [vmem:[#allocation3 + $0x34] sm:$0xf] %vm787, %v4375
      %4469 = vst.msk [vmem:[#allocation3 + $0x48] sm:$0xf] %vm787, %v4377
      %4470 = vst.msk [vmem:[#allocation3 + $0x5c] sm:$0xf] %vm787, %v4379
      %4471 = vst.msk [vmem:[#allocation3 + $0x70] sm:$0xf] %vm787, %v4381
      %4472 = vst.msk [vmem:[#allocation3 + $0x84] sm:$0xf] %vm787, %v4383
      %4473 = vst.msk [vmem:[#allocation3 + $0x98] sm:$0xf] %vm787, %v4385
      %4474 = vst.msk [vmem:[#allocation3 + $0xac] sm:$0xf] %vm787, %v4387
      %4475 = vst.msk [vmem:[#allocation3 + $0xc0] sm:$0xf] %vm787, %v4389
      %4476 = vst.msk [vmem:[#allocation3 + $0xd4] sm:$0xf] %vm787, %v4391
      %4477 = vst.msk [vmem:[#allocation3 + $0xe8] sm:$0xf] %vm787, %v4393
      %4478 = vst.msk [vmem:[#allocation3 + $0xfc] sm:$0xf] %vm787, %v4395
      %4479 = vst.msk [vmem:[#allocation3 + $0x110] sm:$0xf] %vm787, %v4397
      %4480 = vst.msk [vmem:[#allocation3 + $0x124] sm:$0xf] %vm787, %v4399
      %4481 = vst.msk [vmem:[#allocation3 + $0x138] sm:$0xf] %vm787, %v4401
      %4482 = vst.msk [vmem:[#allocation3 + $0x14c] sm:$0xf] %vm787, %v4403
      %4483 = vst.msk [vmem:[#allocation3 + $0x160] sm:$0xf] %vm787, %v4405
      %4484 = vst.msk [vmem:[#allocation3 + $0x174] sm:$0xf] %vm787, %v4407
      %4485 = vst.msk [vmem:[#allocation3 + $0x188] sm:$0xf] %vm787, %v4409
      %4486 = vst.msk [vmem:[#allocation3 + $0x19c] sm:$0xf] %vm787, %v4411
      %4487 = vst.msk [vmem:[#allocation3 + $0x1b0] sm:$0xf] %vm787, %v4413
      %4488 = vst.msk [vmem:[#allocation3 + $0x1c4] sm:$0xf] %vm787, %v4415
      %4489 = vst.msk [vmem:[#allocation3 + $0x1d8] sm:$0xf] %vm787, %v4417
      %4490 = vst.msk [vmem:[#allocation3 + $0x1ec] sm:$0xf] %vm787, %v4419
      %4491 = vst.msk [vmem:[#allocation3 + $0x200] sm:$0xf] %vm787, %v4421
      %4492 = vst.msk [vmem:[#allocation3 + $0x214] sm:$0xf] %vm787, %v4423
      %4493 = vst.msk [vmem:[#allocation3 + $0x228] sm:$0xf] %vm787, %v4425
      %4494 = vst.msk [vmem:[#allocation3 + $0x23c] sm:$0xf] %vm787, %v4427
      %4495 = vst.msk [vmem:[#allocation3 + $0x250] sm:$0xf] %vm787, %v4429
      %4496 = vst.msk [vmem:[#allocation3 + $0x264] sm:$0xf] %vm787, %v4431
      %4497 = vst.msk [vmem:[#allocation3 + $0x278] sm:$0xf] %vm787, %v4433
      %v4498 = vld [vmem:[%s1460 + $0x2] sm:$0xff]
      %v4499 = vld [vmem:[%s1460 + $0x12] sm:$0xff]
      %v4500 = vld [vmem:[%s1460 + $0x22] sm:$0xff]
      %v4501 = vld [vmem:[%s1460 + $0x32] sm:$0xff]
      %v4502 = vld [vmem:[%s1460 + $0x42] sm:$0xff]
      %v4503 = vld [vmem:[%s1460 + $0x52] sm:$0xff]
      %v4504 = vld [vmem:[%s1460 + $0x62] sm:$0xff]
      %v4505 = vld [vmem:[%s1460 + $0x72] sm:$0xff]
      %v4506 = vld [vmem:[%s1460 + $0xa2] sm:$0xff]
      %v4507 = vld [vmem:[%s1460 + $0xb2] sm:$0xff]
      %v4508 = vld [vmem:[%s1460 + $0xc2] sm:$0xff]
      %v4509 = vld [vmem:[%s1460 + $0xd2] sm:$0xff]
      %v4510 = vld [vmem:[%s1460 + $0xe2] sm:$0xff]
      %v4511 = vld [vmem:[%s1460 + $0xf2] sm:$0xff]
      %v4512 = vld [vmem:[%s1460 + $0x102] sm:$0xff]
      %v4513 = vld [vmem:[%s1460 + $0x112] sm:$0xff]
      %v4514 = vld [vmem:[%s1460 + $0x142] sm:$0xff]
      %v4515 = vld [vmem:[%s1460 + $0x152] sm:$0xff]
      %v4516 = vld [vmem:[%s1460 + $0x162] sm:$0xff]
      %v4517 = vld [vmem:[%s1460 + $0x172] sm:$0xff]
      %v4518 = vld [vmem:[%s1460 + $0x182] sm:$0xff]
      %v4519 = vld [vmem:[%s1460 + $0x192] sm:$0xff]
      %v4520 = vld [vmem:[%s1460 + $0x1a2] sm:$0xff]
      %v4521 = vld [vmem:[%s1460 + $0x1b2] sm:$0xff]
      %v4522 = vld [vmem:[%s1460 + $0x1e2] sm:$0xff]
      %v4523 = vld [vmem:[%s1460 + $0x1f2] sm:$0xff]
      %v4524 = vld [vmem:[%s1460 + $0x202] sm:$0xff]
      %v4525 = vld [vmem:[%s1460 + $0x212] sm:$0xff]
      %v4526 = vld [vmem:[%s1460 + $0x222] sm:$0xff]
      %v4527 = vld [vmem:[%s1460 + $0x232] sm:$0xff]
      %v4528 = vld [vmem:[%s1460 + $0x242] sm:$0xff]
      %v4529 = vld [vmem:[%s1460 + $0x252] sm:$0xff]
      %v4530 = vpack.c.bf16 %v4498, %v4498
      %v4531 = vpack.c.bf16 %v4499, %v4499
      %v4532 = vpack.c.bf16 %v4500, %v4500
      %v4533 = vpack.c.bf16 %v4501, %v4501
      %v4534 = vpack.c.bf16 %v4502, %v4502
      %v4535 = vpack.c.bf16 %v4503, %v4503
      %v4536 = vpack.c.bf16 %v4504, %v4504
      %v4537 = vpack.c.bf16 %v4505, %v4505
      %v4538 = vpack.c.bf16 %v4506, %v4506
      %v4539 = vpack.c.bf16 %v4507, %v4507
      %v4540 = vpack.c.bf16 %v4508, %v4508
      %v4541 = vpack.c.bf16 %v4509, %v4509
      %v4542 = vpack.c.bf16 %v4510, %v4510
      %v4543 = vpack.c.bf16 %v4511, %v4511
      %v4544 = vpack.c.bf16 %v4512, %v4512
      %v4545 = vpack.c.bf16 %v4513, %v4513
      %v4546 = vpack.c.bf16 %v4514, %v4514
      %v4547 = vpack.c.bf16 %v4515, %v4515
      %v4548 = vpack.c.bf16 %v4516, %v4516
      %v4549 = vpack.c.bf16 %v4517, %v4517
      %v4550 = vpack.c.bf16 %v4518, %v4518
      %v4551 = vpack.c.bf16 %v4519, %v4519
      %v4552 = vpack.c.bf16 %v4520, %v4520
      %v4553 = vpack.c.bf16 %v4521, %v4521
      %v4554 = vpack.c.bf16 %v4522, %v4522
      %v4555 = vpack.c.bf16 %v4523, %v4523
      %v4556 = vpack.c.bf16 %v4524, %v4524
      %v4557 = vpack.c.bf16 %v4525, %v4525
      %v4558 = vpack.c.bf16 %v4526, %v4526
      %v4559 = vpack.c.bf16 %v4527, %v4527
      %v4560 = vpack.c.bf16 %v4528, %v4528
      %v4561 = vpack.c.bf16 %v4529, %v4529
      %4562 = vst.msk [vmem:[#allocation3 + $0x10] sm:$0xf] %vm562, %v4530
      %4563 = vst.msk [vmem:[#allocation3 + $0x24] sm:$0xf] %vm562, %v4531
      %4564 = vst.msk [vmem:[#allocation3 + $0x38] sm:$0xf] %vm562, %v4532
      %4565 = vst.msk [vmem:[#allocation3 + $0x4c] sm:$0xf] %vm562, %v4533
      %4566 = vst.msk [vmem:[#allocation3 + $0x60] sm:$0xf] %vm562, %v4534
      %4567 = vst.msk [vmem:[#allocation3 + $0x74] sm:$0xf] %vm562, %v4535
      %4568 = vst.msk [vmem:[#allocation3 + $0x88] sm:$0xf] %vm562, %v4536
      %4569 = vst.msk [vmem:[#allocation3 + $0x9c] sm:$0xf] %vm562, %v4537
      %4570 = vst.msk [vmem:[#allocation3 + $0xb0] sm:$0xf] %vm562, %v4538
      %4571 = vst.msk [vmem:[#allocation3 + $0xc4] sm:$0xf] %vm562, %v4539
      %4572 = vst.msk [vmem:[#allocation3 + $0xd8] sm:$0xf] %vm562, %v4540
      %4573 = vst.msk [vmem:[#allocation3 + $0xec] sm:$0xf] %vm562, %v4541
      %4574 = vst.msk [vmem:[#allocation3 + $0x100] sm:$0xf] %vm562, %v4542
      %4575 = vst.msk [vmem:[#allocation3 + $0x114] sm:$0xf] %vm562, %v4543
      %4576 = vst.msk [vmem:[#allocation3 + $0x128] sm:$0xf] %vm562, %v4544
      %4577 = vst.msk [vmem:[#allocation3 + $0x13c] sm:$0xf] %vm562, %v4545
      %4578 = vst.msk [vmem:[#allocation3 + $0x150] sm:$0xf] %vm562, %v4546
      %4579 = vst.msk [vmem:[#allocation3 + $0x164] sm:$0xf] %vm562, %v4547
      %4580 = vst.msk [vmem:[#allocation3 + $0x178] sm:$0xf] %vm562, %v4548
      %4581 = vst.msk [vmem:[#allocation3 + $0x18c] sm:$0xf] %vm562, %v4549
      %4582 = vst.msk [vmem:[#allocation3 + $0x1a0] sm:$0xf] %vm562, %v4550
      %4583 = vst.msk [vmem:[#allocation3 + $0x1b4] sm:$0xf] %vm562, %v4551
      %4584 = vst.msk [vmem:[#allocation3 + $0x1c8] sm:$0xf] %vm562, %v4552
      %4585 = vst.msk [vmem:[#allocation3 + $0x1dc] sm:$0xf] %vm562, %v4553
      %4586 = vst.msk [vmem:[#allocation3 + $0x1f0] sm:$0xf] %vm562, %v4554
      %4587 = vst.msk [vmem:[#allocation3 + $0x204] sm:$0xf] %vm562, %v4555
      %4588 = vst.msk [vmem:[#allocation3 + $0x218] sm:$0xf] %vm562, %v4556
      %4589 = vst.msk [vmem:[#allocation3 + $0x22c] sm:$0xf] %vm562, %v4557
      %4590 = vst.msk [vmem:[#allocation3 + $0x240] sm:$0xf] %vm562, %v4558
      %4591 = vst.msk [vmem:[#allocation3 + $0x254] sm:$0xf] %vm562, %v4559
      %4592 = vst.msk [vmem:[#allocation3 + $0x268] sm:$0xf] %vm562, %v4560
      %4593 = vst.msk [vmem:[#allocation3 + $0x27c] sm:$0xf] %vm562, %v4561
      %v4594 = vld [vmem:[#allocation3] sm:$0xff]
      %v4595 = vld [vmem:[#allocation3 + $0x8] sm:$0xff]
      %v4596 = vld [vmem:[#allocation3 + $0x10] sm:$0xf]
      %v4597 = vld [vmem:[#allocation3 + $0x14] sm:$0xff]
      %v4598 = vld [vmem:[#allocation3 + $0x1c] sm:$0xff]
      %v4599 = vld [vmem:[#allocation3 + $0x24] sm:$0xf]
      %v4600 = vld [vmem:[#allocation3 + $0x28] sm:$0xff]
      %v4601 = vld [vmem:[#allocation3 + $0x30] sm:$0xff]
      %v4602 = vld [vmem:[#allocation3 + $0x38] sm:$0xf]
      %v4603 = vld [vmem:[#allocation3 + $0x3c] sm:$0xff]
      %v4604 = vld [vmem:[#allocation3 + $0x44] sm:$0xff]
      %v4605 = vld [vmem:[#allocation3 + $0x4c] sm:$0xf]
      %v4606 = vld [vmem:[#allocation3 + $0x50] sm:$0xff]
      %v4607 = vld [vmem:[#allocation3 + $0x58] sm:$0xff]
      %v4608 = vld [vmem:[#allocation3 + $0x60] sm:$0xf]
      %v4609 = vld [vmem:[#allocation3 + $0x64] sm:$0xff]
      %v4610 = vld [vmem:[#allocation3 + $0x6c] sm:$0xff]
      %v4611 = vld [vmem:[#allocation3 + $0x74] sm:$0xf]
      %v4612 = vld [vmem:[#allocation3 + $0x78] sm:$0xff]
      %v4613 = vld [vmem:[#allocation3 + $0x80] sm:$0xff]
      %v4614 = vld [vmem:[#allocation3 + $0x88] sm:$0xf]
      %v4615 = vld [vmem:[#allocation3 + $0x8c] sm:$0xff]
      %v4616 = vld [vmem:[#allocation3 + $0x94] sm:$0xff]
      %v4617 = vld [vmem:[#allocation3 + $0x9c] sm:$0xf]
      %v4618 = vld [vmem:[#allocation3 + $0xa0] sm:$0xff]
      %v4619 = vld [vmem:[#allocation3 + $0xa8] sm:$0xff]
      %v4620 = vld [vmem:[#allocation3 + $0xb0] sm:$0xf]
      %v4621 = vld [vmem:[#allocation3 + $0xb4] sm:$0xff]
      %v4622 = vld [vmem:[#allocation3 + $0xbc] sm:$0xff]
      %v4623 = vld [vmem:[#allocation3 + $0xc4] sm:$0xf]
      %v4624 = vld [vmem:[#allocation3 + $0xc8] sm:$0xff]
      %v4625 = vld [vmem:[#allocation3 + $0xd0] sm:$0xff]
      %v4626 = vld [vmem:[#allocation3 + $0xd8] sm:$0xf]
      %v4627 = vld [vmem:[#allocation3 + $0xdc] sm:$0xff]
      %v4628 = vld [vmem:[#allocation3 + $0xe4] sm:$0xff]
      %v4629 = vld [vmem:[#allocation3 + $0xec] sm:$0xf]
      %v4630 = vld [vmem:[#allocation3 + $0xf0] sm:$0xff]
      %v4631 = vld [vmem:[#allocation3 + $0xf8] sm:$0xff]
      %v4632 = vld [vmem:[#allocation3 + $0x100] sm:$0xf]
      %v4633 = vld [vmem:[#allocation3 + $0x104] sm:$0xff]
      %v4634 = vld [vmem:[#allocation3 + $0x10c] sm:$0xff]
      %v4635 = vld [vmem:[#allocation3 + $0x114] sm:$0xf]
      %v4636 = vld [vmem:[#allocation3 + $0x118] sm:$0xff]
      %v4637 = vld [vmem:[#allocation3 + $0x120] sm:$0xff]
      %v4638 = vld [vmem:[#allocation3 + $0x128] sm:$0xf]
      %v4639 = vld [vmem:[#allocation3 + $0x12c] sm:$0xff]
      %v4640 = vld [vmem:[#allocation3 + $0x134] sm:$0xff]
      %v4641 = vld [vmem:[#allocation3 + $0x13c] sm:$0xf]
      %v4642 = vld [vmem:[#allocation3 + $0x140] sm:$0xff]
      %v4643 = vld [vmem:[#allocation3 + $0x148] sm:$0xff]
      %v4644 = vld [vmem:[#allocation3 + $0x150] sm:$0xf]
      %v4645 = vld [vmem:[#allocation3 + $0x154] sm:$0xff]
      %v4646 = vld [vmem:[#allocation3 + $0x15c] sm:$0xff]
      %v4647 = vld [vmem:[#allocation3 + $0x164] sm:$0xf]
      %v4648 = vld [vmem:[#allocation3 + $0x168] sm:$0xff]
      %v4649 = vld [vmem:[#allocation3 + $0x170] sm:$0xff]
      %v4650 = vld [vmem:[#allocation3 + $0x178] sm:$0xf]
      %v4651 = vld [vmem:[#allocation3 + $0x17c] sm:$0xff]
      %v4652 = vld [vmem:[#allocation3 + $0x184] sm:$0xff]
      %v4653 = vld [vmem:[#allocation3 + $0x18c] sm:$0xf]
      %v4654 = vld [vmem:[#allocation3 + $0x190] sm:$0xff]
      %v4655 = vld [vmem:[#allocation3 + $0x198] sm:$0xff]
      %v4656 = vld [vmem:[#allocation3 + $0x1a0] sm:$0xf]
      %v4657 = vld [vmem:[#allocation3 + $0x1a4] sm:$0xff]
      %v4658 = vld [vmem:[#allocation3 + $0x1ac] sm:$0xff]
      %v4659 = vld [vmem:[#allocation3 + $0x1b4] sm:$0xf]
      %v4660 = vld [vmem:[#allocation3 + $0x1b8] sm:$0xff]
      %v4661 = vld [vmem:[#allocation3 + $0x1c0] sm:$0xff]
      %v4662 = vld [vmem:[#allocation3 + $0x1c8] sm:$0xf]
      %v4663 = vld [vmem:[#allocation3 + $0x1cc] sm:$0xff]
      %v4664 = vld [vmem:[#allocation3 + $0x1d4] sm:$0xff]
      %v4665 = vld [vmem:[#allocation3 + $0x1dc] sm:$0xf]
      %v4666 = vld [vmem:[#allocation3 + $0x1e0] sm:$0xff]
      %v4667 = vld [vmem:[#allocation3 + $0x1e8] sm:$0xff]
      %v4668 = vld [vmem:[#allocation3 + $0x1f0] sm:$0xf]
      %v4669 = vld [vmem:[#allocation3 + $0x1f4] sm:$0xff]
      %v4670 = vld [vmem:[#allocation3 + $0x1fc] sm:$0xff]
      %v4671 = vld [vmem:[#allocation3 + $0x204] sm:$0xf]
      %v4672 = vld [vmem:[#allocation3 + $0x208] sm:$0xff]
      %v4673 = vld [vmem:[#allocation3 + $0x210] sm:$0xff]
      %v4674 = vld [vmem:[#allocation3 + $0x218] sm:$0xf]
      %v4675 = vld [vmem:[#allocation3 + $0x21c] sm:$0xff]
      %v4676 = vld [vmem:[#allocation3 + $0x224] sm:$0xff]
      %v4677 = vld [vmem:[#allocation3 + $0x22c] sm:$0xf]
      %v4678 = vld [vmem:[#allocation3 + $0x230] sm:$0xff]
      %v4679 = vld [vmem:[#allocation3 + $0x238] sm:$0xff]
      %v4680 = vld [vmem:[#allocation3 + $0x240] sm:$0xf]
      %v4681 = vld [vmem:[#allocation3 + $0x244] sm:$0xff]
      %v4682 = vld [vmem:[#allocation3 + $0x24c] sm:$0xff]
      %v4683 = vld [vmem:[#allocation3 + $0x254] sm:$0xf]
      %v4684 = vld [vmem:[#allocation3 + $0x258] sm:$0xff]
      %v4685 = vld [vmem:[#allocation3 + $0x260] sm:$0xff]
      %v4686 = vld [vmem:[#allocation3 + $0x268] sm:$0xf]
      %v4687 = vld [vmem:[#allocation3 + $0x26c] sm:$0xff]
      %v4688 = vld [vmem:[#allocation3 + $0x274] sm:$0xff]
      %v4689 = vld [vmem:[#allocation3 + $0x27c] sm:$0xf]
      %v4690 = vld [vmem:[%s3] sm:$0xf]
      %v4691 = vld [vmem:[%s3 + $0x4] sm:$0xf]
      %v4692 = vld [vmem:[%s3 + $0x8] sm:$0xf]
      %v4693 = vld [vmem:[%s3 + $0xc] sm:$0xf]
      %v4694 = vld [vmem:[%s3 + $0x10] sm:$0xf]
      %v4695 = vld [vmem:[%s3 + $0x14] sm:$0xf]
      %v4696 = vld [vmem:[%s3 + $0x18] sm:$0xf]
      %v4697 = vld [vmem:[%s3 + $0x1c] sm:$0xf]
      %v4698 = vld [vmem:[%s3 + $0x20] sm:$0xf]
      %v4699 = vld [vmem:[%s3 + $0x24] sm:$0xf]
      %v4700 = vld [vmem:[%s3 + $0x28] sm:$0xf]
      %v4701 = vld [vmem:[%s3 + $0x2c] sm:$0xf]
      %v4702 = vld [vmem:[%s3 + $0x30] sm:$0xf]
      %v4703 = vld [vmem:[%s3 + $0x34] sm:$0xf]
      %v4704 = vld [vmem:[%s3 + $0x38] sm:$0xf]
      %v4705 = vld [vmem:[%s3 + $0x3c] sm:$0xf]
      %v4706 = vld [vmem:[%s3 + $0x40] sm:$0xf]
      %v4707 = vld [vmem:[%s3 + $0x44] sm:$0xf]
      %v4708 = vld [vmem:[%s3 + $0x48] sm:$0xf]
      %v4709 = vld [vmem:[%s3 + $0x4c] sm:$0xf]
      %v4710 = vld [vmem:[%s3 + $0x50] sm:$0xf]
      %v4711 = vld [vmem:[%s3 + $0x54] sm:$0xf]
      %v4712 = vld [vmem:[%s3 + $0x58] sm:$0xf]
      %v4713 = vld [vmem:[%s3 + $0x5c] sm:$0xf]
      %v4714 = vld [vmem:[%s3 + $0x60] sm:$0xf]
      %v4715 = vld [vmem:[%s3 + $0x64] sm:$0xf]
      %v4716 = vld [vmem:[%s3 + $0x68] sm:$0xf]
      %v4717 = vld [vmem:[%s3 + $0x6c] sm:$0xf]
      %v4718 = vld [vmem:[%s3 + $0x70] sm:$0xf]
      %v4719 = vld [vmem:[%s3 + $0x74] sm:$0xf]
      %v4720 = vld [vmem:[%s3 + $0x78] sm:$0xf]
      %v4721 = vld [vmem:[%s3 + $0x7c] sm:$0xf]
      %v4722 = vld [vmem:[%s3 + $0x80] sm:$0xf]
      %v4723 = vld [vmem:[%s3 + $0x84] sm:$0xf]
      %v4724 = vld [vmem:[%s3 + $0x88] sm:$0xf]
      %v4725 = vld [vmem:[%s3 + $0x8c] sm:$0xf]
      %v4726 = vld [vmem:[%s3 + $0x90] sm:$0xf]
      %v4727 = vld [vmem:[%s3 + $0x94] sm:$0xf]
      %v4728 = vld [vmem:[%s3 + $0x98] sm:$0xf]
      %v4729 = vld [vmem:[%s3 + $0x9c] sm:$0xf]
      %v4730 = vld [vmem:[%s3 + $0xa0] sm:$0xf]
      %v4731 = vld [vmem:[%s3 + $0xa4] sm:$0xf]
      %v4732 = vld [vmem:[%s3 + $0xa8] sm:$0xf]
      %v4733 = vld [vmem:[%s3 + $0xac] sm:$0xf]
      %v4734 = vld [vmem:[%s3 + $0xb0] sm:$0xf]
      %v4735 = vld [vmem:[%s3 + $0xb4] sm:$0xf]
      %v4736 = vld [vmem:[%s3 + $0xb8] sm:$0xf]
      %v4737 = vld [vmem:[%s3 + $0xbc] sm:$0xf]
      %v4738 = vld [vmem:[%s3 + $0xc0] sm:$0xf]
      %v4739 = vld [vmem:[%s3 + $0xc4] sm:$0xf]
      %v4740 = vld [vmem:[%s3 + $0xc8] sm:$0xf]
      %v4741 = vld [vmem:[%s3 + $0xcc] sm:$0xf]
      %v4742 = vld [vmem:[%s3 + $0xd0] sm:$0xf]
      %v4743 = vld [vmem:[%s3 + $0xd4] sm:$0xf]
      %v4744 = vld [vmem:[%s3 + $0xd8] sm:$0xf]
      %v4745 = vld [vmem:[%s3 + $0xdc] sm:$0xf]
      %v4746 = vld [vmem:[%s3 + $0xe0] sm:$0xf]
      %v4747 = vld [vmem:[%s3 + $0xe4] sm:$0xf]
      %v4748 = vld [vmem:[%s3 + $0xe8] sm:$0xf]
      %v4749 = vld [vmem:[%s3 + $0xec] sm:$0xf]
      %v4750 = vld [vmem:[%s3 + $0xf0] sm:$0xf]
      %v4751 = vld [vmem:[%s3 + $0xf4] sm:$0xf]
      %v4752 = vld [vmem:[%s3 + $0xf8] sm:$0xf]
      %v4753 = vld [vmem:[%s3 + $0xfc] sm:$0xf]
      %v4754 = vld [vmem:[%s3 + $0x100] sm:$0xf]
      %v4755 = vld [vmem:[%s3 + $0x104] sm:$0xf]
      %v4756 = vld [vmem:[%s3 + $0x108] sm:$0xf]
      %v4757 = vld [vmem:[%s3 + $0x10c] sm:$0xf]
      %v4758 = vld [vmem:[%s3 + $0x110] sm:$0xf]
      %v4759 = vld [vmem:[%s3 + $0x114] sm:$0xf]
      %v4760 = vld [vmem:[%s3 + $0x118] sm:$0xf]
      %v4761 = vld [vmem:[%s3 + $0x11c] sm:$0xf]
      %v4858 = vunpack.c.l.b16 %v4594
      %v4859 = vunpack.c.h.b16 %v4594
      %v4860 = vunpack.c.l.b16 %v4595
      %v4861 = vunpack.c.h.b16 %v4595
      %v4862 = vunpack.c.l.b16 %v4596
      %v4863 = vunpack.c.l.b16 %v4597
      %v4864 = vunpack.c.h.b16 %v4597
      %v4865 = vunpack.c.l.b16 %v4598
      %v4866 = vunpack.c.h.b16 %v4598
      %v4867 = vunpack.c.l.b16 %v4599
      %v4868 = vunpack.c.l.b16 %v4600
      %v4869 = vunpack.c.h.b16 %v4600
      %v4870 = vunpack.c.l.b16 %v4601
      %v4871 = vunpack.c.h.b16 %v4601
      %v4872 = vunpack.c.l.b16 %v4602
      %v4873 = vunpack.c.l.b16 %v4603
      %v4874 = vunpack.c.h.b16 %v4603
      %v4875 = vunpack.c.l.b16 %v4604
      %v4876 = vunpack.c.h.b16 %v4604
      %v4877 = vunpack.c.l.b16 %v4605
      %v4878 = vunpack.c.l.b16 %v4606
      %v4879 = vunpack.c.h.b16 %v4606
      %v4880 = vunpack.c.l.b16 %v4607
      %v4881 = vunpack.c.h.b16 %v4607
      %v4882 = vunpack.c.l.b16 %v4608
      %v4883 = vunpack.c.l.b16 %v4609
      %v4884 = vunpack.c.h.b16 %v4609
      %v4885 = vunpack.c.l.b16 %v4610
      %v4886 = vunpack.c.h.b16 %v4610
      %v4887 = vunpack.c.l.b16 %v4611
      %v4888 = vunpack.c.l.b16 %v4612
      %v4889 = vunpack.c.h.b16 %v4612
      %v4890 = vunpack.c.l.b16 %v4613
      %v4891 = vunpack.c.h.b16 %v4613
      %v4892 = vunpack.c.l.b16 %v4614
      %v4893 = vunpack.c.l.b16 %v4615
      %v4894 = vunpack.c.h.b16 %v4615
      %v4895 = vunpack.c.l.b16 %v4616
      %v4896 = vunpack.c.h.b16 %v4616
      %v4897 = vunpack.c.l.b16 %v4617
      %v4898 = vunpack.c.l.b16 %v4618
      %v4899 = vunpack.c.h.b16 %v4618
      %v4900 = vunpack.c.l.b16 %v4619
      %v4901 = vunpack.c.h.b16 %v4619
      %v4902 = vunpack.c.l.b16 %v4620
      %v4903 = vunpack.c.l.b16 %v4621
      %v4904 = vunpack.c.h.b16 %v4621
      %v4905 = vunpack.c.l.b16 %v4622
      %v4906 = vunpack.c.h.b16 %v4622
      %v4907 = vunpack.c.l.b16 %v4623
      %v4908 = vunpack.c.l.b16 %v4624
      %v4909 = vunpack.c.h.b16 %v4624
      %v4910 = vunpack.c.l.b16 %v4625
      %v4911 = vunpack.c.h.b16 %v4625
      %v4912 = vunpack.c.l.b16 %v4626
      %v4913 = vunpack.c.l.b16 %v4627
      %v4914 = vunpack.c.h.b16 %v4627
      %v4915 = vunpack.c.l.b16 %v4628
      %v4916 = vunpack.c.h.b16 %v4628
      %v4917 = vunpack.c.l.b16 %v4629
      %v4918 = vunpack.c.l.b16 %v4630
      %v4919 = vunpack.c.h.b16 %v4630
      %v4920 = vunpack.c.l.b16 %v4631
      %v4921 = vunpack.c.h.b16 %v4631
      %v4922 = vunpack.c.l.b16 %v4632
      %v4923 = vunpack.c.l.b16 %v4633
      %v4924 = vunpack.c.h.b16 %v4633
      %v4925 = vunpack.c.l.b16 %v4634
      %v4926 = vunpack.c.h.b16 %v4634
      %v4927 = vunpack.c.l.b16 %v4635
      %v4928 = vunpack.c.l.b16 %v4636
      %v4929 = vunpack.c.h.b16 %v4636
      %v4930 = vunpack.c.l.b16 %v4637
      %v4931 = vunpack.c.h.b16 %v4637
      %v4932 = vunpack.c.l.b16 %v4638
      %v4933 = vunpack.c.l.b16 %v4639
      %v4934 = vunpack.c.h.b16 %v4639
      %v4935 = vunpack.c.l.b16 %v4640
      %v4936 = vunpack.c.h.b16 %v4640
      %v4937 = vunpack.c.l.b16 %v4641
      %v4938 = vunpack.c.l.b16 %v4642
      %v4939 = vunpack.c.h.b16 %v4642
      %v4940 = vunpack.c.l.b16 %v4643
      %v4941 = vunpack.c.h.b16 %v4643
      %v4942 = vunpack.c.l.b16 %v4644
      %v4943 = vunpack.c.l.b16 %v4645
      %v4944 = vunpack.c.h.b16 %v4645
      %v4945 = vunpack.c.l.b16 %v4646
      %v4946 = vunpack.c.h.b16 %v4646
      %v4947 = vunpack.c.l.b16 %v4647
      %v4948 = vunpack.c.l.b16 %v4648
      %v4949 = vunpack.c.h.b16 %v4648
      %v4950 = vunpack.c.l.b16 %v4649
      %v4951 = vunpack.c.h.b16 %v4649
      %v4952 = vunpack.c.l.b16 %v4650
      %v4953 = vunpack.c.l.b16 %v4651
      %v4954 = vunpack.c.h.b16 %v4651
      %v4955 = vunpack.c.l.b16 %v4652
      %v4956 = vunpack.c.h.b16 %v4652
      %v4957 = vunpack.c.l.b16 %v4653
      %v4958 = vunpack.c.l.b16 %v4654
      %v4959 = vunpack.c.h.b16 %v4654
      %v4960 = vunpack.c.l.b16 %v4655
      %v4961 = vunpack.c.h.b16 %v4655
      %v4962 = vunpack.c.l.b16 %v4656
      %v4963 = vunpack.c.l.b16 %v4657
      %v4964 = vunpack.c.h.b16 %v4657
      %v4965 = vunpack.c.l.b16 %v4658
      %v4966 = vunpack.c.h.b16 %v4658
      %v4967 = vunpack.c.l.b16 %v4659
      %v4968 = vunpack.c.l.b16 %v4660
      %v4969 = vunpack.c.h.b16 %v4660
      %v4970 = vunpack.c.l.b16 %v4661
      %v4971 = vunpack.c.h.b16 %v4661
      %v4972 = vunpack.c.l.b16 %v4662
      %v4973 = vunpack.c.l.b16 %v4663
      %v4974 = vunpack.c.h.b16 %v4663
      %v4975 = vunpack.c.l.b16 %v4664
      %v4976 = vunpack.c.h.b16 %v4664
      %v4977 = vunpack.c.l.b16 %v4665
      %v4978 = vunpack.c.l.b16 %v4666
      %v4979 = vunpack.c.h.b16 %v4666
      %v4980 = vunpack.c.l.b16 %v4667
      %v4981 = vunpack.c.h.b16 %v4667
      %v4982 = vunpack.c.l.b16 %v4668
      %v4983 = vunpack.c.l.b16 %v4669
      %v4984 = vunpack.c.h.b16 %v4669
      %v4985 = vunpack.c.l.b16 %v4670
      %v4986 = vunpack.c.h.b16 %v4670
      %v4987 = vunpack.c.l.b16 %v4671
      %v4988 = vunpack.c.l.b16 %v4672
      %v4989 = vunpack.c.h.b16 %v4672
      %v4990 = vunpack.c.l.b16 %v4673
      %v4991 = vunpack.c.h.b16 %v4673
      %v4992 = vunpack.c.l.b16 %v4674
      %v4993 = vunpack.c.l.b16 %v4675
      %v4994 = vunpack.c.h.b16 %v4675
      %v4995 = vunpack.c.l.b16 %v4676
      %v4996 = vunpack.c.h.b16 %v4676
      %v4997 = vunpack.c.l.b16 %v4677
      %v4998 = vunpack.c.l.b16 %v4678
      %v4999 = vunpack.c.h.b16 %v4678
      %v5000 = vunpack.c.l.b16 %v4679
      %v5001 = vunpack.c.h.b16 %v4679
      %v5002 = vunpack.c.l.b16 %v4680
      %v5003 = vunpack.c.l.b16 %v4681
      %v5004 = vunpack.c.h.b16 %v4681
      %v5005 = vunpack.c.l.b16 %v4682
      %v5006 = vunpack.c.h.b16 %v4682
      %v5007 = vunpack.c.l.b16 %v4683
      %v5008 = vunpack.c.l.b16 %v4684
      %v5009 = vunpack.c.h.b16 %v4684
      %v5010 = vunpack.c.l.b16 %v4685
      %v5011 = vunpack.c.h.b16 %v4685
      %v5012 = vunpack.c.l.b16 %v4686
      %v5013 = vunpack.c.l.b16 %v4687
      %v5014 = vunpack.c.h.b16 %v4687
      %v5015 = vunpack.c.l.b16 %v4688
      %v5016 = vunpack.c.h.b16 %v4688
      %v5017 = vunpack.c.l.b16 %v4689
      %v5018 = vpack.c.b16 %v4863, %v4858
      %v5019 = vpack.c.b16 %v4864, %v4859
      %v5020 = vpack.c.b16 %v4865, %v4860
      %v5021 = vpack.c.b16 %v4866, %v4861
      %v5022 = vpack.c.b16 %v4867, %v4862
      %v5023 = vpack.c.b16 %v4873, %v4868
      %v5024 = vpack.c.b16 %v4874, %v4869
      %v5025 = vpack.c.b16 %v4875, %v4870
      %v5026 = vpack.c.b16 %v4876, %v4871
      %v5027 = vpack.c.b16 %v4877, %v4872
      %v5028 = vpack.c.b16 %v4883, %v4878
      %v5029 = vpack.c.b16 %v4884, %v4879
      %v5030 = vpack.c.b16 %v4885, %v4880
      %v5031 = vpack.c.b16 %v4886, %v4881
      %v5032 = vpack.c.b16 %v4887, %v4882
      %v5033 = vpack.c.b16 %v4893, %v4888
      %v5034 = vpack.c.b16 %v4894, %v4889
      %v5035 = vpack.c.b16 %v4895, %v4890
      %v5036 = vpack.c.b16 %v4896, %v4891
      %v5037 = vpack.c.b16 %v4897, %v4892
      %v5038 = vpack.c.b16 %v4903, %v4898
      %v5039 = vpack.c.b16 %v4904, %v4899
      %v5040 = vpack.c.b16 %v4905, %v4900
      %v5041 = vpack.c.b16 %v4906, %v4901
      %v5042 = vpack.c.b16 %v4907, %v4902
      %v5043 = vpack.c.b16 %v4913, %v4908
      %v5044 = vpack.c.b16 %v4914, %v4909
      %v5045 = vpack.c.b16 %v4915, %v4910
      %v5046 = vpack.c.b16 %v4916, %v4911
      %v5047 = vpack.c.b16 %v4917, %v4912
      %v5048 = vpack.c.b16 %v4923, %v4918
      %v5049 = vpack.c.b16 %v4924, %v4919
      %v5050 = vpack.c.b16 %v4925, %v4920
      %v5051 = vpack.c.b16 %v4926, %v4921
      %v5052 = vpack.c.b16 %v4927, %v4922
      %v5053 = vpack.c.b16 %v4933, %v4928
      %v5054 = vpack.c.b16 %v4934, %v4929
      %v5055 = vpack.c.b16 %v4935, %v4930
      %v5056 = vpack.c.b16 %v4936, %v4931
      %v5057 = vpack.c.b16 %v4937, %v4932
      %v5058 = vpack.c.b16 %v4943, %v4938
      %v5059 = vpack.c.b16 %v4944, %v4939
      %v5060 = vpack.c.b16 %v4945, %v4940
      %v5061 = vpack.c.b16 %v4946, %v4941
      %v5062 = vpack.c.b16 %v4947, %v4942
      %v5063 = vpack.c.b16 %v4953, %v4948
      %v5064 = vpack.c.b16 %v4954, %v4949
      %v5065 = vpack.c.b16 %v4955, %v4950
      %v5066 = vpack.c.b16 %v4956, %v4951
      %v5067 = vpack.c.b16 %v4957, %v4952
      %v5068 = vpack.c.b16 %v4963, %v4958
      %v5069 = vpack.c.b16 %v4964, %v4959
      %v5070 = vpack.c.b16 %v4965, %v4960
      %v5071 = vpack.c.b16 %v4966, %v4961
      %v5072 = vpack.c.b16 %v4967, %v4962
      %v5073 = vpack.c.b16 %v4973, %v4968
      %v5074 = vpack.c.b16 %v4974, %v4969
      %v5075 = vpack.c.b16 %v4975, %v4970
      %v5076 = vpack.c.b16 %v4976, %v4971
      %v5077 = vpack.c.b16 %v4977, %v4972
      %v5078 = vpack.c.b16 %v4983, %v4978
      %v5079 = vpack.c.b16 %v4984, %v4979
      %v5080 = vpack.c.b16 %v4985, %v4980
      %v5081 = vpack.c.b16 %v4986, %v4981
      %v5082 = vpack.c.b16 %v4987, %v4982
      %v5083 = vpack.c.b16 %v4993, %v4988
      %v5084 = vpack.c.b16 %v4994, %v4989
      %v5085 = vpack.c.b16 %v4995, %v4990
      %v5086 = vpack.c.b16 %v4996, %v4991
      %v5087 = vpack.c.b16 %v4997, %v4992
      %v5088 = vpack.c.b16 %v5003, %v4998
      %v5089 = vpack.c.b16 %v5004, %v4999
      %v5090 = vpack.c.b16 %v5005, %v5000
      %v5091 = vpack.c.b16 %v5006, %v5001
      %v5092 = vpack.c.b16 %v5007, %v5002
      %v5093 = vpack.c.b16 %v5013, %v5008
      %v5094 = vpack.c.b16 %v5014, %v5009
      %v5095 = vpack.c.b16 %v5015, %v5010
      %v5096 = vpack.c.b16 %v5016, %v5011
      %v5097 = vpack.c.b16 %v5017, %v5012
      %v5234 = vunpack.c.l.b16 %v4690
      %v5235 = vunpack.c.l.b16 %v4691
      %v5236 = vunpack.c.l.b16 %v4692
      %v5237 = vunpack.c.l.b16 %v4693
      %v5238 = vunpack.c.l.b16 %v4694
      %v5239 = vunpack.c.l.b16 %v4695
      %v5240 = vunpack.c.l.b16 %v4696
      %v5241 = vunpack.c.l.b16 %v4697
      %v5242 = vunpack.c.l.b16 %v4698
      %v5243 = vunpack.c.l.b16 %v4699
      %v5244 = vunpack.c.l.b16 %v4700
      %v5245 = vunpack.c.l.b16 %v4701
      %v5246 = vunpack.c.l.b16 %v4702
      %v5247 = vunpack.c.l.b16 %v4703
      %v5248 = vunpack.c.l.b16 %v4704
      %v5249 = vunpack.c.l.b16 %v4705
      %v5250 = vunpack.c.l.b16 %v4706
      %v5251 = vunpack.c.l.b16 %v4707
      %v5252 = vunpack.c.l.b16 %v4708
      %v5253 = vunpack.c.l.b16 %v4709
      %v5254 = vunpack.c.l.b16 %v4710
      %v5255 = vunpack.c.l.b16 %v4711
      %v5256 = vunpack.c.l.b16 %v4712
      %v5257 = vunpack.c.l.b16 %v4713
      %v5258 = vunpack.c.l.b16 %v4714
      %v5259 = vunpack.c.l.b16 %v4715
      %v5260 = vunpack.c.l.b16 %v4716
      %v5261 = vunpack.c.l.b16 %v4717
      %v5262 = vunpack.c.l.b16 %v4718
      %v5263 = vunpack.c.l.b16 %v4719
      %v5264 = vunpack.c.l.b16 %v4720
      %v5265 = vunpack.c.l.b16 %v4721
      %v5266 = vunpack.c.l.b16 %v4722
      %v5267 = vunpack.c.l.b16 %v4723
      %v5268 = vunpack.c.l.b16 %v4724
      %v5269 = vunpack.c.l.b16 %v4725
      %v5270 = vunpack.c.l.b16 %v4726
      %v5271 = vunpack.c.l.b16 %v4727
      %v5272 = vunpack.c.l.b16 %v4728
      %v5273 = vunpack.c.l.b16 %v4729
      %v5274 = vunpack.c.l.b16 %v4730
      %v5275 = vunpack.c.l.b16 %v4731
      %v5276 = vunpack.c.l.b16 %v4732
      %v5277 = vunpack.c.l.b16 %v4733
      %v5278 = vunpack.c.l.b16 %v4734
      %v5279 = vunpack.c.l.b16 %v4735
      %v5280 = vunpack.c.l.b16 %v4736
      %v5281 = vunpack.c.l.b16 %v4737
      %v5282 = vunpack.c.l.b16 %v4738
      %v5283 = vunpack.c.l.b16 %v4739
      %v5284 = vunpack.c.l.b16 %v4740
      %v5285 = vunpack.c.l.b16 %v4741
      %v5286 = vunpack.c.l.b16 %v4742
      %v5287 = vunpack.c.l.b16 %v4743
      %v5288 = vunpack.c.l.b16 %v4744
      %v5289 = vunpack.c.l.b16 %v4745
      %v5290 = vunpack.c.l.b16 %v4746
      %v5291 = vunpack.c.l.b16 %v4747
      %v5292 = vunpack.c.l.b16 %v4748
      %v5293 = vunpack.c.l.b16 %v4749
      %v5294 = vunpack.c.l.b16 %v4750
      %v5295 = vunpack.c.l.b16 %v4751
      %v5296 = vunpack.c.l.b16 %v4752
      %v5297 = vunpack.c.l.b16 %v4753
      %v5298 = vunpack.c.l.b16 %v4754
      %v5299 = vunpack.c.l.b16 %v4755
      %v5300 = vunpack.c.l.b16 %v4756
      %v5301 = vunpack.c.l.b16 %v4757
      %v5302 = vunpack.c.l.b16 %v4758
      %v5303 = vunpack.c.l.b16 %v4759
      %v5304 = vunpack.c.l.b16 %v4760
      %v5305 = vunpack.c.l.b16 %v4761
      %v5306 = vpack.c.b16 %v5235, %v5234
      %v5307 = vpack.c.b16 %v5237, %v5236
      %v5308 = vpack.c.b16 %v5239, %v5238
      %v5309 = vpack.c.b16 %v5241, %v5240
      %v5310 = vpack.c.b16 %v5243, %v5242
      %v5311 = vpack.c.b16 %v5245, %v5244
      %v5312 = vpack.c.b16 %v5247, %v5246
      %v5313 = vpack.c.b16 %v5249, %v5248
      %v5314 = vpack.c.b16 %v5251, %v5250
      %v5315 = vpack.c.b16 %v5253, %v5252
      %v5316 = vpack.c.b16 %v5255, %v5254
      %v5317 = vpack.c.b16 %v5257, %v5256
      %v5318 = vpack.c.b16 %v5259, %v5258
      %v5319 = vpack.c.b16 %v5261, %v5260
      %v5320 = vpack.c.b16 %v5263, %v5262
      %v5321 = vpack.c.b16 %v5265, %v5264
      %v5322 = vpack.c.b16 %v5267, %v5266
      %v5323 = vpack.c.b16 %v5269, %v5268
      %v5324 = vpack.c.b16 %v5271, %v5270
      %v5325 = vpack.c.b16 %v5273, %v5272
      %v5326 = vpack.c.b16 %v5275, %v5274
      %v5327 = vpack.c.b16 %v5277, %v5276
      %v5328 = vpack.c.b16 %v5279, %v5278
      %v5329 = vpack.c.b16 %v5281, %v5280
      %v5330 = vpack.c.b16 %v5283, %v5282
      %v5331 = vpack.c.b16 %v5285, %v5284
      %v5332 = vpack.c.b16 %v5287, %v5286
      %v5333 = vpack.c.b16 %v5289, %v5288
      %v5334 = vpack.c.b16 %v5291, %v5290
      %v5335 = vpack.c.b16 %v5293, %v5292
      %v5336 = vpack.c.b16 %v5295, %v5294
      %v5337 = vpack.c.b16 %v5297, %v5296
      %v5338 = vpack.c.b16 %v5299, %v5298
      %v5339 = vpack.c.b16 %v5301, %v5300
      %v5340 = vpack.c.b16 %v5303, %v5302
      %v5341 = vpack.c.b16 %v5305, %v5304
      %v5379 = vsel %vm365, %v5022, 0
      %v5382 = vsel %vm365, %v5027, 0
      %v5385 = vsel %vm365, %v5032, 0
      %v5388 = vsel %vm365, %v5037, 0
      %v5391 = vsel %vm365, %v5042, 0
      %v5394 = vsel %vm365, %v5047, 0
      %v5397 = vsel %vm365, %v5052, 0
      %v5400 = vsel %vm365, %v5057, 0
      %v5403 = vsel %vm365, %v5062, 0
      %v5406 = vsel %vm365, %v5067, 0
      %v5409 = vsel %vm365, %v5072, 0
      %v5412 = vsel %vm365, %v5077, 0
      %v5415 = vsel %vm365, %v5082, 0
      %v5418 = vsel %vm365, %v5087, 0
      %v5421 = vsel %vm365, %v5092, 0
      %v5424 = vsel %vm365, %v5097, 0
      %5426 = vmatpush.bf16.msra.mxu0 %v5313
      %5427 = vmatpush.bf16.msra.mxu0 %v5312
      %5428 = vmatpush.bf16.msra.mxu0 %v5311
      %5429 = vmatpush.bf16.msra.mxu0 %v5310
      %5430 = vmatpush.bf16.msra.mxu0 %v5309
      %5431 = vmatpush.bf16.msra.mxu0 %v5308
      %5432 = vmatpush.bf16.msra.mxu0 %v5307
      %5433 = vmatpush.bf16.msra.mxu0 %v5306
      %5434 = vmatmul.bf16.gmra.mxu0 %v5018
      %v5435 = vpop.f32.mrf.mxu0
      %v5436 = vadd.f32 0.0, %v5435
      %v5437 = vpop.f32.mrf.mxu0
      %v5438 = vadd.f32 0.0, %v5437
      %5439 = vmatmul.bf16.gmra.mxu0 %v5023
      %v5440 = vpop.f32.mrf.mxu0
      %v5441 = vadd.f32 0.0, %v5440
      %v5442 = vpop.f32.mrf.mxu0
      %v5443 = vadd.f32 0.0, %v5442
      %5444 = vmatmul.bf16.gmra.mxu0 %v5028
      %v5445 = vpop.f32.mrf.mxu0
      %v5446 = vadd.f32 0.0, %v5445
      %v5447 = vpop.f32.mrf.mxu0
      %v5448 = vadd.f32 0.0, %v5447
      %5449 = vmatmul.bf16.gmra.mxu0 %v5033
      %v5450 = vpop.f32.mrf.mxu0
      %v5451 = vadd.f32 0.0, %v5450
      %v5452 = vpop.f32.mrf.mxu0
      %v5453 = vadd.f32 0.0, %v5452
      %5454 = vmatmul.bf16.gmra.mxu0 %v5038
      %v5455 = vpop.f32.mrf.mxu0
      %v5456 = vadd.f32 0.0, %v5455
      %v5457 = vpop.f32.mrf.mxu0
      %v5458 = vadd.f32 0.0, %v5457
      %5459 = vmatmul.bf16.gmra.mxu0 %v5043
      %v5460 = vpop.f32.mrf.mxu0
      %v5461 = vadd.f32 0.0, %v5460
      %v5462 = vpop.f32.mrf.mxu0
      %v5463 = vadd.f32 0.0, %v5462
      %5464 = vmatmul.bf16.gmra.mxu0 %v5048
      %v5465 = vpop.f32.mrf.mxu0
      %v5466 = vadd.f32 0.0, %v5465
      %v5467 = vpop.f32.mrf.mxu0
      %v5468 = vadd.f32 0.0, %v5467
      %5469 = vmatmul.bf16.gmra.mxu0 %v5053
      %v5470 = vpop.f32.mrf.mxu0
      %v5471 = vadd.f32 0.0, %v5470
      %v5472 = vpop.f32.mrf.mxu0
      %v5473 = vadd.f32 0.0, %v5472
      %5474 = vmatmul.bf16.gmra.mxu0 %v5058
      %v5475 = vpop.f32.mrf.mxu0
      %v5476 = vadd.f32 0.0, %v5475
      %v5477 = vpop.f32.mrf.mxu0
      %v5478 = vadd.f32 0.0, %v5477
      %5479 = vmatmul.bf16.gmra.mxu0 %v5063
      %v5480 = vpop.f32.mrf.mxu0
      %v5481 = vadd.f32 0.0, %v5480
      %v5482 = vpop.f32.mrf.mxu0
      %v5483 = vadd.f32 0.0, %v5482
      %5484 = vmatmul.bf16.gmra.mxu0 %v5068
      %v5485 = vpop.f32.mrf.mxu0
      %v5486 = vadd.f32 0.0, %v5485
      %v5487 = vpop.f32.mrf.mxu0
      %v5488 = vadd.f32 0.0, %v5487
      %5489 = vmatmul.bf16.gmra.mxu0 %v5073
      %v5490 = vpop.f32.mrf.mxu0
      %v5491 = vadd.f32 0.0, %v5490
      %v5492 = vpop.f32.mrf.mxu0
      %v5493 = vadd.f32 0.0, %v5492
      %5494 = vmatmul.bf16.gmra.mxu0 %v5078
      %v5495 = vpop.f32.mrf.mxu0
      %v5496 = vadd.f32 0.0, %v5495
      %v5497 = vpop.f32.mrf.mxu0
      %v5498 = vadd.f32 0.0, %v5497
      %5499 = vmatmul.bf16.gmra.mxu0 %v5083
      %v5500 = vpop.f32.mrf.mxu0
      %v5501 = vadd.f32 0.0, %v5500
      %v5502 = vpop.f32.mrf.mxu0
      %v5503 = vadd.f32 0.0, %v5502
      %5504 = vmatmul.bf16.gmra.mxu0 %v5088
      %v5505 = vpop.f32.mrf.mxu0
      %v5506 = vadd.f32 0.0, %v5505
      %v5507 = vpop.f32.mrf.mxu0
      %v5508 = vadd.f32 0.0, %v5507
      %5509 = vmatmul.bf16.gmra.mxu0 %v5093
      %v5510 = vpop.f32.mrf.mxu0
      %v5511 = vadd.f32 0.0, %v5510
      %v5512 = vpop.f32.mrf.mxu0
      %v5513 = vadd.f32 0.0, %v5512
      %5514 = vdwg.mxu0
      %5515 = vmatpush.bf16.msra.mxu0 %v5321
      %5516 = vmatpush.bf16.msra.mxu0 %v5320
      %5517 = vmatpush.bf16.msra.mxu0 %v5319
      %5518 = vmatpush.bf16.msra.mxu0 %v5318
      %5519 = vmatpush.bf16.msra.mxu0 %v5317
      %5520 = vmatpush.bf16.msra.mxu0 %v5316
      %5521 = vmatpush.bf16.msra.mxu0 %v5315
      %5522 = vmatpush.bf16.msra.mxu0 %v5314
      %5523 = vmatmul.bf16.gmra.mxu0 %v5019
      %v5524 = vpop.f32.mrf.mxu0
      %v5525 = vadd.f32 %v5436, %v5524
      %v5526 = vpop.f32.mrf.mxu0
      %v5527 = vadd.f32 %v5438, %v5526
      %5528 = vmatmul.bf16.gmra.mxu0 %v5024
      %v5529 = vpop.f32.mrf.mxu0
      %v5530 = vadd.f32 %v5441, %v5529
      %v5531 = vpop.f32.mrf.mxu0
      %v5532 = vadd.f32 %v5443, %v5531
      %5533 = vmatmul.bf16.gmra.mxu0 %v5029
      %v5534 = vpop.f32.mrf.mxu0
      %v5535 = vadd.f32 %v5446, %v5534
      %v5536 = vpop.f32.mrf.mxu0
      %v5537 = vadd.f32 %v5448, %v5536
      %5538 = vmatmul.bf16.gmra.mxu0 %v5034
      %v5539 = vpop.f32.mrf.mxu0
      %v5540 = vadd.f32 %v5451, %v5539
      %v5541 = vpop.f32.mrf.mxu0
      %v5542 = vadd.f32 %v5453, %v5541
      %5543 = vmatmul.bf16.gmra.mxu0 %v5039
      %v5544 = vpop.f32.mrf.mxu0
      %v5545 = vadd.f32 %v5456, %v5544
      %v5546 = vpop.f32.mrf.mxu0
      %v5547 = vadd.f32 %v5458, %v5546
      %5548 = vmatmul.bf16.gmra.mxu0 %v5044
      %v5549 = vpop.f32.mrf.mxu0
      %v5550 = vadd.f32 %v5461, %v5549
      %v5551 = vpop.f32.mrf.mxu0
      %v5552 = vadd.f32 %v5463, %v5551
      %5553 = vmatmul.bf16.gmra.mxu0 %v5049
      %v5554 = vpop.f32.mrf.mxu0
      %v5555 = vadd.f32 %v5466, %v5554
      %v5556 = vpop.f32.mrf.mxu0
      %v5557 = vadd.f32 %v5468, %v5556
      %5558 = vmatmul.bf16.gmra.mxu0 %v5054
      %v5559 = vpop.f32.mrf.mxu0
      %v5560 = vadd.f32 %v5471, %v5559
      %v5561 = vpop.f32.mrf.mxu0
      %v5562 = vadd.f32 %v5473, %v5561
      %5563 = vmatmul.bf16.gmra.mxu0 %v5059
      %v5564 = vpop.f32.mrf.mxu0
      %v5565 = vadd.f32 %v5476, %v5564
      %v5566 = vpop.f32.mrf.mxu0
      %v5567 = vadd.f32 %v5478, %v5566
      %5568 = vmatmul.bf16.gmra.mxu0 %v5064
      %v5569 = vpop.f32.mrf.mxu0
      %v5570 = vadd.f32 %v5481, %v5569
      %v5571 = vpop.f32.mrf.mxu0
      %v5572 = vadd.f32 %v5483, %v5571
      %5573 = vmatmul.bf16.gmra.mxu0 %v5069
      %v5574 = vpop.f32.mrf.mxu0
      %v5575 = vadd.f32 %v5486, %v5574
      %v5576 = vpop.f32.mrf.mxu0
      %v5577 = vadd.f32 %v5488, %v5576
      %5578 = vmatmul.bf16.gmra.mxu0 %v5074
      %v5579 = vpop.f32.mrf.mxu0
      %v5580 = vadd.f32 %v5491, %v5579
      %v5581 = vpop.f32.mrf.mxu0
      %v5582 = vadd.f32 %v5493, %v5581
      %5583 = vmatmul.bf16.gmra.mxu0 %v5079
      %v5584 = vpop.f32.mrf.mxu0
      %v5585 = vadd.f32 %v5496, %v5584
      %v5586 = vpop.f32.mrf.mxu0
      %v5587 = vadd.f32 %v5498, %v5586
      %5588 = vmatmul.bf16.gmra.mxu0 %v5084
      %v5589 = vpop.f32.mrf.mxu0
      %v5590 = vadd.f32 %v5501, %v5589
      %v5591 = vpop.f32.mrf.mxu0
      %v5592 = vadd.f32 %v5503, %v5591
      %5593 = vmatmul.bf16.gmra.mxu0 %v5089
      %v5594 = vpop.f32.mrf.mxu0
      %v5595 = vadd.f32 %v5506, %v5594
      %v5596 = vpop.f32.mrf.mxu0
      %v5597 = vadd.f32 %v5508, %v5596
      %5598 = vmatmul.bf16.gmra.mxu0 %v5094
      %v5599 = vpop.f32.mrf.mxu0
      %v5600 = vadd.f32 %v5511, %v5599
      %v5601 = vpop.f32.mrf.mxu0
      %v5602 = vadd.f32 %v5513, %v5601
      %5603 = vdwg.mxu0
      %5604 = vmatpush.bf16.msra.mxu0 %v5329
      %5605 = vmatpush.bf16.msra.mxu0 %v5328
      %5606 = vmatpush.bf16.msra.mxu0 %v5327
      %5607 = vmatpush.bf16.msra.mxu0 %v5326
      %5608 = vmatpush.bf16.msra.mxu0 %v5325
      %5609 = vmatpush.bf16.msra.mxu0 %v5324
      %5610 = vmatpush.bf16.msra.mxu0 %v5323
      %5611 = vmatpush.bf16.msra.mxu0 %v5322
      %5612 = vmatmul.bf16.gmra.mxu0 %v5020
      %v5613 = vpop.f32.mrf.mxu0
      %v5614 = vadd.f32 %v5525, %v5613
      %v5615 = vpop.f32.mrf.mxu0
      %v5616 = vadd.f32 %v5527, %v5615
      %5617 = vmatmul.bf16.gmra.mxu0 %v5025
      %v5618 = vpop.f32.mrf.mxu0
      %v5619 = vadd.f32 %v5530, %v5618
      %v5620 = vpop.f32.mrf.mxu0
      %v5621 = vadd.f32 %v5532, %v5620
      %5622 = vmatmul.bf16.gmra.mxu0 %v5030
      %v5623 = vpop.f32.mrf.mxu0
      %v5624 = vadd.f32 %v5535, %v5623
      %v5625 = vpop.f32.mrf.mxu0
      %v5626 = vadd.f32 %v5537, %v5625
      %5627 = vmatmul.bf16.gmra.mxu0 %v5035
      %v5628 = vpop.f32.mrf.mxu0
      %v5629 = vadd.f32 %v5540, %v5628
      %v5630 = vpop.f32.mrf.mxu0
      %v5631 = vadd.f32 %v5542, %v5630
      %5632 = vmatmul.bf16.gmra.mxu0 %v5040
      %v5633 = vpop.f32.mrf.mxu0
      %v5634 = vadd.f32 %v5545, %v5633
      %v5635 = vpop.f32.mrf.mxu0
      %v5636 = vadd.f32 %v5547, %v5635
      %5637 = vmatmul.bf16.gmra.mxu0 %v5045
      %v5638 = vpop.f32.mrf.mxu0
      %v5639 = vadd.f32 %v5550, %v5638
      %v5640 = vpop.f32.mrf.mxu0
      %v5641 = vadd.f32 %v5552, %v5640
      %5642 = vmatmul.bf16.gmra.mxu0 %v5050
      %v5643 = vpop.f32.mrf.mxu0
      %v5644 = vadd.f32 %v5555, %v5643
      %v5645 = vpop.f32.mrf.mxu0
      %v5646 = vadd.f32 %v5557, %v5645
      %5647 = vmatmul.bf16.gmra.mxu0 %v5055
      %v5648 = vpop.f32.mrf.mxu0
      %v5649 = vadd.f32 %v5560, %v5648
      %v5650 = vpop.f32.mrf.mxu0
      %v5651 = vadd.f32 %v5562, %v5650
      %5652 = vmatmul.bf16.gmra.mxu0 %v5060
      %v5653 = vpop.f32.mrf.mxu0
      %v5654 = vadd.f32 %v5565, %v5653
      %v5655 = vpop.f32.mrf.mxu0
      %v5656 = vadd.f32 %v5567, %v5655
      %5657 = vmatmul.bf16.gmra.mxu0 %v5065
      %v5658 = vpop.f32.mrf.mxu0
      %v5659 = vadd.f32 %v5570, %v5658
      %v5660 = vpop.f32.mrf.mxu0
      %v5661 = vadd.f32 %v5572, %v5660
      %5662 = vmatmul.bf16.gmra.mxu0 %v5070
      %v5663 = vpop.f32.mrf.mxu0
      %v5664 = vadd.f32 %v5575, %v5663
      %v5665 = vpop.f32.mrf.mxu0
      %v5666 = vadd.f32 %v5577, %v5665
      %5667 = vmatmul.bf16.gmra.mxu0 %v5075
      %v5668 = vpop.f32.mrf.mxu0
      %v5669 = vadd.f32 %v5580, %v5668
      %v5670 = vpop.f32.mrf.mxu0
      %v5671 = vadd.f32 %v5582, %v5670
      %5672 = vmatmul.bf16.gmra.mxu0 %v5080
      %v5673 = vpop.f32.mrf.mxu0
      %v5674 = vadd.f32 %v5585, %v5673
      %v5675 = vpop.f32.mrf.mxu0
      %v5676 = vadd.f32 %v5587, %v5675
      %5677 = vmatmul.bf16.gmra.mxu0 %v5085
      %v5678 = vpop.f32.mrf.mxu0
      %v5679 = vadd.f32 %v5590, %v5678
      %v5680 = vpop.f32.mrf.mxu0
      %v5681 = vadd.f32 %v5592, %v5680
      %5682 = vmatmul.bf16.gmra.mxu0 %v5090
      %v5683 = vpop.f32.mrf.mxu0
      %v5684 = vadd.f32 %v5595, %v5683
      %v5685 = vpop.f32.mrf.mxu0
      %v5686 = vadd.f32 %v5597, %v5685
      %5687 = vmatmul.bf16.gmra.mxu0 %v5095
      %v5688 = vpop.f32.mrf.mxu0
      %v5689 = vadd.f32 %v5600, %v5688
      %v5690 = vpop.f32.mrf.mxu0
      %v5691 = vadd.f32 %v5602, %v5690
      %5692 = vdwg.mxu0
      %5693 = vmatpush.bf16.msra.mxu0 %v5337
      %5694 = vmatpush.bf16.msra.mxu0 %v5336
      %5695 = vmatpush.bf16.msra.mxu0 %v5335
      %5696 = vmatpush.bf16.msra.mxu0 %v5334
      %5697 = vmatpush.bf16.msra.mxu0 %v5333
      %5698 = vmatpush.bf16.msra.mxu0 %v5332
      %5699 = vmatpush.bf16.msra.mxu0 %v5331
      %5700 = vmatpush.bf16.msra.mxu0 %v5330
      %5701 = vmatmul.bf16.gmra.mxu0 %v5021
      %v5702 = vpop.f32.mrf.mxu0
      %v5703 = vadd.f32 %v5614, %v5702
      %v5704 = vpop.f32.mrf.mxu0
      %v5705 = vadd.f32 %v5616, %v5704
      %5706 = vmatmul.bf16.gmra.mxu0 %v5026
      %v5707 = vpop.f32.mrf.mxu0
      %v5708 = vadd.f32 %v5619, %v5707
      %v5709 = vpop.f32.mrf.mxu0
      %v5710 = vadd.f32 %v5621, %v5709
      %5711 = vmatmul.bf16.gmra.mxu0 %v5031
      %v5712 = vpop.f32.mrf.mxu0
      %v5713 = vadd.f32 %v5624, %v5712
      %v5714 = vpop.f32.mrf.mxu0
      %v5715 = vadd.f32 %v5626, %v5714
      %5716 = vmatmul.bf16.gmra.mxu0 %v5036
      %v5717 = vpop.f32.mrf.mxu0
      %v5718 = vadd.f32 %v5629, %v5717
      %v5719 = vpop.f32.mrf.mxu0
      %v5720 = vadd.f32 %v5631, %v5719
      %5721 = vmatmul.bf16.gmra.mxu0 %v5041
      %v5722 = vpop.f32.mrf.mxu0
      %v5723 = vadd.f32 %v5634, %v5722
      %v5724 = vpop.f32.mrf.mxu0
      %v5725 = vadd.f32 %v5636, %v5724
      %5726 = vmatmul.bf16.gmra.mxu0 %v5046
      %v5727 = vpop.f32.mrf.mxu0
      %v5728 = vadd.f32 %v5639, %v5727
      %v5729 = vpop.f32.mrf.mxu0
      %v5730 = vadd.f32 %v5641, %v5729
      %5731 = vmatmul.bf16.gmra.mxu0 %v5051
      %v5732 = vpop.f32.mrf.mxu0
      %v5733 = vadd.f32 %v5644, %v5732
      %v5734 = vpop.f32.mrf.mxu0
      %v5735 = vadd.f32 %v5646, %v5734
      %5736 = vmatmul.bf16.gmra.mxu0 %v5056
      %v5737 = vpop.f32.mrf.mxu0
      %v5738 = vadd.f32 %v5649, %v5737
      %v5739 = vpop.f32.mrf.mxu0
      %v5740 = vadd.f32 %v5651, %v5739
      %5741 = vmatmul.bf16.gmra.mxu0 %v5061
      %v5742 = vpop.f32.mrf.mxu0
      %v5743 = vadd.f32 %v5654, %v5742
      %v5744 = vpop.f32.mrf.mxu0
      %v5745 = vadd.f32 %v5656, %v5744
      %5746 = vmatmul.bf16.gmra.mxu0 %v5066
      %v5747 = vpop.f32.mrf.mxu0
      %v5748 = vadd.f32 %v5659, %v5747
      %v5749 = vpop.f32.mrf.mxu0
      %v5750 = vadd.f32 %v5661, %v5749
      %5751 = vmatmul.bf16.gmra.mxu0 %v5071
      %v5752 = vpop.f32.mrf.mxu0
      %v5753 = vadd.f32 %v5664, %v5752
      %v5754 = vpop.f32.mrf.mxu0
      %v5755 = vadd.f32 %v5666, %v5754
      %5756 = vmatmul.bf16.gmra.mxu0 %v5076
      %v5757 = vpop.f32.mrf.mxu0
      %v5758 = vadd.f32 %v5669, %v5757
      %v5759 = vpop.f32.mrf.mxu0
      %v5760 = vadd.f32 %v5671, %v5759
      %5761 = vmatmul.bf16.gmra.mxu0 %v5081
      %v5762 = vpop.f32.mrf.mxu0
      %v5763 = vadd.f32 %v5674, %v5762
      %v5764 = vpop.f32.mrf.mxu0
      %v5765 = vadd.f32 %v5676, %v5764
      %5766 = vmatmul.bf16.gmra.mxu0 %v5086
      %v5767 = vpop.f32.mrf.mxu0
      %v5768 = vadd.f32 %v5679, %v5767
      %v5769 = vpop.f32.mrf.mxu0
      %v5770 = vadd.f32 %v5681, %v5769
      %5771 = vmatmul.bf16.gmra.mxu0 %v5091
      %v5772 = vpop.f32.mrf.mxu0
      %v5773 = vadd.f32 %v5684, %v5772
      %v5774 = vpop.f32.mrf.mxu0
      %v5775 = vadd.f32 %v5686, %v5774
      %5776 = vmatmul.bf16.gmra.mxu0 %v5096
      %v5777 = vpop.f32.mrf.mxu0
      %v5778 = vadd.f32 %v5689, %v5777
      %v5779 = vpop.f32.mrf.mxu0
      %v5780 = vadd.f32 %v5691, %v5779
      %5781 = vdwg.mxu0
      %5782 = vmatpush.bf16.msra.mxu0 0
      %5783 = vmatpush.bf16.msra.mxu0 0
      %5784 = vmatpush.bf16.msra.mxu0 0
      %5785 = vmatpush.bf16.msra.mxu0 0
      %5786 = vmatpush.bf16.msra.mxu0 %v5341
      %5787 = vmatpush.bf16.msra.mxu0 %v5340
      %5788 = vmatpush.bf16.msra.mxu0 %v5339
      %5789 = vmatpush.bf16.msra.mxu0 %v5338
      %5790 = vmatmul.bf16.gmra.mxu0 %v5379
      %v5791 = vpop.f32.mrf.mxu0
      %v5792 = vadd.f32 %v5703, %v5791
      %v5793 = vpop.f32.mrf.mxu0
      %v5794 = vadd.f32 %v5705, %v5793
      %5795 = vmatmul.bf16.gmra.mxu0 %v5382
      %v5796 = vpop.f32.mrf.mxu0
      %v5797 = vadd.f32 %v5708, %v5796
      %v5798 = vpop.f32.mrf.mxu0
      %v5799 = vadd.f32 %v5710, %v5798
      %5800 = vmatmul.bf16.gmra.mxu0 %v5385
      %v5801 = vpop.f32.mrf.mxu0
      %v5802 = vadd.f32 %v5713, %v5801
      %v5803 = vpop.f32.mrf.mxu0
      %v5804 = vadd.f32 %v5715, %v5803
      %5805 = vmatmul.bf16.gmra.mxu0 %v5388
      %v5806 = vpop.f32.mrf.mxu0
      %v5807 = vadd.f32 %v5718, %v5806
      %v5808 = vpop.f32.mrf.mxu0
      %v5809 = vadd.f32 %v5720, %v5808
      %5810 = vmatmul.bf16.gmra.mxu0 %v5391
      %v5811 = vpop.f32.mrf.mxu0
      %v5812 = vadd.f32 %v5723, %v5811
      %v5813 = vpop.f32.mrf.mxu0
      %v5814 = vadd.f32 %v5725, %v5813
      %5815 = vmatmul.bf16.gmra.mxu0 %v5394
      %v5816 = vpop.f32.mrf.mxu0
      %v5817 = vadd.f32 %v5728, %v5816
      %v5818 = vpop.f32.mrf.mxu0
      %v5819 = vadd.f32 %v5730, %v5818
      %5820 = vmatmul.bf16.gmra.mxu0 %v5397
      %v5821 = vpop.f32.mrf.mxu0
      %v5822 = vadd.f32 %v5733, %v5821
      %v5823 = vpop.f32.mrf.mxu0
      %v5824 = vadd.f32 %v5735, %v5823
      %5825 = vmatmul.bf16.gmra.mxu0 %v5400
      %v5826 = vpop.f32.mrf.mxu0
      %v5827 = vadd.f32 %v5738, %v5826
      %v5828 = vpop.f32.mrf.mxu0
      %v5829 = vadd.f32 %v5740, %v5828
      %5830 = vmatmul.bf16.gmra.mxu0 %v5403
      %v5831 = vpop.f32.mrf.mxu0
      %v5832 = vadd.f32 %v5743, %v5831
      %v5833 = vpop.f32.mrf.mxu0
      %v5834 = vadd.f32 %v5745, %v5833
      %5835 = vmatmul.bf16.gmra.mxu0 %v5406
      %v5836 = vpop.f32.mrf.mxu0
      %v5837 = vadd.f32 %v5748, %v5836
      %v5838 = vpop.f32.mrf.mxu0
      %v5839 = vadd.f32 %v5750, %v5838
      %5840 = vmatmul.bf16.gmra.mxu0 %v5409
      %v5841 = vpop.f32.mrf.mxu0
      %v5842 = vadd.f32 %v5753, %v5841
      %v5843 = vpop.f32.mrf.mxu0
      %v5844 = vadd.f32 %v5755, %v5843
      %5845 = vmatmul.bf16.gmra.mxu0 %v5412
      %v5846 = vpop.f32.mrf.mxu0
      %v5847 = vadd.f32 %v5758, %v5846
      %v5848 = vpop.f32.mrf.mxu0
      %v5849 = vadd.f32 %v5760, %v5848
      %5850 = vmatmul.bf16.gmra.mxu0 %v5415
      %v5851 = vpop.f32.mrf.mxu0
      %v5852 = vadd.f32 %v5763, %v5851
      %v5853 = vpop.f32.mrf.mxu0
      %v5854 = vadd.f32 %v5765, %v5853
      %5855 = vmatmul.bf16.gmra.mxu0 %v5418
      %v5856 = vpop.f32.mrf.mxu0
      %v5857 = vadd.f32 %v5768, %v5856
      %v5858 = vpop.f32.mrf.mxu0
      %v5859 = vadd.f32 %v5770, %v5858
      %5860 = vmatmul.bf16.gmra.mxu0 %v5421
      %v5861 = vpop.f32.mrf.mxu0
      %v5862 = vadd.f32 %v5773, %v5861
      %v5863 = vpop.f32.mrf.mxu0
      %v5864 = vadd.f32 %v5775, %v5863
      %5865 = vmatmul.bf16.gmra.mxu0 %v5424
      %v5866 = vpop.f32.mrf.mxu0
      %v5867 = vadd.f32 %v5778, %v5866
      %v5868 = vpop.f32.mrf.mxu0
      %v5869 = vadd.f32 %v5780, %v5868
      %5870 = vdwg.mxu0
      %v5871 = vmax.f32 %v5792, 0.0
      %v5872 = vmax.f32 %v5794, 0.0
      %v5873 = vmax.f32 %v5797, 0.0
      %v5874 = vmax.f32 %v5799, 0.0
      %v5875 = vmax.f32 %v5802, 0.0
      %v5876 = vmax.f32 %v5804, 0.0
      %v5877 = vmax.f32 %v5807, 0.0
      %v5878 = vmax.f32 %v5809, 0.0
      %v5879 = vmax.f32 %v5812, 0.0
      %v5880 = vmax.f32 %v5814, 0.0
      %v5881 = vmax.f32 %v5817, 0.0
      %v5882 = vmax.f32 %v5819, 0.0
      %v5883 = vmax.f32 %v5822, 0.0
      %v5884 = vmax.f32 %v5824, 0.0
      %v5885 = vmax.f32 %v5827, 0.0
      %v5886 = vmax.f32 %v5829, 0.0
      %v5887 = vmax.f32 %v5832, 0.0
      %v5888 = vmax.f32 %v5834, 0.0
      %v5889 = vmax.f32 %v5837, 0.0
      %v5890 = vmax.f32 %v5839, 0.0
      %v5891 = vmax.f32 %v5842, 0.0
      %v5892 = vmax.f32 %v5844, 0.0
      %v5893 = vmax.f32 %v5847, 0.0
      %v5894 = vmax.f32 %v5849, 0.0
      %v5895 = vmax.f32 %v5852, 0.0
      %v5896 = vmax.f32 %v5854, 0.0
      %v5897 = vmax.f32 %v5857, 0.0
      %v5898 = vmax.f32 %v5859, 0.0
      %v5899 = vmax.f32 %v5862, 0.0
      %v5900 = vmax.f32 %v5864, 0.0
      %v5901 = vmax.f32 %v5867, 0.0
      %v5902 = vmax.f32 %v5869, 0.0
      %v5903 = vadd.f32 %v5871, %v229
      %v5904 = vadd.f32 %v5872, %v230
      %v5905 = vadd.f32 %v5873, %v231
      %v5906 = vadd.f32 %v5874, %v232
      %v5907 = vadd.f32 %v5875, %v233
      %v5908 = vadd.f32 %v5876, %v234
      %v5909 = vadd.f32 %v5877, %v235
      %v5910 = vadd.f32 %v5878, %v236
      %v5911 = vadd.f32 %v5879, %v237
      %v5912 = vadd.f32 %v5880, %v238
      %v5913 = vadd.f32 %v5881, %v239
      %v5914 = vadd.f32 %v5882, %v240
      %v5915 = vadd.f32 %v5883, %v241
      %v5916 = vadd.f32 %v5884, %v242
      %v5917 = vadd.f32 %v5885, %v243
      %v5918 = vadd.f32 %v5886, %v244
      %v5919 = vadd.f32 %v5887, %v245
      %v5920 = vadd.f32 %v5888, %v246
      %v5921 = vadd.f32 %v5889, %v247
      %v5922 = vadd.f32 %v5890, %v248
      %v5923 = vadd.f32 %v5891, %v249
      %v5924 = vadd.f32 %v5892, %v250
      %v5925 = vadd.f32 %v5893, %v251
      %v5926 = vadd.f32 %v5894, %v252
      %v5927 = vadd.f32 %v5895, %v253
      %v5928 = vadd.f32 %v5896, %v254
      %v5929 = vadd.f32 %v5897, %v255
      %v5930 = vadd.f32 %v5898, %v256
      %v5931 = vadd.f32 %v5899, %v257
      %v5932 = vadd.f32 %v5900, %v258
      %v5933 = vadd.f32 %v5901, %v259
      %v5934 = vadd.f32 %v5902, %v260
      %5935 = vst.msk [vmem:[%s226] sm:$0xff] %vm365, %v5903
      %5936 = vst.msk [vmem:[%s226 + $0x8] sm:$0xff] %vm365, %v5904
      %5937 = vst.msk [vmem:[%s226 + $0x10] sm:$0xff] %vm365, %v5905
      %5938 = vst.msk [vmem:[%s226 + $0x18] sm:$0xff] %vm365, %v5906
      %5939 = vst.msk [vmem:[%s226 + $0x20] sm:$0xff] %vm365, %v5907
      %5940 = vst.msk [vmem:[%s226 + $0x28] sm:$0xff] %vm365, %v5908
      %5941 = vst.msk [vmem:[%s226 + $0x30] sm:$0xff] %vm365, %v5909
      %5942 = vst.msk [vmem:[%s226 + $0x38] sm:$0xff] %vm365, %v5910
      %5943 = vst.msk [vmem:[%s226 + $0x40] sm:$0xff] %vm365, %v5911
      %5944 = vst.msk [vmem:[%s226 + $0x48] sm:$0xff] %vm365, %v5912
      %5945 = vst.msk [vmem:[%s226 + $0x50] sm:$0xff] %vm365, %v5913
      %5946 = vst.msk [vmem:[%s226 + $0x58] sm:$0xff] %vm365, %v5914
      %5947 = vst.msk [vmem:[%s226 + $0x60] sm:$0xff] %vm365, %v5915
      %5948 = vst.msk [vmem:[%s226 + $0x68] sm:$0xff] %vm365, %v5916
      %5949 = vst.msk [vmem:[%s226 + $0x70] sm:$0xff] %vm365, %v5917
      %5950 = vst.msk [vmem:[%s226 + $0x78] sm:$0xff] %vm365, %v5918
      %5951 = vst.msk [vmem:[%s226 + $0x80] sm:$0xff] %vm365, %v5919
      %5952 = vst.msk [vmem:[%s226 + $0x88] sm:$0xff] %vm365, %v5920
      %5953 = vst.msk [vmem:[%s226 + $0x90] sm:$0xff] %vm365, %v5921
      %5954 = vst.msk [vmem:[%s226 + $0x98] sm:$0xff] %vm365, %v5922
      %5955 = vst.msk [vmem:[%s226 + $0xa0] sm:$0xff] %vm365, %v5923
      %5956 = vst.msk [vmem:[%s226 + $0xa8] sm:$0xff] %vm365, %v5924
      %5957 = vst.msk [vmem:[%s226 + $0xb0] sm:$0xff] %vm365, %v5925
      %5958 = vst.msk [vmem:[%s226 + $0xb8] sm:$0xff] %vm365, %v5926
      %5959 = vst.msk [vmem:[%s226 + $0xc0] sm:$0xff] %vm365, %v5927
      %5960 = vst.msk [vmem:[%s226 + $0xc8] sm:$0xff] %vm365, %v5928
      %5961 = vst.msk [vmem:[%s226 + $0xd0] sm:$0xff] %vm365, %v5929
      %5962 = vst.msk [vmem:[%s226 + $0xd8] sm:$0xff] %vm365, %v5930
      %5963 = vst.msk [vmem:[%s226 + $0xe0] sm:$0xff] %vm365, %v5931
      %5964 = vst.msk [vmem:[%s226 + $0xe8] sm:$0xff] %vm365, %v5932
      %5965 = vst.msk [vmem:[%s226 + $0xf0] sm:$0xff] %vm365, %v5933
      %5966 = vst.msk [vmem:[%s226 + $0xf8] sm:$0xff] %vm365, %v5934
      %s5967 = smul.u32 32, %s16
      %p5968 = scmp.lt.s32.totalorder %s5967, 63
      %s5969 = scalar_select %p5968, %s5967, 63
      %s5970 = smul.addr %s5969, 8
      %s5971 = scalar_lea.vmem %s5, %s5970
      // Predicated region
      $region41: #{tpu_custom_call.1} parent=39 // pred_check
        %p5972 = pneg %p144
      $region42: #{tpu_custom_call.1} parent=39 // pred_check_branch
        %5974 = sbr.rel (%p5972) target = $region44
      $region43: #{tpu_custom_call.1} parent=39 // pred_region
        %s5975 = smul.u32 32, %s16
      $region44: #{tpu_custom_call.1} parent=39 // pred_fallthru
        _
    $region40: #{tpu_custom_call.1} parent=5 // pred_fallthru
      _
    %p5976 = scmp.le.s32.totalorder 2, %s11
    // Predicated region
    $region45: #{tpu_custom_call.1} parent=5 // pred_check
      %p5977 = pneg %p5976
    $region46: #{tpu_custom_call.1} parent=5 // pred_check_branch
      %5979 = sbr.rel (%p5977) target = $region48
    $region47: #{tpu_custom_call.1} parent=5 // pred_region
      %s5980 = ssub.s32 %s11, 2
      // Predicated region
      $region49: #{tpu_custom_call.1} parent=47 // pred_check
        %p5981 = pneg %p150
      $region50: #{tpu_custom_call.1} parent=47 // pred_check_branch
        %5983 = sbr.rel (%p5981) target = $region52
      $region51: #{tpu_custom_call.1} parent=47 // pred_region
        %s5984 = smul.u32 32, %s17
        %p5985 = scmp.lt.s32.totalorder %s5984, 63
        %s5986 = scalar_select %p5985, %s5984, 63
        %s5987 = smul.addr %s5986, 8
        %s5988 = scalar_lea.vmem %s5, %s5987
      $region52: #{tpu_custom_call.1} parent=47 // pred_fallthru
        _
    $region48: #{tpu_custom_call.1} parent=5 // pred_fallthru
      _
  $region6: #{tpu_custom_call.1} parent=0 // loop_footer
    %s15 = sadd.s32 1, %s11
  $region7: #{tpu_custom_call.1} parent=0 // loop_footer_branch
    %10 = sbr.rel target = $region3
  $region8: #{tpu_custom_call.1} parent=0 // loop_exit
    _

</llo_original>
